<compile_context>
chip_gen: v7x
topology: tpu7x:2x2x1
jax: 0.10.0
libtpu: 0.0.40
codegen_flags: <defaults>
</compile_context>

<pallas_src>
import numpy as np
import jax
import jax.numpy as jnp
from jax.experimental import pallas as pl
from jax.experimental.pallas import tpu as pltpu

# channel config (synthetic but consistent with the skip-connection conv shapes)
C1, C2, C3, NCLS = 8, 16, 32, 4

_rup8 = lambda n: (n + 7) // 8 * 8


# ----------------------------------------------------------------------------
# Model definition: every 1x1 conv, split into its channel-concat components
# ----------------------------------------------------------------------------
def _model_defs(cin):
    """conv_name -> (cout, [(component_name, cin_component), ...])."""
    convs = {}
    for v in ("rd", "ra", "ad"):
        convs[f"enc1_{v}"] = (C1, [(f"enc1_{v}", cin)])
        convs[f"enc2_{v}"] = (C2, [(f"enc2_{v}", C1)])
        convs[f"enc3_{v}"] = (C3, [(f"enc3_{v}", C2)])
    # shared skip-connection convs (used by both decoder paths)
    convs["skip1"] = (C1, [("skip1_rd", C1), ("skip1_ra", C1), ("skip1_ad", C1)])
    convs["skip2"] = (C2, [("skip2_rd", C2), ("skip2_ra", C2), ("skip2_ad", C2)])
    for v in ("rd", "ra"):
        convs[f"dec1_{v}"] = (C2, [(f"dec1_{v}_lat_rd", C3), (f"dec1_{v}_lat_ra", C3),
                                   (f"dec1_{v}_lat_ad", C3), (f"dec1_{v}_skip", C2)])
        convs[f"dec2_{v}"] = (C1, [(f"dec2_{v}_d", C2), (f"dec2_{v}_skip", C1)])
        convs[f"dec3_{v}"] = (NCLS, [(f"dec3_{v}", C1)])
    return convs


def _layout(cin):
    """Sublane-aligned packing of every weight component and every bias."""
    convs = _model_defs(cin)
    w_offs, wr = {}, 0          # component -> (row_off, cout, cin_comp)
    b_offs, br = {}, 0          # conv      -> (row_off, cout)
    wmax = 8
    for name, (cout, comps) in convs.items():
        b_offs[name] = (br, cout)
        br += _rup8(cout)
        for cname, ci in comps:
            w_offs[cname] = (wr, cout, ci)
            wr += _rup8(cout)
            wmax = max(wmax, ci)
    return convs, w_offs, wr, b_offs, br, wmax


def init_params(seed=1, in_channels=1):
    """Pack all 1x1-conv weights into one bf16 slab + one small f32 bias slab."""
    convs, w_offs, WR, b_offs, BR, WMAX = _layout(in_channels)
    rng = np.random.default_rng(seed)
    wslab = np.zeros((WR, WMAX), np.float32)
    bslab = np.zeros((BR, 1), np.float32)
    for name, (cout, comps) in convs.items():
        cin_total = sum(ci for _, ci in comps)
        w_full = rng.standard_normal((cout, cin_total)).astype(np.float32) / np.sqrt(cin_total)
        bslab[b_offs[name][0]:b_offs[name][0] + cout, 0] = \
            0.01 * rng.standard_normal(cout).astype(np.float32)
        col = 0
        for cname, ci in comps:
            r = w_offs[cname][0]
            wslab[r:r + cout, :ci] = w_full[:, col:col + ci]
            col += ci
    return jnp.asarray(wslab, jnp.bfloat16), jnp.asarray(bslab, jnp.float32)


# ----------------------------------------------------------------------------
# Host-side constant resampling matrices (spatial index is h-major row-major)
# ----------------------------------------------------------------------------
def _pool_np(h, w, ph, pw):
    ho, wo = h // ph, w // pw
    ih, iw = np.meshgrid(np.arange(h), np.arange(w), indexing="ij")
    src = (ih * w + iw).reshape(-1)
    dst = ((ih // ph) * wo + (iw // pw)).reshape(-1)
    m = np.zeros((h * w, ho * wo), np.float32)
    m[src, dst] = 1.0 / (ph * pw)
    return m


def _up_np(h, w, uh, uw):
    ho, wo = h * uh, w * uw
    oh, ow = np.meshgrid(np.arange(ho), np.arange(wo), indexing="ij")
    dst = (oh * wo + ow).reshape(-1)
    src = ((oh // uh) * w + (ow // uw)).reshape(-1)
    m = np.zeros((h * w, ho * wo), np.float32)
    m[src, dst] = 1.0
    return m


def _resample_mats(H, W_rd, W_ra):
    Hh, Whrd, Whra = H // 2, W_rd // 2, W_ra // 2
    mats = {
        "p1_rd": _pool_np(H, W_rd, 2, 2),
        "p1_ra": _pool_np(H, W_ra, 2, 2),
        "p2_rd": _pool_np(Hh, Whrd, Hh // 4, Whrd // 4),
        "p2_ra": _pool_np(Hh, Whra, Hh // 4, Whra // 4),
        "p3":    _pool_np(4, 4, 2, 2),
        "pskip": _pool_np(Hh, Whra, 1, 2),
        "uskip": _up_np(Hh, Whrd, 1, 2),
        "u1":    _up_np(2, 2, 2, 2),
        "u2_rd": _up_np(4, 4, Hh // 4, Whrd // 4),
        "u2_ra": _up_np(4, 4, Hh // 4, Whra // 4),
        "u3_rd": _up_np(Hh, Whrd, 2, 2),
        "u3_ra": _up_np(Hh, Whra, 2, 2),
    }
    return {k: jnp.asarray(v, jnp.bfloat16) for k, v in mats.items()}


_MAT_ORDER = ["p1_rd", "p1_ra", "p2_rd", "p2_ra", "p3", "pskip", "uskip",
              "u1", "u2_rd", "u2_ra", "u3_rd", "u3_ra"]


# ----------------------------------------------------------------------------
# The fused kernel (one grid step == one batch element)
# ----------------------------------------------------------------------------
def _make_kernel(cin, w_offs, b_offs):
    bf16 = jnp.bfloat16

    def kernel(x_rd_ref, x_ra_ref, x_ad_ref, w_ref, b_ref,
               p1_rd, p1_ra, p2_rd, p2_ra, p3, pskip, uskip,
               u1, u2_rd, u2_ra, u3_rd, u3_ra,
               out_rd_ref, out_ra_ref):

        def wpart(comp, x):
            # partial 1x1 conv: W(cout,cin_comp) @ X(cin_comp,S), no bias
            r, co, ci = w_offs[comp]
            return jnp.dot(w_ref[r:r + co, 0:ci], x.astype(bf16),
                           preferred_element_type=jnp.float32)

        def bias_act(conv_name, y, relu):
            r, co = b_offs[conv_name]
            y = y + b_ref[r:r + co, 0:1]
            return jnp.maximum(y, 0.0) if relu else y

        def conv(name, x, relu):
            return bias_act(name, wpart(name, x), relu)

        def conv1(name, x):
            # cin == 1 first conv is an outer product: pure VPU broadcast FMA
            r, co, _ = w_offs[name]
            rb, _ = b_offs[name]
            y = w_ref[r:r + co, 0:1].astype(jnp.float32) * x + b_ref[rb:rb + co, 0:1]
            return jnp.maximum(y, 0.0)

        def resample(x, m_ref):
            # pool / nearest-upsample as a right matmul on the spatial axis
            return jnp.dot(x.astype(bf16), m_ref[...],
                           preferred_element_type=jnp.float32)

        def encoder(x, v, p1, p2):
            f1 = conv1(f"enc1_{v}", x) if cin == 1 else conv(f"enc1_{v}", x, True)
            l1 = resample(f1, p1)                 # (C1, S/4)
            f2 = conv(f"enc2_{v}", l1, True)      # (C2, S/4)
            l2 = resample(f2, p2)                 # (C2, 16)
            f3 = conv(f"enc3_{v}", l2, True)      # (C3, 16)
            bb = resample(f3, p3)                 # (C3, 4)
            return bb, l2, l1

        bb_rd, l2_rd, l1_rd = encoder(x_rd_ref[0], "rd", p1_rd, p2_rd)
        bb_ra, l2_ra, l1_ra = encoder(x_ra_ref[0], "ra", p1_ra, p2_ra)
        bb_ad, l2_ad, l1_ad = encoder(x_ad_ref[0], "ad", p1_rd, p2_rd)

        # skip2: channel-concat + shared conv  ->  sum of partial matmuls
        skip2 = bias_act("skip2",
                         wpart("skip2_rd", l2_rd) + wpart("skip2_ra", l2_ra)
                         + wpart("skip2_ad", l2_ad), relu=False)          # (C2, 16)

        # skip1 for the RD decoder: AvgPool2d((1,2)) on the RA view
        l1_ra_dn = resample(l1_ra, pskip)
        skip1_rd = bias_act("skip1",
                            wpart("skip1_rd", l1_rd) + wpart("skip1_ra", l1_ra_dn)
                            + wpart("skip1_ad", l1_ad), relu=False)       # (C1, S2_rd)

        # skip1 for the RA decoder: Upsample((1,2)) on the RD/AD views
        l1_rd_up = resample(l1_rd, uskip)
        l1_ad_up = resample(l1_ad, uskip)
        skip1_ra = bias_act("skip1",
                            wpart("skip1_rd", l1_rd_up) + wpart("skip1_ra", l1_ra)
                            + wpart("skip1_ad", l1_ad_up), relu=False)    # (C1, S2_ra)

        def decoder(v, skip1_v, u2, u3):
            # dec1: conv the latent at low res (4 cols), upsample, add skip part
            lat = (wpart(f"dec1_{v}_lat_rd", bb_rd) + wpart(f"dec1_{v}_lat_ra", bb_ra)
                   + wpart(f"dec1_{v}_lat_ad", bb_ad))                    # (C2, 4)
            d1 = bias_act(f"dec1_{v}",
                          resample(lat, u1) + wpart(f"dec1_{v}_skip", skip2),
                          relu=True)                                      # (C2, 16)
            # dec2: conv at 16 cols, upsample, add skip1 part
            d2 = bias_act(f"dec2_{v}",
                          resample(wpart(f"dec2_{v}_d", d1), u2)
                          + wpart(f"dec2_{v}_skip", skip1_v), relu=True)  # (C1, S2_v)
            # dec3: 1x1 conv commutes with the final nearest 2x2 upsample
            d3 = bias_act(f"dec3_{v}", wpart(f"dec3_{v}", d2), relu=False)  # (NCLS, S2_v)
            return resample(d3, u3)                                       # (NCLS, S_v)

        out_rd_ref[0] = decoder("rd", skip1_rd, u2_rd, u3_rd)   # lane-dense store
        out_ra_ref[0] = decoder("ra", skip1_ra, u2_ra, u3_ra)

    return kernel


# ----------------------------------------------------------------------------
# Wrapper: one pallas_call for the whole MVRecord.forward
# ----------------------------------------------------------------------------
@jax.jit
def mv_record_forward(wslab, bslab, x_rd, x_ra, x_ad):
    B, Cin, T, H, W_rd = x_rd.shape
    W_ra = x_ra.shape[4]
    assert x_ra.shape == (B, Cin, T, H, W_ra) and x_ad.shape == x_rd.shape
    assert W_ra == 2 * W_rd and H % 8 == 0 and W_rd % 8 == 0
    Hh, Whrd, Whra = H // 2, W_rd // 2, W_ra // 2
    assert Hh % 4 == 0 and Whrd % 4 == 0 and Whra % 4 == 0
    assert Hh % (Hh // 4) == 0 and Whrd % (Whrd // 4) == 0 and Whra % (Whra // 4) == 0

    convs, w_offs, WR, b_offs, BR, WMAX = _layout(Cin)
    assert wslab.shape == (WR, WMAX) and bslab.shape == (BR, 1)

    # last-frame slice, already channels-first -> flatten spatial (no transpose)
    xr = x_rd[:, :, T - 1].reshape(B, Cin, H * W_rd)
    xa = x_ra[:, :, T - 1].reshape(B, Cin, H * W_ra)
    xd = x_ad[:, :, T - 1].reshape(B, Cin, H * W_rd)

    mats = _resample_mats(H, W_rd, W_ra)
    mat_args = [mats[k] for k in _MAT_ORDER]

    def resident(a):            # whole-array block, fetched once, stays in VMEM
        return pl.BlockSpec(a.shape, lambda b, n=a.ndim: (0,) * n)

    kernel = _make_kernel(Cin, w_offs, b_offs)

    out_rd, out_ra = pl.pallas_call(
        kernel,
        out_shape=(jax.ShapeDtypeStruct((B, NCLS, H * W_rd), jnp.float32),
                   jax.ShapeDtypeStruct((B, NCLS, H * W_ra), jnp.float32)),
        grid=(B,),
        in_specs=[
            pl.BlockSpec((1, Cin, H * W_rd), lambda b: (b, 0, 0)),
            pl.BlockSpec((1, Cin, H * W_ra), lambda b: (b, 0, 0)),
            pl.BlockSpec((1, Cin, H * W_rd), lambda b: (b, 0, 0)),
            resident(wslab), resident(bslab),
        ] + [resident(m) for m in mat_args],
        out_specs=(
            pl.BlockSpec((1, NCLS, H * W_rd), lambda b: (b, 0, 0)),
            pl.BlockSpec((1, NCLS, H * W_ra), lambda b: (b, 0, 0)),
        ),
        compiler_params=pltpu.CompilerParams(dimension_semantics=("parallel",)),
    )(xr, xa, xd, wslab, bslab, *mat_args)

    return (out_rd.reshape(B, NCLS, H, W_rd),
            out_ra.reshape(B, NCLS, H, W_ra))


# ----------------------------------------------------------------------------
# Pure-jnp (XLA, f32 HIGHEST) reference with identical surrogate semantics
# ----------------------------------------------------------------------------
@jax.jit
def _ref_forward(wslab, bslab, x_rd, x_ra, x_ad):
    cin = x_rd.shape[1]
    convs, w_offs, _, b_offs, _, _ = _layout(cin)
    hi = jax.lax.Precision.HIGHEST
    ws = wslab.astype(jnp.float32)

    def conv(x, name, relu=False):       # x: (B, C, H, W)
        cout, comps = convs[name]
        w = jnp.concatenate(
            [ws[w_offs[c][0]:w_offs[c][0] + cout, :ci] for c, ci in comps], axis=1)
        b = bslab[b_offs[name][0]:b_offs[name][0] + cout, 0]
        y = jnp.einsum("oc,bchw->bohw", w, x, precision=hi) + b[None, :, None, None]
        return jnp.maximum(y, 0.0) if relu else y

    def pool(x, ph, pw):
        b, c, h, w = x.shape
        return x.reshape(b, c, h // ph, ph, w // pw, pw).mean(axis=(3, 5))

    def up(x, uh, uw):
        return jnp.repeat(jnp.repeat(x, uh, axis=2), uw, axis=3)

    def encoder(x, v):
        xt = x[:, :, -1]
        f1 = conv(xt, f"enc1_{v}", True)
        l1 = pool(f1, 2, 2)
        f2 = conv(l1, f"enc2_{v}", True)
        l2 = pool(f2, f2.shape[2] // 4, f2.shape[3] // 4)
        f3 = conv(l2, f"enc3_{v}", True)
        return pool(f3, 2, 2), l2, l1

    def decoder(lat, s2, s1, v):
        d = up(lat, 2, 2)
        d = conv(jnp.concatenate([d, s2], 1), f"dec1_{v}", True)
        d = up(d, s1.shape[2] // 4, s1.shape[3] // 4)
        d = conv(jnp.concatenate([d, s1], 1), f"dec2_{v}", True)
        d = up(d, 2, 2)
        return conv(d, f"dec3_{v}")

    bb_rd, l2_rd, l1_rd = encoder(x_rd, "rd")
    bb_ra, l2_ra, l1_ra = encoder(x_ra, "ra")
    bb_ad, l2_ad, l1_ad = encoder(x_ad, "ad")
    latent = jnp.concatenate([bb_rd, bb_ra, bb_ad], 1)
    skip2 = conv(jnp.concatenate([l2_rd, l2_ra, l2_ad], 1), "skip2")
    s1_rd = conv(jnp.concatenate([l1_rd, pool(l1_ra, 1, 2), l1_ad], 1), "skip1")
    s1_ra = conv(jnp.concatenate([up(l1_rd, 1, 2), l1_ra, up(l1_ad, 1, 2)], 1), "skip1")
    return decoder(latent, skip2, s1_rd, "rd"), decoder(latent, skip2, s1_ra, "ra")


if __name__ == "__main__":
    B, Cin, T, H, W_rd, W_ra = 2, 1, 4, 16, 16, 32
    key = jax.random.PRNGKey(0)
    k1, k2, k3 = jax.random.split(key, 3)
    x_rd = jax.random.normal(k1, (B, Cin, T, H, W_rd), jnp.float32)
    x_ra = jax.random.normal(k2, (B, Cin, T, H, W_ra), jnp.float32)
    x_ad = jax.random.normal(k3, (B, Cin, T, H, W_rd), jnp.float32)

    wslab, bslab = init_params(seed=1, in_channels=Cin)

    pred_rd, pred_ra = mv_record_forward(wslab, bslab, x_rd, x_ra, x_ad)
    jax.block_until_ready((pred_rd, pred_ra))

    assert pred_rd.shape == (B, NCLS, H, W_rd), pred_rd.shape
    assert pred_ra.shape == (B, NCLS, H, W_ra), pred_ra.shape
    assert bool(jnp.isfinite(pred_rd).all()) and bool(jnp.isfinite(pred_ra).all())

    # correctness check vs f32 XLA reference (kernel uses bf16 on the MXU)
    ref_rd, ref_ra = _ref_forward(wslab, bslab, x_rd, x_ra, x_ad)
    np.testing.assert_allclose(np.asarray(pred_rd), np.asarray(ref_rd), rtol=0.1, atol=0.1)
    np.testing.assert_allclose(np.asarray(pred_ra), np.asarray(ref_ra), rtol=0.1, atol=0.1)

    print("KERNEL_OK")
</pallas_src>

<mosaic_0001>
module attributes {stable_mosaic.version = 11 : i64} {
  func.func @kernel(%arg0: i32, %arg1: memref<1x1x256xf32, #tpu.memory_space<vmem>>, %arg2: memref<1x1x512xf32, #tpu.memory_space<vmem>>, %arg3: memref<1x1x256xf32, #tpu.memory_space<vmem>>, %arg4: memref<416x32xbf16, #tpu.memory_space<vmem>>, %arg5: memref<256x1xf32, #tpu.memory_space<vmem>>, %arg6: memref<256x64xbf16, #tpu.memory_space<vmem>>, %arg7: memref<512x128xbf16, #tpu.memory_space<vmem>>, %arg8: memref<64x16xbf16, #tpu.memory_space<vmem>>, %arg9: memref<128x16xbf16, #tpu.memory_space<vmem>>, %arg10: memref<16x4xbf16, #tpu.memory_space<vmem>>, %arg11: memref<128x64xbf16, #tpu.memory_space<vmem>>, %arg12: memref<64x128xbf16, #tpu.memory_space<vmem>>, %arg13: memref<4x16xbf16, #tpu.memory_space<vmem>>, %arg14: memref<16x64xbf16, #tpu.memory_space<vmem>>, %arg15: memref<16x128xbf16, #tpu.memory_space<vmem>>, %arg16: memref<64x256xbf16, #tpu.memory_space<vmem>>, %arg17: memref<128x512xbf16, #tpu.memory_space<vmem>>, %arg18: memref<1x4x256xf32, #tpu.memory_space<vmem>>, %arg19: memref<1x4x512xf32, #tpu.memory_space<vmem>>) attributes {dimension_semantics = [#tpu.dimension_semantics<parallel>], iteration_bounds = array<i64: 2>, scalar_prefetch = 0 : i64, scratch_operands = 0 : i64, tpu.core_type = #tpu.core_type<tc>, window_params = [{transform_indices = @transform_0, window_bounds = array<i64: 1, 1, 256>}, {transform_indices = @transform_1, window_bounds = array<i64: 1, 1, 512>}, {transform_indices = @transform_2, window_bounds = array<i64: 1, 1, 256>}, {pipeline_mode = #tpu.pipeline_mode<synchronous>, transform_indices = @transform_3, window_bounds = array<i64: 416, 32>}, {pipeline_mode = #tpu.pipeline_mode<synchronous>, transform_indices = @transform_4, window_bounds = array<i64: 256, 1>}, {pipeline_mode = #tpu.pipeline_mode<synchronous>, transform_indices = @transform_5, window_bounds = array<i64: 256, 64>}, {pipeline_mode = #tpu.pipeline_mode<synchronous>, transform_indices = @transform_6, window_bounds = array<i64: 512, 128>}, {pipeline_mode = #tpu.pipeline_mode<synchronous>, transform_indices = @transform_7, window_bounds = array<i64: 64, 16>}, {pipeline_mode = #tpu.pipeline_mode<synchronous>, transform_indices = @transform_8, window_bounds = array<i64: 128, 16>}, {pipeline_mode = #tpu.pipeline_mode<synchronous>, transform_indices = @transform_9, window_bounds = array<i64: 16, 4>}, {pipeline_mode = #tpu.pipeline_mode<synchronous>, transform_indices = @transform_10, window_bounds = array<i64: 128, 64>}, {pipeline_mode = #tpu.pipeline_mode<synchronous>, transform_indices = @transform_11, window_bounds = array<i64: 64, 128>}, {pipeline_mode = #tpu.pipeline_mode<synchronous>, transform_indices = @transform_12, window_bounds = array<i64: 4, 16>}, {pipeline_mode = #tpu.pipeline_mode<synchronous>, transform_indices = @transform_13, window_bounds = array<i64: 16, 64>}, {pipeline_mode = #tpu.pipeline_mode<synchronous>, transform_indices = @transform_14, window_bounds = array<i64: 16, 128>}, {pipeline_mode = #tpu.pipeline_mode<synchronous>, transform_indices = @transform_15, window_bounds = array<i64: 64, 256>}, {pipeline_mode = #tpu.pipeline_mode<synchronous>, transform_indices = @transform_16, window_bounds = array<i64: 128, 512>}, {transform_indices = @transform_17, window_bounds = array<i64: 1, 4, 256>}, {transform_indices = @transform_18, window_bounds = array<i64: 1, 4, 512>}]} {
    %c0 = arith.constant 0 : index
    %c0_0 = arith.constant 0 : index
    %c0_1 = arith.constant 0 : index
    %0 = vector.load %arg1[%c0, %c0_0, %c0_1] : memref<1x1x256xf32, #tpu.memory_space<vmem>>, vector<1x1x256xf32>
    %1 = vector.shape_cast %0 : vector<1x1x256xf32> to vector<1x256xf32>
    %c0_2 = arith.constant 0 : index
    %c0_3 = arith.constant 0 : index
    %2 = vector.load %arg4[%c0_2, %c0_3] : memref<416x32xbf16, #tpu.memory_space<vmem>>, vector<8x1xbf16>
    %3 = arith.extf %2 : vector<8x1xbf16> to vector<8x1xf32>
    %4 = vector.broadcast %3 : vector<8x1xf32> to vector<8x256xf32>
    %5 = vector.broadcast %1 : vector<1x256xf32> to vector<8x256xf32>
    %6 = arith.mulf %4, %5 : vector<8x256xf32>
    %c0_4 = arith.constant 0 : index
    %c0_5 = arith.constant 0 : index
    %7 = vector.load %arg5[%c0_4, %c0_5] : memref<256x1xf32, #tpu.memory_space<vmem>>, vector<8x1xf32>
    %8 = vector.broadcast %7 : vector<8x1xf32> to vector<8x256xf32>
    %9 = arith.addf %6, %8 : vector<8x256xf32>
    %cst = arith.constant 0.000000e+00 : f32
    %10 = vector.broadcast %cst : f32 to vector<8x256xf32>
    %11 = arith.maximumf %9, %10 : vector<8x256xf32>
    %12 = arith.truncf %11 : vector<8x256xf32> to vector<8x256xbf16>
    %c0_6 = arith.constant 0 : index
    %c0_7 = arith.constant 0 : index
    %13 = vector.load %arg6[%c0_6, %c0_7] : memref<256x64xbf16, #tpu.memory_space<vmem>>, vector<256x64xbf16>
    %cst_8 = arith.constant dense<0.000000e+00> : vector<8x64xf32>
    %14 = tpu.matmul %12, %13, %cst_8 {dimension_numbers = #tpu.dot_dimension_numbers<[1], [0], [0], [1], [0, 0, 1, 1], [], []>} : vector<8x256xbf16>, vector<256x64xbf16>, vector<8x64xf32> -> vector<8x64xf32>
    %c8 = arith.constant 8 : index
    %c0_9 = arith.constant 0 : index
    %15 = vector.load %arg4[%c8, %c0_9] : memref<416x32xbf16, #tpu.memory_space<vmem>>, vector<16x8xbf16>
    %16 = arith.truncf %14 : vector<8x64xf32> to vector<8x64xbf16>
    %cst_10 = arith.constant dense<0.000000e+00> : vector<16x64xf32>
    %17 = tpu.matmul %15, %16, %cst_10 {dimension_numbers = #tpu.dot_dimension_numbers<[1], [0], [0], [1], [0, 0, 1, 1], [], []>} : vector<16x8xbf16>, vector<8x64xbf16>, vector<16x64xf32> -> vector<16x64xf32>
    %c8_11 = arith.constant 8 : index
    %c0_12 = arith.constant 0 : index
    %18 = vector.load %arg5[%c8_11, %c0_12] : memref<256x1xf32, #tpu.memory_space<vmem>>, vector<16x1xf32>
    %19 = vector.broadcast %18 : vector<16x1xf32> to vector<16x64xf32>
    %20 = arith.addf %17, %19 : vector<16x64xf32>
    %cst_13 = arith.constant 0.000000e+00 : f32
    %21 = vector.broadcast %cst_13 : f32 to vector<16x64xf32>
    %22 = arith.maximumf %20, %21 : vector<16x64xf32>
    %23 = arith.truncf %22 : vector<16x64xf32> to vector<16x64xbf16>
    %c0_14 = arith.constant 0 : index
    %c0_15 = arith.constant 0 : index
    %24 = vector.load %arg8[%c0_14, %c0_15] : memref<64x16xbf16, #tpu.memory_space<vmem>>, vector<64x16xbf16>
    %cst_16 = arith.constant dense<0.000000e+00> : vector<16x16xf32>
    %25 = tpu.matmul %23, %24, %cst_16 {dimension_numbers = #tpu.dot_dimension_numbers<[1], [0], [0], [1], [0, 0, 1, 1], [], []>} : vector<16x64xbf16>, vector<64x16xbf16>, vector<16x16xf32> -> vector<16x16xf32>
    %c24 = arith.constant 24 : index
    %c0_17 = arith.constant 0 : index
    %26 = vector.load %arg4[%c24, %c0_17] : memref<416x32xbf16, #tpu.memory_space<vmem>>, vector<32x16xbf16>
    %27 = arith.truncf %25 : vector<16x16xf32> to vector<16x16xbf16>
    %cst_18 = arith.constant dense<0.000000e+00> : vector<32x16xf32>
    %28 = tpu.matmul %26, %27, %cst_18 {dimension_numbers = #tpu.dot_dimension_numbers<[1], [0], [0], [1], [0, 0, 1, 1], [], []>} : vector<32x16xbf16>, vector<16x16xbf16>, vector<32x16xf32> -> vector<32x16xf32>
    %c24_19 = arith.constant 24 : index
    %c0_20 = arith.constant 0 : index
    %29 = vector.load %arg5[%c24_19, %c0_20] : memref<256x1xf32, #tpu.memory_space<vmem>>, vector<32x1xf32>
    %30 = vector.broadcast %29 : vector<32x1xf32> to vector<32x16xf32>
    %31 = arith.addf %28, %30 : vector<32x16xf32>
    %cst_21 = arith.constant 0.000000e+00 : f32
    %32 = vector.broadcast %cst_21 : f32 to vector<32x16xf32>
    %33 = arith.maximumf %31, %32 : vector<32x16xf32>
    %34 = arith.truncf %33 : vector<32x16xf32> to vector<32x16xbf16>
    %c0_22 = arith.constant 0 : index
    %c0_23 = arith.constant 0 : index
    %35 = vector.load %arg10[%c0_22, %c0_23] : memref<16x4xbf16, #tpu.memory_space<vmem>>, vector<16x4xbf16>
    %cst_24 = arith.constant dense<0.000000e+00> : vector<32x4xf32>
    %36 = tpu.matmul %34, %35, %cst_24 {dimension_numbers = #tpu.dot_dimension_numbers<[1], [0], [0], [1], [0, 0, 1, 1], [], []>} : vector<32x16xbf16>, vector<16x4xbf16>, vector<32x4xf32> -> vector<32x4xf32>
    %c0_25 = arith.constant 0 : index
    %c0_26 = arith.constant 0 : index
    %c0_27 = arith.constant 0 : index
    %37 = vector.load %arg2[%c0_25, %c0_26, %c0_27] : memref<1x1x512xf32, #tpu.memory_space<vmem>>, vector<1x1x512xf32>
    %38 = vector.shape_cast %37 : vector<1x1x512xf32> to vector<1x512xf32>
    %c56 = arith.constant 56 : index
    %c0_28 = arith.constant 0 : index
    %39 = vector.load %arg4[%c56, %c0_28] : memref<416x32xbf16, #tpu.memory_space<vmem>>, vector<8x1xbf16>
    %40 = arith.extf %39 : vector<8x1xbf16> to vector<8x1xf32>
    %41 = vector.broadcast %40 : vector<8x1xf32> to vector<8x512xf32>
    %42 = vector.broadcast %38 : vector<1x512xf32> to vector<8x512xf32>
    %43 = arith.mulf %41, %42 : vector<8x512xf32>
    %c56_29 = arith.constant 56 : index
    %c0_30 = arith.constant 0 : index
    %44 = vector.load %arg5[%c56_29, %c0_30] : memref<256x1xf32, #tpu.memory_space<vmem>>, vector<8x1xf32>
    %45 = vector.broadcast %44 : vector<8x1xf32> to vector<8x512xf32>
    %46 = arith.addf %43, %45 : vector<8x512xf32>
    %cst_31 = arith.constant 0.000000e+00 : f32
    %47 = vector.broadcast %cst_31 : f32 to vector<8x512xf32>
    %48 = arith.maximumf %46, %47 : vector<8x512xf32>
    %49 = arith.truncf %48 : vector<8x512xf32> to vector<8x512xbf16>
    %c0_32 = arith.constant 0 : index
    %c0_33 = arith.constant 0 : index
    %50 = vector.load %arg7[%c0_32, %c0_33] : memref<512x128xbf16, #tpu.memory_space<vmem>>, vector<512x128xbf16>
    %cst_34 = arith.constant dense<0.000000e+00> : vector<8x128xf32>
    %51 = tpu.matmul %49, %50, %cst_34 {dimension_numbers = #tpu.dot_dimension_numbers<[1], [0], [0], [1], [0, 0, 1, 1], [], []>} : vector<8x512xbf16>, vector<512x128xbf16>, vector<8x128xf32> -> vector<8x128xf32>
    %c64 = arith.constant 64 : index
    %c0_35 = arith.constant 0 : index
    %52 = vector.load %arg4[%c64, %c0_35] : memref<416x32xbf16, #tpu.memory_space<vmem>>, vector<16x8xbf16>
    %53 = arith.truncf %51 : vector<8x128xf32> to vector<8x128xbf16>
    %cst_36 = arith.constant dense<0.000000e+00> : vector<16x128xf32>
    %54 = tpu.matmul %52, %53, %cst_36 {dimension_numbers = #tpu.dot_dimension_numbers<[1], [0], [0], [1], [0, 0, 1, 1], [], []>} : vector<16x8xbf16>, vector<8x128xbf16>, vector<16x128xf32> -> vector<16x128xf32>
    %c64_37 = arith.constant 64 : index
    %c0_38 = arith.constant 0 : index
    %55 = vector.load %arg5[%c64_37, %c0_38] : memref<256x1xf32, #tpu.memory_space<vmem>>, vector<16x1xf32>
    %56 = vector.broadcast %55 : vector<16x1xf32> to vector<16x128xf32>
    %57 = arith.addf %54, %56 : vector<16x128xf32>
    %cst_39 = arith.constant 0.000000e+00 : f32
    %58 = vector.broadcast %cst_39 : f32 to vector<16x128xf32>
    %59 = arith.maximumf %57, %58 : vector<16x128xf32>
    %60 = arith.truncf %59 : vector<16x128xf32> to vector<16x128xbf16>
    %c0_40 = arith.constant 0 : index
    %c0_41 = arith.constant 0 : index
    %61 = vector.load %arg9[%c0_40, %c0_41] : memref<128x16xbf16, #tpu.memory_space<vmem>>, vector<128x16xbf16>
    %cst_42 = arith.constant dense<0.000000e+00> : vector<16x16xf32>
    %62 = tpu.matmul %60, %61, %cst_42 {dimension_numbers = #tpu.dot_dimension_numbers<[1], [0], [0], [1], [0, 0, 1, 1], [], []>} : vector<16x128xbf16>, vector<128x16xbf16>, vector<16x16xf32> -> vector<16x16xf32>
    %c80 = arith.constant 80 : index
    %c0_43 = arith.constant 0 : index
    %63 = vector.load %arg4[%c80, %c0_43] : memref<416x32xbf16, #tpu.memory_space<vmem>>, vector<32x16xbf16>
    %64 = arith.truncf %62 : vector<16x16xf32> to vector<16x16xbf16>
    %cst_44 = arith.constant dense<0.000000e+00> : vector<32x16xf32>
    %65 = tpu.matmul %63, %64, %cst_44 {dimension_numbers = #tpu.dot_dimension_numbers<[1], [0], [0], [1], [0, 0, 1, 1], [], []>} : vector<32x16xbf16>, vector<16x16xbf16>, vector<32x16xf32> -> vector<32x16xf32>
    %c80_45 = arith.constant 80 : index
    %c0_46 = arith.constant 0 : index
    %66 = vector.load %arg5[%c80_45, %c0_46] : memref<256x1xf32, #tpu.memory_space<vmem>>, vector<32x1xf32>
    %67 = vector.broadcast %66 : vector<32x1xf32> to vector<32x16xf32>
    %68 = arith.addf %65, %67 : vector<32x16xf32>
    %cst_47 = arith.constant 0.000000e+00 : f32
    %69 = vector.broadcast %cst_47 : f32 to vector<32x16xf32>
    %70 = arith.maximumf %68, %69 : vector<32x16xf32>
    %71 = arith.truncf %70 : vector<32x16xf32> to vector<32x16xbf16>
    %c0_48 = arith.constant 0 : index
    %c0_49 = arith.constant 0 : index
    %72 = vector.load %arg10[%c0_48, %c0_49] : memref<16x4xbf16, #tpu.memory_space<vmem>>, vector<16x4xbf16>
    %cst_50 = arith.constant dense<0.000000e+00> : vector<32x4xf32>
    %73 = tpu.matmul %71, %72, %cst_50 {dimension_numbers = #tpu.dot_dimension_numbers<[1], [0], [0], [1], [0, 0, 1, 1], [], []>} : vector<32x16xbf16>, vector<16x4xbf16>, vector<32x4xf32> -> vector<32x4xf32>
    %c0_51 = arith.constant 0 : index
    %c0_52 = arith.constant 0 : index
    %c0_53 = arith.constant 0 : index
    %74 = vector.load %arg3[%c0_51, %c0_52, %c0_53] : memref<1x1x256xf32, #tpu.memory_space<vmem>>, vector<1x1x256xf32>
    %75 = vector.shape_cast %74 : vector<1x1x256xf32> to vector<1x256xf32>
    %c112 = arith.constant 112 : index
    %c0_54 = arith.constant 0 : index
    %76 = vector.load %arg4[%c112, %c0_54] : memref<416x32xbf16, #tpu.memory_space<vmem>>, vector<8x1xbf16>
    %77 = arith.extf %76 : vector<8x1xbf16> to vector<8x1xf32>
    %78 = vector.broadcast %77 : vector<8x1xf32> to vector<8x256xf32>
    %79 = vector.broadcast %75 : vector<1x256xf32> to vector<8x256xf32>
    %80 = arith.mulf %78, %79 : vector<8x256xf32>
    %c112_55 = arith.constant 112 : index
    %c0_56 = arith.constant 0 : index
    %81 = vector.load %arg5[%c112_55, %c0_56] : memref<256x1xf32, #tpu.memory_space<vmem>>, vector<8x1xf32>
    %82 = vector.broadcast %81 : vector<8x1xf32> to vector<8x256xf32>
    %83 = arith.addf %80, %82 : vector<8x256xf32>
    %cst_57 = arith.constant 0.000000e+00 : f32
    %84 = vector.broadcast %cst_57 : f32 to vector<8x256xf32>
    %85 = arith.maximumf %83, %84 : vector<8x256xf32>
    %86 = arith.truncf %85 : vector<8x256xf32> to vector<8x256xbf16>
    %c0_58 = arith.constant 0 : index
    %c0_59 = arith.constant 0 : index
    %87 = vector.load %arg6[%c0_58, %c0_59] : memref<256x64xbf16, #tpu.memory_space<vmem>>, vector<256x64xbf16>
    %cst_60 = arith.constant dense<0.000000e+00> : vector<8x64xf32>
    %88 = tpu.matmul %86, %87, %cst_60 {dimension_numbers = #tpu.dot_dimension_numbers<[1], [0], [0], [1], [0, 0, 1, 1], [], []>} : vector<8x256xbf16>, vector<256x64xbf16>, vector<8x64xf32> -> vector<8x64xf32>
    %c120 = arith.constant 120 : index
    %c0_61 = arith.constant 0 : index
    %89 = vector.load %arg4[%c120, %c0_61] : memref<416x32xbf16, #tpu.memory_space<vmem>>, vector<16x8xbf16>
    %90 = arith.truncf %88 : vector<8x64xf32> to vector<8x64xbf16>
    %cst_62 = arith.constant dense<0.000000e+00> : vector<16x64xf32>
    %91 = tpu.matmul %89, %90, %cst_62 {dimension_numbers = #tpu.dot_dimension_numbers<[1], [0], [0], [1], [0, 0, 1, 1], [], []>} : vector<16x8xbf16>, vector<8x64xbf16>, vector<16x64xf32> -> vector<16x64xf32>
    %c120_63 = arith.constant 120 : index
    %c0_64 = arith.constant 0 : index
    %92 = vector.load %arg5[%c120_63, %c0_64] : memref<256x1xf32, #tpu.memory_space<vmem>>, vector<16x1xf32>
    %93 = vector.broadcast %92 : vector<16x1xf32> to vector<16x64xf32>
    %94 = arith.addf %91, %93 : vector<16x64xf32>
    %cst_65 = arith.constant 0.000000e+00 : f32
    %95 = vector.broadcast %cst_65 : f32 to vector<16x64xf32>
    %96 = arith.maximumf %94, %95 : vector<16x64xf32>
    %97 = arith.truncf %96 : vector<16x64xf32> to vector<16x64xbf16>
    %c0_66 = arith.constant 0 : index
    %c0_67 = arith.constant 0 : index
    %98 = vector.load %arg8[%c0_66, %c0_67] : memref<64x16xbf16, #tpu.memory_space<vmem>>, vector<64x16xbf16>
    %cst_68 = arith.constant dense<0.000000e+00> : vector<16x16xf32>
    %99 = tpu.matmul %97, %98, %cst_68 {dimension_numbers = #tpu.dot_dimension_numbers<[1], [0], [0], [1], [0, 0, 1, 1], [], []>} : vector<16x64xbf16>, vector<64x16xbf16>, vector<16x16xf32> -> vector<16x16xf32>
    %c136 = arith.constant 136 : index
    %c0_69 = arith.constant 0 : index
    %100 = vector.load %arg4[%c136, %c0_69] : memref<416x32xbf16, #tpu.memory_space<vmem>>, vector<32x16xbf16>
    %101 = arith.truncf %99 : vector<16x16xf32> to vector<16x16xbf16>
    %cst_70 = arith.constant dense<0.000000e+00> : vector<32x16xf32>
    %102 = tpu.matmul %100, %101, %cst_70 {dimension_numbers = #tpu.dot_dimension_numbers<[1], [0], [0], [1], [0, 0, 1, 1], [], []>} : vector<32x16xbf16>, vector<16x16xbf16>, vector<32x16xf32> -> vector<32x16xf32>
    %c136_71 = arith.constant 136 : index
    %c0_72 = arith.constant 0 : index
    %103 = vector.load %arg5[%c136_71, %c0_72] : memref<256x1xf32, #tpu.memory_space<vmem>>, vector<32x1xf32>
    %104 = vector.broadcast %103 : vector<32x1xf32> to vector<32x16xf32>
    %105 = arith.addf %102, %104 : vector<32x16xf32>
    %cst_73 = arith.constant 0.000000e+00 : f32
    %106 = vector.broadcast %cst_73 : f32 to vector<32x16xf32>
    %107 = arith.maximumf %105, %106 : vector<32x16xf32>
    %108 = arith.truncf %107 : vector<32x16xf32> to vector<32x16xbf16>
    %c0_74 = arith.constant 0 : index
    %c0_75 = arith.constant 0 : index
    %109 = vector.load %arg10[%c0_74, %c0_75] : memref<16x4xbf16, #tpu.memory_space<vmem>>, vector<16x4xbf16>
    %cst_76 = arith.constant dense<0.000000e+00> : vector<32x4xf32>
    %110 = tpu.matmul %108, %109, %cst_76 {dimension_numbers = #tpu.dot_dimension_numbers<[1], [0], [0], [1], [0, 0, 1, 1], [], []>} : vector<32x16xbf16>, vector<16x4xbf16>, vector<32x4xf32> -> vector<32x4xf32>
    %c192 = arith.constant 192 : index
    %c0_77 = arith.constant 0 : index
    %111 = vector.load %arg4[%c192, %c0_77] : memref<416x32xbf16, #tpu.memory_space<vmem>>, vector<16x16xbf16>
    %112 = arith.truncf %25 : vector<16x16xf32> to vector<16x16xbf16>
    %cst_78 = arith.constant dense<0.000000e+00> : vector<16x16xf32>
    %113 = tpu.matmul %111, %112, %cst_78 {dimension_numbers = #tpu.dot_dimension_numbers<[1], [0], [0], [1], [0, 0, 1, 1], [], []>} : vector<16x16xbf16>, vector<16x16xbf16>, vector<16x16xf32> -> vector<16x16xf32>
    %c208 = arith.constant 208 : index
    %c0_79 = arith.constant 0 : index
    %114 = vector.load %arg4[%c208, %c0_79] : memref<416x32xbf16, #tpu.memory_space<vmem>>, vector<16x16xbf16>
    %115 = arith.truncf %62 : vector<16x16xf32> to vector<16x16xbf16>
    %cst_80 = arith.constant dense<0.000000e+00> : vector<16x16xf32>
    %116 = tpu.matmul %114, %115, %cst_80 {dimension_numbers = #tpu.dot_dimension_numbers<[1], [0], [0], [1], [0, 0, 1, 1], [], []>} : vector<16x16xbf16>, vector<16x16xbf16>, vector<16x16xf32> -> vector<16x16xf32>
    %117 = arith.addf %113, %116 : vector<16x16xf32>
    %c224 = arith.constant 224 : index
    %c0_81 = arith.constant 0 : index
    %118 = vector.load %arg4[%c224, %c0_81] : memref<416x32xbf16, #tpu.memory_space<vmem>>, vector<16x16xbf16>
    %119 = arith.truncf %99 : vector<16x16xf32> to vector<16x16xbf16>
    %cst_82 = arith.constant dense<0.000000e+00> : vector<16x16xf32>
    %120 = tpu.matmul %118, %119, %cst_82 {dimension_numbers = #tpu.dot_dimension_numbers<[1], [0], [0], [1], [0, 0, 1, 1], [], []>} : vector<16x16xbf16>, vector<16x16xbf16>, vector<16x16xf32> -> vector<16x16xf32>
    %121 = arith.addf %117, %120 : vector<16x16xf32>
    %c176 = arith.constant 176 : index
    %c0_83 = arith.constant 0 : index
    %122 = vector.load %arg5[%c176, %c0_83] : memref<256x1xf32, #tpu.memory_space<vmem>>, vector<16x1xf32>
    %123 = vector.broadcast %122 : vector<16x1xf32> to vector<16x16xf32>
    %124 = arith.addf %121, %123 : vector<16x16xf32>
    %125 = arith.truncf %51 : vector<8x128xf32> to vector<8x128xbf16>
    %c0_84 = arith.constant 0 : index
    %c0_85 = arith.constant 0 : index
    %126 = vector.load %arg11[%c0_84, %c0_85] : memref<128x64xbf16, #tpu.memory_space<vmem>>, vector<128x64xbf16>
    %cst_86 = arith.constant dense<0.000000e+00> : vector<8x64xf32>
    %127 = tpu.matmul %125, %126, %cst_86 {dimension_numbers = #tpu.dot_dimension_numbers<[1], [0], [0], [1], [0, 0, 1, 1], [], []>} : vector<8x128xbf16>, vector<128x64xbf16>, vector<8x64xf32> -> vector<8x64xf32>
    %c168 = arith.constant 168 : index
    %c0_87 = arith.constant 0 : index
    %128 = vector.load %arg4[%c168, %c0_87] : memref<416x32xbf16, #tpu.memory_space<vmem>>, vector<8x8xbf16>
    %129 = arith.truncf %14 : vector<8x64xf32> to vector<8x64xbf16>
    %cst_88 = arith.constant dense<0.000000e+00> : vector<8x64xf32>
    %130 = tpu.matmul %128, %129, %cst_88 {dimension_numbers = #tpu.dot_dimension_numbers<[1], [0], [0], [1], [0, 0, 1, 1], [], []>} : vector<8x8xbf16>, vector<8x64xbf16>, vector<8x64xf32> -> vector<8x64xf32>
    %c176_89 = arith.constant 176 : index
    %c0_90 = arith.constant 0 : index
    %131 = vector.load %arg4[%c176_89, %c0_90] : memref<416x32xbf16, #tpu.memory_space<vmem>>, vector<8x8xbf16>
    %132 = arith.truncf %127 : vector<8x64xf32> to vector<8x64xbf16>
    %cst_91 = arith.constant dense<0.000000e+00> : vector<8x64xf32>
    %133 = tpu.matmul %131, %132, %cst_91 {dimension_numbers = #tpu.dot_dimension_numbers<[1], [0], [0], [1], [0, 0, 1, 1], [], []>} : vector<8x8xbf16>, vector<8x64xbf16>, vector<8x64xf32> -> vector<8x64xf32>
    %134 = arith.addf %130, %133 : vector<8x64xf32>
    %c184 = arith.constant 184 : index
    %c0_92 = arith.constant 0 : index
    %135 = vector.load %arg4[%c184, %c0_92] : memref<416x32xbf16, #tpu.memory_space<vmem>>, vector<8x8xbf16>
    %136 = arith.truncf %88 : vector<8x64xf32> to vector<8x64xbf16>
    %cst_93 = arith.constant dense<0.000000e+00> : vector<8x64xf32>
    %137 = tpu.matmul %135, %136, %cst_93 {dimension_numbers = #tpu.dot_dimension_numbers<[1], [0], [0], [1], [0, 0, 1, 1], [], []>} : vector<8x8xbf16>, vector<8x64xbf16>, vector<8x64xf32> -> vector<8x64xf32>
    %138 = arith.addf %134, %137 : vector<8x64xf32>
    %c168_94 = arith.constant 168 : index
    %c0_95 = arith.constant 0 : index
    %139 = vector.load %arg5[%c168_94, %c0_95] : memref<256x1xf32, #tpu.memory_space<vmem>>, vector<8x1xf32>
    %140 = vector.broadcast %139 : vector<8x1xf32> to vector<8x64xf32>
    %141 = arith.addf %138, %140 : vector<8x64xf32>
    %142 = arith.truncf %14 : vector<8x64xf32> to vector<8x64xbf16>
    %c0_96 = arith.constant 0 : index
    %c0_97 = arith.constant 0 : index
    %143 = vector.load %arg12[%c0_96, %c0_97] : memref<64x128xbf16, #tpu.memory_space<vmem>>, vector<64x128xbf16>
    %cst_98 = arith.constant dense<0.000000e+00> : vector<8x128xf32>
    %144 = tpu.matmul %142, %143, %cst_98 {dimension_numbers = #tpu.dot_dimension_numbers<[1], [0], [0], [1], [0, 0, 1, 1], [], []>} : vector<8x64xbf16>, vector<64x128xbf16>, vector<8x128xf32> -> vector<8x128xf32>
    %145 = arith.truncf %88 : vector<8x64xf32> to vector<8x64xbf16>
    %c0_99 = arith.constant 0 : index
    %c0_100 = arith.constant 0 : index
    %146 = vector.load %arg12[%c0_99, %c0_100] : memref<64x128xbf16, #tpu.memory_space<vmem>>, vector<64x128xbf16>
    %cst_101 = arith.constant dense<0.000000e+00> : vector<8x128xf32>
    %147 = tpu.matmul %145, %146, %cst_101 {dimension_numbers = #tpu.dot_dimension_numbers<[1], [0], [0], [1], [0, 0, 1, 1], [], []>} : vector<8x64xbf16>, vector<64x128xbf16>, vector<8x128xf32> -> vector<8x128xf32>
    %c168_102 = arith.constant 168 : index
    %c0_103 = arith.constant 0 : index
    %148 = vector.load %arg4[%c168_102, %c0_103] : memref<416x32xbf16, #tpu.memory_space<vmem>>, vector<8x8xbf16>
    %149 = arith.truncf %144 : vector<8x128xf32> to vector<8x128xbf16>
    %cst_104 = arith.constant dense<0.000000e+00> : vector<8x128xf32>
    %150 = tpu.matmul %148, %149, %cst_104 {dimension_numbers = #tpu.dot_dimension_numbers<[1], [0], [0], [1], [0, 0, 1, 1], [], []>} : vector<8x8xbf16>, vector<8x128xbf16>, vector<8x128xf32> -> vector<8x128xf32>
    %c176_105 = arith.constant 176 : index
    %c0_106 = arith.constant 0 : index
    %151 = vector.load %arg4[%c176_105, %c0_106] : memref<416x32xbf16, #tpu.memory_space<vmem>>, vector<8x8xbf16>
    %152 = arith.truncf %51 : vector<8x128xf32> to vector<8x128xbf16>
    %cst_107 = arith.constant dense<0.000000e+00> : vector<8x128xf32>
    %153 = tpu.matmul %151, %152, %cst_107 {dimension_numbers = #tpu.dot_dimension_numbers<[1], [0], [0], [1], [0, 0, 1, 1], [], []>} : vector<8x8xbf16>, vector<8x128xbf16>, vector<8x128xf32> -> vector<8x128xf32>
    %154 = arith.addf %150, %153 : vector<8x128xf32>
    %c184_108 = arith.constant 184 : index
    %c0_109 = arith.constant 0 : index
    %155 = vector.load %arg4[%c184_108, %c0_109] : memref<416x32xbf16, #tpu.memory_space<vmem>>, vector<8x8xbf16>
    %156 = arith.truncf %147 : vector<8x128xf32> to vector<8x128xbf16>
    %cst_110 = arith.constant dense<0.000000e+00> : vector<8x128xf32>
    %157 = tpu.matmul %155, %156, %cst_110 {dimension_numbers = #tpu.dot_dimension_numbers<[1], [0], [0], [1], [0, 0, 1, 1], [], []>} : vector<8x8xbf16>, vector<8x128xbf16>, vector<8x128xf32> -> vector<8x128xf32>
    %158 = arith.addf %154, %157 : vector<8x128xf32>
    %c168_111 = arith.constant 168 : index
    %c0_112 = arith.constant 0 : index
    %159 = vector.load %arg5[%c168_111, %c0_112] : memref<256x1xf32, #tpu.memory_space<vmem>>, vector<8x1xf32>
    %160 = vector.broadcast %159 : vector<8x1xf32> to vector<8x128xf32>
    %161 = arith.addf %158, %160 : vector<8x128xf32>
    %c240 = arith.constant 240 : index
    %c0_113 = arith.constant 0 : index
    %162 = vector.load %arg4[%c240, %c0_113] : memref<416x32xbf16, #tpu.memory_space<vmem>>, vector<16x32xbf16>
    %163 = arith.truncf %36 : vector<32x4xf32> to vector<32x4xbf16>
    %cst_114 = arith.constant dense<0.000000e+00> : vector<16x4xf32>
    %164 = tpu.matmul %162, %163, %cst_114 {dimension_numbers = #tpu.dot_dimension_numbers<[1], [0], [0], [1], [0, 0, 1, 1], [], []>} : vector<16x32xbf16>, vector<32x4xbf16>, vector<16x4xf32> -> vector<16x4xf32>
    %c256 = arith.constant 256 : index
    %c0_115 = arith.constant 0 : index
    %165 = vector.load %arg4[%c256, %c0_115] : memref<416x32xbf16, #tpu.memory_space<vmem>>, vector<16x32xbf16>
    %166 = arith.truncf %73 : vector<32x4xf32> to vector<32x4xbf16>
    %cst_116 = arith.constant dense<0.000000e+00> : vector<16x4xf32>
    %167 = tpu.matmul %165, %166, %cst_116 {dimension_numbers = #tpu.dot_dimension_numbers<[1], [0], [0], [1], [0, 0, 1, 1], [], []>} : vector<16x32xbf16>, vector<32x4xbf16>, vector<16x4xf32> -> vector<16x4xf32>
    %168 = arith.addf %164, %167 : vector<16x4xf32>
    %c272 = arith.constant 272 : index
    %c0_117 = arith.constant 0 : index
    %169 = vector.load %arg4[%c272, %c0_117] : memref<416x32xbf16, #tpu.memory_space<vmem>>, vector<16x32xbf16>
    %170 = arith.truncf %110 : vector<32x4xf32> to vector<32x4xbf16>
    %cst_118 = arith.constant dense<0.000000e+00> : vector<16x4xf32>
    %171 = tpu.matmul %169, %170, %cst_118 {dimension_numbers = #tpu.dot_dimension_numbers<[1], [0], [0], [1], [0, 0, 1, 1], [], []>} : vector<16x32xbf16>, vector<32x4xbf16>, vector<16x4xf32> -> vector<16x4xf32>
    %172 = arith.addf %168, %171 : vector<16x4xf32>
    %173 = arith.truncf %172 : vector<16x4xf32> to vector<16x4xbf16>
    %c0_119 = arith.constant 0 : index
    %c0_120 = arith.constant 0 : index
    %174 = vector.load %arg13[%c0_119, %c0_120] : memref<4x16xbf16, #tpu.memory_space<vmem>>, vector<4x16xbf16>
    %cst_121 = arith.constant dense<0.000000e+00> : vector<16x16xf32>
    %175 = tpu.matmul %173, %174, %cst_121 {dimension_numbers = #tpu.dot_dimension_numbers<[1], [0], [0], [1], [0, 0, 1, 1], [], []>} : vector<16x4xbf16>, vector<4x16xbf16>, vector<16x16xf32> -> vector<16x16xf32>
    %c288 = arith.constant 288 : index
    %c0_122 = arith.constant 0 : index
    %176 = vector.load %arg4[%c288, %c0_122] : memref<416x32xbf16, #tpu.memory_space<vmem>>, vector<16x16xbf16>
    %177 = arith.truncf %124 : vector<16x16xf32> to vector<16x16xbf16>
    %cst_123 = arith.constant dense<0.000000e+00> : vector<16x16xf32>
    %178 = tpu.matmul %176, %177, %cst_123 {dimension_numbers = #tpu.dot_dimension_numbers<[1], [0], [0], [1], [0, 0, 1, 1], [], []>} : vector<16x16xbf16>, vector<16x16xbf16>, vector<16x16xf32> -> vector<16x16xf32>
    %179 = arith.addf %175, %178 : vector<16x16xf32>
    %c192_124 = arith.constant 192 : index
    %c0_125 = arith.constant 0 : index
    %180 = vector.load %arg5[%c192_124, %c0_125] : memref<256x1xf32, #tpu.memory_space<vmem>>, vector<16x1xf32>
    %181 = vector.broadcast %180 : vector<16x1xf32> to vector<16x16xf32>
    %182 = arith.addf %179, %181 : vector<16x16xf32>
    %cst_126 = arith.constant 0.000000e+00 : f32
    %183 = vector.broadcast %cst_126 : f32 to vector<16x16xf32>
    %184 = arith.maximumf %182, %183 : vector<16x16xf32>
    %c304 = arith.constant 304 : index
    %c0_127 = arith.constant 0 : index
    %185 = vector.load %arg4[%c304, %c0_127] : memref<416x32xbf16, #tpu.memory_space<vmem>>, vector<8x16xbf16>
    %186 = arith.truncf %184 : vector<16x16xf32> to vector<16x16xbf16>
    %cst_128 = arith.constant dense<0.000000e+00> : vector<8x16xf32>
    %187 = tpu.matmul %185, %186, %cst_128 {dimension_numbers = #tpu.dot_dimension_numbers<[1], [0], [0], [1], [0, 0, 1, 1], [], []>} : vector<8x16xbf16>, vector<16x16xbf16>, vector<8x16xf32> -> vector<8x16xf32>
    %188 = arith.truncf %187 : vector<8x16xf32> to vector<8x16xbf16>
    %c0_129 = arith.constant 0 : index
    %c0_130 = arith.constant 0 : index
    %189 = vector.load %arg14[%c0_129, %c0_130] : memref<16x64xbf16, #tpu.memory_space<vmem>>, vector<16x64xbf16>
    %cst_131 = arith.constant dense<0.000000e+00> : vector<8x64xf32>
    %190 = tpu.matmul %188, %189, %cst_131 {dimension_numbers = #tpu.dot_dimension_numbers<[1], [0], [0], [1], [0, 0, 1, 1], [], []>} : vector<8x16xbf16>, vector<16x64xbf16>, vector<8x64xf32> -> vector<8x64xf32>
    %c312 = arith.constant 312 : index
    %c0_132 = arith.constant 0 : index
    %191 = vector.load %arg4[%c312, %c0_132] : memref<416x32xbf16, #tpu.memory_space<vmem>>, vector<8x8xbf16>
    %192 = arith.truncf %141 : vector<8x64xf32> to vector<8x64xbf16>
    %cst_133 = arith.constant dense<0.000000e+00> : vector<8x64xf32>
    %193 = tpu.matmul %191, %192, %cst_133 {dimension_numbers = #tpu.dot_dimension_numbers<[1], [0], [0], [1], [0, 0, 1, 1], [], []>} : vector<8x8xbf16>, vector<8x64xbf16>, vector<8x64xf32> -> vector<8x64xf32>
    %194 = arith.addf %190, %193 : vector<8x64xf32>
    %c208_134 = arith.constant 208 : index
    %c0_135 = arith.constant 0 : index
    %195 = vector.load %arg5[%c208_134, %c0_135] : memref<256x1xf32, #tpu.memory_space<vmem>>, vector<8x1xf32>
    %196 = vector.broadcast %195 : vector<8x1xf32> to vector<8x64xf32>
    %197 = arith.addf %194, %196 : vector<8x64xf32>
    %cst_136 = arith.constant 0.000000e+00 : f32
    %198 = vector.broadcast %cst_136 : f32 to vector<8x64xf32>
    %199 = arith.maximumf %197, %198 : vector<8x64xf32>
    %c320 = arith.constant 320 : index
    %c0_137 = arith.constant 0 : index
    %200 = vector.load %arg4[%c320, %c0_137] : memref<416x32xbf16, #tpu.memory_space<vmem>>, vector<4x8xbf16>
    %201 = arith.truncf %199 : vector<8x64xf32> to vector<8x64xbf16>
    %cst_138 = arith.constant dense<0.000000e+00> : vector<4x64xf32>
    %202 = tpu.matmul %200, %201, %cst_138 {dimension_numbers = #tpu.dot_dimension_numbers<[1], [0], [0], [1], [0, 0, 1, 1], [], []>} : vector<4x8xbf16>, vector<8x64xbf16>, vector<4x64xf32> -> vector<4x64xf32>
    %c216 = arith.constant 216 : index
    %c0_139 = arith.constant 0 : index
    %203 = vector.load %arg5[%c216, %c0_139] : memref<256x1xf32, #tpu.memory_space<vmem>>, vector<4x1xf32>
    %204 = vector.broadcast %203 : vector<4x1xf32> to vector<4x64xf32>
    %205 = arith.addf %202, %204 : vector<4x64xf32>
    %206 = arith.truncf %205 : vector<4x64xf32> to vector<4x64xbf16>
    %c0_140 = arith.constant 0 : index
    %c0_141 = arith.constant 0 : index
    %207 = vector.load %arg16[%c0_140, %c0_141] : memref<64x256xbf16, #tpu.memory_space<vmem>>, vector<64x256xbf16>
    %cst_142 = arith.constant dense<0.000000e+00> : vector<4x256xf32>
    %208 = tpu.matmul %206, %207, %cst_142 {dimension_numbers = #tpu.dot_dimension_numbers<[1], [0], [0], [1], [0, 0, 1, 1], [], []>} : vector<4x64xbf16>, vector<64x256xbf16>, vector<4x256xf32> -> vector<4x256xf32>
    %c0_143 = arith.constant 0 : index
    %c0_144 = arith.constant 0 : index
    %c0_145 = arith.constant 0 : index
    %209 = vector.load %arg18[%c0_143, %c0_144, %c0_145] : memref<1x4x256xf32, #tpu.memory_space<vmem>>, vector<1x4x256xf32>
    %210 = vector.shape_cast %209 : vector<1x4x256xf32> to vector<4x256xf32>
    %211 = vector.shape_cast %208 : vector<4x256xf32> to vector<1x4x256xf32>
    tpu.vector_store %arg18[%c0_143, %c0_144, %c0_145], %211 {strides = array<i32>} : memref<1x4x256xf32, #tpu.memory_space<vmem>>, vector<1x4x256xf32>,
    %c328 = arith.constant 328 : index
    %c0_146 = arith.constant 0 : index
    %212 = vector.load %arg4[%c328, %c0_146] : memref<416x32xbf16, #tpu.memory_space<vmem>>, vector<16x32xbf16>
    %213 = arith.truncf %36 : vector<32x4xf32> to vector<32x4xbf16>
    %cst_147 = arith.constant dense<0.000000e+00> : vector<16x4xf32>
    %214 = tpu.matmul %212, %213, %cst_147 {dimension_numbers = #tpu.dot_dimension_numbers<[1], [0], [0], [1], [0, 0, 1, 1], [], []>} : vector<16x32xbf16>, vector<32x4xbf16>, vector<16x4xf32> -> vector<16x4xf32>
    %c344 = arith.constant 344 : index
    %c0_148 = arith.constant 0 : index
    %215 = vector.load %arg4[%c344, %c0_148] : memref<416x32xbf16, #tpu.memory_space<vmem>>, vector<16x32xbf16>
    %216 = arith.truncf %73 : vector<32x4xf32> to vector<32x4xbf16>
    %cst_149 = arith.constant dense<0.000000e+00> : vector<16x4xf32>
    %217 = tpu.matmul %215, %216, %cst_149 {dimension_numbers = #tpu.dot_dimension_numbers<[1], [0], [0], [1], [0, 0, 1, 1], [], []>} : vector<16x32xbf16>, vector<32x4xbf16>, vector<16x4xf32> -> vector<16x4xf32>
    %218 = arith.addf %214, %217 : vector<16x4xf32>
    %c360 = arith.constant 360 : index
    %c0_150 = arith.constant 0 : index
    %219 = vector.load %arg4[%c360, %c0_150] : memref<416x32xbf16, #tpu.memory_space<vmem>>, vector<16x32xbf16>
    %220 = arith.truncf %110 : vector<32x4xf32> to vector<32x4xbf16>
    %cst_151 = arith.constant dense<0.000000e+00> : vector<16x4xf32>
    %221 = tpu.matmul %219, %220, %cst_151 {dimension_numbers = #tpu.dot_dimension_numbers<[1], [0], [0], [1], [0, 0, 1, 1], [], []>} : vector<16x32xbf16>, vector<32x4xbf16>, vector<16x4xf32> -> vector<16x4xf32>
    %222 = arith.addf %218, %221 : vector<16x4xf32>
    %223 = arith.truncf %222 : vector<16x4xf32> to vector<16x4xbf16>
    %c0_152 = arith.constant 0 : index
    %c0_153 = arith.constant 0 : index
    %224 = vector.load %arg13[%c0_152, %c0_153] : memref<4x16xbf16, #tpu.memory_space<vmem>>, vector<4x16xbf16>
    %cst_154 = arith.constant dense<0.000000e+00> : vector<16x16xf32>
    %225 = tpu.matmul %223, %224, %cst_154 {dimension_numbers = #tpu.dot_dimension_numbers<[1], [0], [0], [1], [0, 0, 1, 1], [], []>} : vector<16x4xbf16>, vector<4x16xbf16>, vector<16x16xf32> -> vector<16x16xf32>
    %c376 = arith.constant 376 : index
    %c0_155 = arith.constant 0 : index
    %226 = vector.load %arg4[%c376, %c0_155] : memref<416x32xbf16, #tpu.memory_space<vmem>>, vector<16x16xbf16>
    %227 = arith.truncf %124 : vector<16x16xf32> to vector<16x16xbf16>
    %cst_156 = arith.constant dense<0.000000e+00> : vector<16x16xf32>
    %228 = tpu.matmul %226, %227, %cst_156 {dimension_numbers = #tpu.dot_dimension_numbers<[1], [0], [0], [1], [0, 0, 1, 1], [], []>} : vector<16x16xbf16>, vector<16x16xbf16>, vector<16x16xf32> -> vector<16x16xf32>
    %229 = arith.addf %225, %228 : vector<16x16xf32>
    %c224_157 = arith.constant 224 : index
    %c0_158 = arith.constant 0 : index
    %230 = vector.load %arg5[%c224_157, %c0_158] : memref<256x1xf32, #tpu.memory_space<vmem>>, vector<16x1xf32>
    %231 = vector.broadcast %230 : vector<16x1xf32> to vector<16x16xf32>
    %232 = arith.addf %229, %231 : vector<16x16xf32>
    %cst_159 = arith.constant 0.000000e+00 : f32
    %233 = vector.broadcast %cst_159 : f32 to vector<16x16xf32>
    %234 = arith.maximumf %232, %233 : vector<16x16xf32>
    %c392 = arith.constant 392 : index
    %c0_160 = arith.constant 0 : index
    %235 = vector.load %arg4[%c392, %c0_160] : memref<416x32xbf16, #tpu.memory_space<vmem>>, vector<8x16xbf16>
    %236 = arith.truncf %234 : vector<16x16xf32> to vector<16x16xbf16>
    %cst_161 = arith.constant dense<0.000000e+00> : vector<8x16xf32>
    %237 = tpu.matmul %235, %236, %cst_161 {dimension_numbers = #tpu.dot_dimension_numbers<[1], [0], [0], [1], [0, 0, 1, 1], [], []>} : vector<8x16xbf16>, vector<16x16xbf16>, vector<8x16xf32> -> vector<8x16xf32>
    %238 = arith.truncf %237 : vector<8x16xf32> to vector<8x16xbf16>
    %c0_162 = arith.constant 0 : index
    %c0_163 = arith.constant 0 : index
    %239 = vector.load %arg15[%c0_162, %c0_163] : memref<16x128xbf16, #tpu.memory_space<vmem>>, vector<16x128xbf16>
    %cst_164 = arith.constant dense<0.000000e+00> : vector<8x128xf32>
    %240 = tpu.matmul %238, %239, %cst_164 {dimension_numbers = #tpu.dot_dimension_numbers<[1], [0], [0], [1], [0, 0, 1, 1], [], []>} : vector<8x16xbf16>, vector<16x128xbf16>, vector<8x128xf32> -> vector<8x128xf32>
    %c400 = arith.constant 400 : index
    %c0_165 = arith.constant 0 : index
    %241 = vector.load %arg4[%c400, %c0_165] : memref<416x32xbf16, #tpu.memory_space<vmem>>, vector<8x8xbf16>
    %242 = arith.truncf %161 : vector<8x128xf32> to vector<8x128xbf16>
    %cst_166 = arith.constant dense<0.000000e+00> : vector<8x128xf32>
    %243 = tpu.matmul %241, %242, %cst_166 {dimension_numbers = #tpu.dot_dimension_numbers<[1], [0], [0], [1], [0, 0, 1, 1], [], []>} : vector<8x8xbf16>, vector<8x128xbf16>, vector<8x128xf32> -> vector<8x128xf32>
    %244 = arith.addf %240, %243 : vector<8x128xf32>
    %c240_167 = arith.constant 240 : index
    %c0_168 = arith.constant 0 : index
    %245 = vector.load %arg5[%c240_167, %c0_168] : memref<256x1xf32, #tpu.memory_space<vmem>>, vector<8x1xf32>
    %246 = vector.broadcast %245 : vector<8x1xf32> to vector<8x128xf32>
    %247 = arith.addf %244, %246 : vector<8x128xf32>
    %cst_169 = arith.constant 0.000000e+00 : f32
    %248 = vector.broadcast %cst_169 : f32 to vector<8x128xf32>
    %249 = arith.maximumf %247, %248 : vector<8x128xf32>
    %c408 = arith.constant 408 : index
    %c0_170 = arith.constant 0 : index
    %250 = vector.load %arg4[%c408, %c0_170] : memref<416x32xbf16, #tpu.memory_space<vmem>>, vector<4x8xbf16>
    %251 = arith.truncf %249 : vector<8x128xf32> to vector<8x128xbf16>
    %cst_171 = arith.constant dense<0.000000e+00> : vector<4x128xf32>
    %252 = tpu.matmul %250, %251, %cst_171 {dimension_numbers = #tpu.dot_dimension_numbers<[1], [0], [0], [1], [0, 0, 1, 1], [], []>} : vector<4x8xbf16>, vector<8x128xbf16>, vector<4x128xf32> -> vector<4x128xf32>
    %c248 = arith.constant 248 : index
    %c0_172 = arith.constant 0 : index
    %253 = vector.load %arg5[%c248, %c0_172] : memref<256x1xf32, #tpu.memory_space<vmem>>, vector<4x1xf32>
    %254 = vector.broadcast %253 : vector<4x1xf32> to vector<4x128xf32>
    %255 = arith.addf %252, %254 : vector<4x128xf32>
    %256 = arith.truncf %255 : vector<4x128xf32> to vector<4x128xbf16>
    %c0_173 = arith.constant 0 : index
    %c0_174 = arith.constant 0 : index
    %257 = vector.load %arg17[%c0_173, %c0_174] : memref<128x512xbf16, #tpu.memory_space<vmem>>, vector<128x512xbf16>
    %cst_175 = arith.constant dense<0.000000e+00> : vector<4x512xf32>
    %258 = tpu.matmul %256, %257, %cst_175 {dimension_numbers = #tpu.dot_dimension_numbers<[1], [0], [0], [1], [0, 0, 1, 1], [], []>} : vector<4x128xbf16>, vector<128x512xbf16>, vector<4x512xf32> -> vector<4x512xf32>
    %c0_176 = arith.constant 0 : index
    %c0_177 = arith.constant 0 : index
    %c0_178 = arith.constant 0 : index
    %259 = vector.load %arg19[%c0_176, %c0_177, %c0_178] : memref<1x4x512xf32, #tpu.memory_space<vmem>>, vector<1x4x512xf32>
    %260 = vector.shape_cast %259 : vector<1x4x512xf32> to vector<4x512xf32>
    %261 = vector.shape_cast %258 : vector<4x512xf32> to vector<1x4x512xf32>
    tpu.vector_store %arg19[%c0_176, %c0_177, %c0_178], %261 {strides = array<i32>} : memref<1x4x512xf32, #tpu.memory_space<vmem>>, vector<1x4x512xf32>,
    return
  }
  func.func @transform_0(%arg0: i32) -> (i32, i32, i32) {
    %c0_i32 = arith.constant 0 : i32
    %c0_i32_0 = arith.constant 0 : i32
    %c0_i32_1 = arith.constant 0 : i32
    return %arg0, %c0_i32, %c0_i32_0 : i32, i32, i32
  }
  func.func @transform_1(%arg0: i32) -> (i32, i32, i32) {
    %c0_i32 = arith.constant 0 : i32
    %c0_i32_0 = arith.constant 0 : i32
    %c0_i32_1 = arith.constant 0 : i32
    return %arg0, %c0_i32, %c0_i32_0 : i32, i32, i32
  }
  func.func @transform_2(%arg0: i32) -> (i32, i32, i32) {
    %c0_i32 = arith.constant 0 : i32
    %c0_i32_0 = arith.constant 0 : i32
    %c0_i32_1 = arith.constant 0 : i32
    return %arg0, %c0_i32, %c0_i32_0 : i32, i32, i32
  }
  func.func @transform_3(%arg0: i32) -> (i32, i32) {
    %c0_i32 = arith.constant 0 : i32
    %c0_i32_0 = arith.constant 0 : i32
    %c0_i32_1 = arith.constant 0 : i32
    return %c0_i32, %c0_i32_0 : i32, i32
  }
  func.func @transform_4(%arg0: i32) -> (i32, i32) {
    %c0_i32 = arith.constant 0 : i32
    %c0_i32_0 = arith.constant 0 : i32
    %c0_i32_1 = arith.constant 0 : i32
    return %c0_i32, %c0_i32_0 : i32, i32
  }
  func.func @transform_5(%arg0: i32) -> (i32, i32) {
    %c0_i32 = arith.constant 0 : i32
    %c0_i32_0 = arith.constant 0 : i32
    %c0_i32_1 = arith.constant 0 : i32
    return %c0_i32, %c0_i32_0 : i32, i32
  }
  func.func @transform_6(%arg0: i32) -> (i32, i32) {
    %c0_i32 = arith.constant 0 : i32
    %c0_i32_0 = arith.constant 0 : i32
    %c0_i32_1 = arith.constant 0 : i32
    return %c0_i32, %c0_i32_0 : i32, i32
  }
  func.func @transform_7(%arg0: i32) -> (i32, i32) {
    %c0_i32 = arith.constant 0 : i32
    %c0_i32_0 = arith.constant 0 : i32
    %c0_i32_1 = arith.constant 0 : i32
    return %c0_i32, %c0_i32_0 : i32, i32
  }
  func.func @transform_8(%arg0: i32) -> (i32, i32) {
    %c0_i32 = arith.constant 0 : i32
    %c0_i32_0 = arith.constant 0 : i32
    %c0_i32_1 = arith.constant 0 : i32
    return %c0_i32, %c0_i32_0 : i32, i32
  }
  func.func @transform_9(%arg0: i32) -> (i32, i32) {
    %c0_i32 = arith.constant 0 : i32
    %c0_i32_0 = arith.constant 0 : i32
    %c0_i32_1 = arith.constant 0 : i32
    return %c0_i32, %c0_i32_0 : i32, i32
  }
  func.func @transform_10(%arg0: i32) -> (i32, i32) {
    %c0_i32 = arith.constant 0 : i32
    %c0_i32_0 = arith.constant 0 : i32
    %c0_i32_1 = arith.constant 0 : i32
    return %c0_i32, %c0_i32_0 : i32, i32
  }
  func.func @transform_11(%arg0: i32) -> (i32, i32) {
    %c0_i32 = arith.constant 0 : i32
    %c0_i32_0 = arith.constant 0 : i32
    %c0_i32_1 = arith.constant 0 : i32
    return %c0_i32, %c0_i32_0 : i32, i32
  }
  func.func @transform_12(%arg0: i32) -> (i32, i32) {
    %c0_i32 = arith.constant 0 : i32
    %c0_i32_0 = arith.constant 0 : i32
    %c0_i32_1 = arith.constant 0 : i32
    return %c0_i32, %c0_i32_0 : i32, i32
  }
  func.func @transform_13(%arg0: i32) -> (i32, i32) {
    %c0_i32 = arith.constant 0 : i32
    %c0_i32_0 = arith.constant 0 : i32
    %c0_i32_1 = arith.constant 0 : i32
    return %c0_i32, %c0_i32_0 : i32, i32
  }
  func.func @transform_14(%arg0: i32) -> (i32, i32) {
    %c0_i32 = arith.constant 0 : i32
    %c0_i32_0 = arith.constant 0 : i32
    %c0_i32_1 = arith.constant 0 : i32
    return %c0_i32, %c0_i32_0 : i32, i32
  }
  func.func @transform_15(%arg0: i32) -> (i32, i32) {
    %c0_i32 = arith.constant 0 : i32
    %c0_i32_0 = arith.constant 0 : i32
    %c0_i32_1 = arith.constant 0 : i32
    return %c0_i32, %c0_i32_0 : i32, i32
  }
  func.func @transform_16(%arg0: i32) -> (i32, i32) {
    %c0_i32 = arith.constant 0 : i32
    %c0_i32_0 = arith.constant 0 : i32
    %c0_i32_1 = arith.constant 0 : i32
    return %c0_i32, %c0_i32_0 : i32, i32
  }
  func.func @transform_17(%arg0: i32) -> (i32, i32, i32) {
    %c0_i32 = arith.constant 0 : i32
    %c0_i32_0 = arith.constant 0 : i32
    %c0_i32_1 = arith.constant 0 : i32
    return %arg0, %c0_i32, %c0_i32_0 : i32, i32, i32
  }
  func.func @transform_18(%arg0: i32) -> (i32, i32, i32) {
    %c0_i32 = arith.constant 0 : i32
    %c0_i32_0 = arith.constant 0 : i32
    %c0_i32_1 = arith.constant 0 : i32
    return %arg0, %c0_i32, %c0_i32_0 : i32, i32, i32
  }
}

</mosaic_0001>

<llo_original>
// kernel: squeeze.3
$region0: #{squeeze.3}
  %s0 = inlined_call_operand.vmem [shape: f32[2,1,1,16,16], index: 0, kind: input, shape index: {}]
  %s1 = inlined_call_operand.vmem [shape: f32[2,1,256], index: 1, kind: output, shape index: {}]
  $region1: #{squeeze.3} parent=0
    #allocation0 [shape = 'u8[16384]{0}', space=vmem, size = 0x4000, scoped, tag = 'scoped mem for output reshape']
    %v2 = vld [vmem:[%s0] ss:$8 sm:$0xf]
    %vm3 = vcmask 130048
    %4 = vst.msk [vmem:[#allocation0] ss:$8 sm:$0xf] %vm3, %v2
    %s5 = scalar_lea.vmem %s0, 7
    %v6 = vld [vmem:[%s5] ss:$8 sm:$0xf]
    %7 = vrot.lane.b32.xlu0 %v6, 112
    %v8 = vpop.permute.xlu0 %7
    %vm9 = vcmask 1048448
    %10 = vst.msk [vmem:[#allocation0] ss:$8 sm:$0xf] %vm9, %v8
    %s11 = scalar_lea.vmem %s0, 6
    %v12 = vld [vmem:[%s11] ss:$8 sm:$0xf]
    %13 = vrot.lane.b32.xlu0 %v12, 96
    %v14 = vpop.permute.xlu0 %13
    %vm15 = vcmask 917248
    %16 = vst.msk [vmem:[#allocation0] ss:$8 sm:$0xf] %vm15, %v14
    %s17 = scalar_lea.vmem %s0, 5
    %v18 = vld [vmem:[%s17] ss:$8 sm:$0xf]
    %19 = vrot.lane.b32.xlu0 %v18, 80
    %v20 = vpop.permute.xlu0 %19
    %vm21 = vcmask 786048
    %22 = vst.msk [vmem:[#allocation0] ss:$8 sm:$0xf] %vm21, %v20
    %s23 = scalar_lea.vmem %s0, 4
    %v24 = vld [vmem:[%s23] ss:$8 sm:$0xf]
    %25 = vrot.lane.b32.xlu0 %v24, 64
    %v26 = vpop.permute.xlu0 %25
    %vm27 = vcmask 654848
    %28 = vst.msk [vmem:[#allocation0] ss:$8 sm:$0xf] %vm27, %v26
    %s29 = scalar_lea.vmem %s0, 3
    %v30 = vld [vmem:[%s29] ss:$8 sm:$0xf]
    %31 = vrot.lane.b32.xlu0 %v30, 48
    %v32 = vpop.permute.xlu0 %31
    %vm33 = vcmask 523648
    %34 = vst.msk [vmem:[#allocation0] ss:$8 sm:$0xf] %vm33, %v32
    %s35 = scalar_lea.vmem %s0, 2
    %v36 = vld [vmem:[%s35] ss:$8 sm:$0xf]
    %37 = vrot.lane.b32.xlu0 %v36, 32
    %v38 = vpop.permute.xlu0 %37
    %vm39 = vcmask 392448
    %40 = vst.msk [vmem:[#allocation0] ss:$8 sm:$0xf] %vm39, %v38
    %s41 = scalar_lea.vmem %s0, 1
    %v42 = vld [vmem:[%s41] ss:$8 sm:$0xf]
    %43 = vrot.lane.b32.xlu0 %v42, 16
    %v44 = vpop.permute.xlu0 %43
    %vm45 = vcmask 261248
    %46 = vst.msk [vmem:[#allocation0] ss:$8 sm:$0xf] %vm45, %v44
    %s48 = sshllo.u32 0, 1
    %v50 = vld [vmem:[#allocation0] sm:%s48]
    %s51 = sshllo.u32 0, 1
    %52 = vst [vmem:[%s1] sm:%s51] %v50
    %s53 = scalar_lea.vmem [#allocation0], 8
    %v54 = vld [vmem:[%s53] sm:%s48]
    %s55 = sshllo.u32 0, 1
    %s56 = scalar_lea.vmem %s1, 1
    %57 = vst [vmem:[%s56] sm:%s55] %v54
    %s58 = scalar_lea.vmem [#allocation0], 16
    %v59 = vld [vmem:[%s58] sm:%s48]
    %s60 = sshllo.u32 0, 1
    %s61 = smul.addr 1, 2
    %s62 = scalar_lea.vmem %s1, %s61
    %63 = vst [vmem:[%s62] sm:%s60] %v59
    %s64 = scalar_lea.vmem [#allocation0], 24
    %v65 = vld [vmem:[%s64] sm:%s48]
    %s66 = sshllo.u32 0, 1
    %s67 = smul.addr 1, 3
    %s68 = scalar_lea.vmem %s1, %s67
    %69 = vst [vmem:[%s68] sm:%s66] %v65

// kernel: squeeze.4
$region0: #{squeeze.4}
  %s0 = inlined_call_operand.vmem [shape: f32[2,1,1,16,32], index: 0, kind: input, shape index: {}]
  %s1 = inlined_call_operand.vmem [shape: f32[2,1,512], index: 1, kind: output, shape index: {}]
  $region1: #{squeeze.4} parent=0
    #allocation0 [shape = 'u8[32768]{0}', space=vmem, size = 0x8000, scoped, tag = 'scoped mem for output reshape']
    %v2 = vld [vmem:[%s0] ss:$4 sm:$0xff]
    %vm3 = vcmask 261120
    %4 = vst.msk [vmem:[#allocation0] ss:$8 sm:$0xf] %vm3, %v2
    %5 = vst.msk [vmem:[#allocation0] ss:$8 sm:$0xf0] %vm3, %v2
    %s6 = scalar_lea.vmem %s0, 3
    %v7 = vld [vmem:[%s6] ss:$4 sm:$0xff]
    %8 = vrot.lane.b32.xlu0 %v7, 96
    %v9 = vpop.permute.xlu0 %8
    %vm10 = vcmask 1048320
    %11 = vst.msk [vmem:[#allocation0] ss:$8 sm:$0xf] %vm10, %v9
    %12 = vst.msk [vmem:[#allocation0] ss:$8 sm:$0xf0] %vm10, %v9
    %s13 = scalar_lea.vmem %s0, 2
    %v14 = vld [vmem:[%s13] ss:$4 sm:$0xff]
    %15 = vrot.lane.b32.xlu0 %v14, 64
    %v16 = vpop.permute.xlu0 %15
    %vm17 = vcmask 785920
    %18 = vst.msk [vmem:[#allocation0] ss:$8 sm:$0xf] %vm17, %v16
    %19 = vst.msk [vmem:[#allocation0] ss:$8 sm:$0xf0] %vm17, %v16
    %s20 = scalar_lea.vmem %s0, 1
    %v21 = vld [vmem:[%s20] ss:$4 sm:$0xff]
    %22 = vrot.lane.b32.xlu0 %v21, 32
    %v23 = vpop.permute.xlu0 %22
    %vm24 = vcmask 523520
    %25 = vst.msk [vmem:[#allocation0] ss:$8 sm:$0xf] %vm24, %v23
    %26 = vst.msk [vmem:[#allocation0] ss:$8 sm:$0xf0] %vm24, %v23
    %s28 = sshllo.u32 0, 1
    %v30 = vld [vmem:[#allocation0] sm:%s28]
    %s31 = sshllo.u32 0, 1
    %32 = vst [vmem:[%s1] sm:%s31] %v30
    %s33 = scalar_lea.vmem [#allocation0], 8
    %v34 = vld [vmem:[%s33] sm:%s28]
    %s35 = sshllo.u32 0, 1
    %s36 = scalar_lea.vmem %s1, 1
    %37 = vst [vmem:[%s36] sm:%s35] %v34
    %s38 = scalar_lea.vmem [#allocation0], 16
    %v39 = vld [vmem:[%s38] sm:%s28]
    %s40 = sshllo.u32 0, 1
    %s41 = smul.addr 1, 2
    %s42 = scalar_lea.vmem %s1, %s41
    %43 = vst [vmem:[%s42] sm:%s40] %v39
    %s44 = scalar_lea.vmem [#allocation0], 24
    %v45 = vld [vmem:[%s44] sm:%s28]
    %s46 = sshllo.u32 0, 1
    %s47 = smul.addr 1, 3
    %s48 = scalar_lea.vmem %s1, %s47
    %49 = vst [vmem:[%s48] sm:%s46] %v45
    %s50 = scalar_lea.vmem [#allocation0], 32
    %v51 = vld [vmem:[%s50] sm:%s28]
    %s52 = sshllo.u32 0, 1
    %s53 = smul.addr 1, 4
    %s54 = scalar_lea.vmem %s1, %s53
    %55 = vst [vmem:[%s54] sm:%s52] %v51
    %s56 = scalar_lea.vmem [#allocation0], 40
    %v57 = vld [vmem:[%s56] sm:%s28]
    %s58 = sshllo.u32 0, 1
    %s59 = smul.addr 1, 5
    %s60 = scalar_lea.vmem %s1, %s59
    %61 = vst [vmem:[%s60] sm:%s58] %v57
    %s62 = scalar_lea.vmem [#allocation0], 48
    %v63 = vld [vmem:[%s62] sm:%s28]
    %s64 = sshllo.u32 0, 1
    %s65 = smul.addr 1, 6
    %s66 = scalar_lea.vmem %s1, %s65
    %67 = vst [vmem:[%s66] sm:%s64] %v63
    %s68 = scalar_lea.vmem [#allocation0], 56
    %v69 = vld [vmem:[%s68] sm:%s28]
    %s70 = sshllo.u32 0, 1
    %s71 = smul.addr 1, 7
    %s72 = scalar_lea.vmem %s1, %s71
    %73 = vst [vmem:[%s72] sm:%s70] %v69

// kernel: mv_record_forward.1
$region0: #{mv_record_forward.1}
  #allocation0 [shape = 'u32[]', space=smem, size = 0x4, offset = 0x4, fixed_abs, tag = 'smem constant byte address 0x4 - core index']
  #allocation1 [shape = 'u32[144,128]{1,0:T(1,128)}', space=vmem, size = 0x12000, scoped, tag = 'internal scratch']
  %s0 = inlined_call_operand.vmem [shape: f32[2,1,256], index: 0, kind: input, shape index: {}]
  %s1 = inlined_call_operand.vmem [shape: f32[2,1,512], index: 1, kind: input, shape index: {}]
  %s2 = inlined_call_operand.vmem [shape: f32[2,1,256], index: 2, kind: input, shape index: {}]
  %s3 = inlined_call_operand.vmem [shape: bf16[416,32], index: 3, kind: input, shape index: {}]
  %s4 = inlined_call_operand.vmem [shape: f32[256,1], index: 4, kind: input, shape index: {}]
  %s5 = inlined_call_operand.vmem [shape: bf16[256,64], index: 5, kind: input, shape index: {}]
  %s6 = inlined_call_operand.vmem [shape: bf16[512,128], index: 6, kind: input, shape index: {}]
  %s7 = inlined_call_operand.vmem [shape: bf16[64,16], index: 7, kind: input, shape index: {}]
  %s8 = inlined_call_operand.vmem [shape: bf16[128,16], index: 8, kind: input, shape index: {}]
  %s9 = inlined_call_operand.vmem [shape: bf16[16,4], index: 9, kind: input, shape index: {}]
  %s10 = inlined_call_operand.vmem [shape: bf16[128,64], index: 10, kind: input, shape index: {}]
  %s11 = inlined_call_operand.vmem [shape: bf16[64,128], index: 11, kind: input, shape index: {}]
  %s12 = inlined_call_operand.vmem [shape: bf16[4,16], index: 12, kind: input, shape index: {}]
  %s13 = inlined_call_operand.vmem [shape: bf16[16,64], index: 13, kind: input, shape index: {}]
  %s14 = inlined_call_operand.vmem [shape: bf16[16,128], index: 14, kind: input, shape index: {}]
  %s15 = inlined_call_operand.vmem [shape: bf16[64,256], index: 15, kind: input, shape index: {}]
  %s16 = inlined_call_operand.vmem [shape: bf16[128,512], index: 16, kind: input, shape index: {}]
  %s17 = inlined_call_operand.vmem [shape: f32[2,4,256], index: 17, kind: output, shape index: {0}]
  %s18 = inlined_call_operand.vmem [shape: f32[2,4,512], index: 18, kind: output, shape index: {1}]
  %19 = xla_tuple %s17, %s18
  %s20 = sld [smem:[#allocation0]]
  $region109: #{mv_record_forward.1} parent=0
    _
  %s22 = ssub.s32 1, %s20
  %s23 = scalar_select 0, %s22, %s20
  loop: start=0, step=1, limit=4
  $region2: #{mv_record_forward.1} parent=0 // loop_pre_header
    _
  $region3: #{mv_record_forward.1} parent=0 // loop_header
    %s25 = sphi 0, %s29
    %p26 = scmp.ge.s32.totalorder %s25, 4
    %s35 = sphi 0, %s37
    %s38 = sphi 0, %s35
    %s39 = sphi 0, %s38
    %s55 = sphi 0, %s39
    %s61 = sphi 0, %s63
    %s64 = sphi 0, %s61
    %s65 = sphi 0, %s64
    %s81 = sphi 0, %s65
    %s87 = sphi 0, %s89
    %s90 = sphi 0, %s87
    %s91 = sphi 0, %s90
    %s107 = sphi 0, %s91
    %s111 = sphi 0, %s111
    %s113 = sphi 0, %s111
    %s114 = sphi 0, %s113
    %s128 = sphi 0, %s114
    %s132 = sphi 0, %s132
    %s134 = sphi 0, %s132
    %s135 = sphi 0, %s134
    %s149 = sphi 0, %s135
    %s153 = sphi 0, %s153
    %s155 = sphi 0, %s153
    %s156 = sphi 0, %s155
    %s170 = sphi 0, %s156
    %s174 = sphi 0, %s174
    %s176 = sphi 0, %s174
    %s177 = sphi 0, %s176
    %s191 = sphi 0, %s177
    %s195 = sphi 0, %s195
    %s197 = sphi 0, %s195
    %s198 = sphi 0, %s197
    %s212 = sphi 0, %s198
    %s216 = sphi 0, %s216
    %s218 = sphi 0, %s216
    %s219 = sphi 0, %s218
    %s233 = sphi 0, %s219
    %s237 = sphi 0, %s237
    %s239 = sphi 0, %s237
    %s240 = sphi 0, %s239
    %s254 = sphi 0, %s240
    %s258 = sphi 0, %s258
    %s260 = sphi 0, %s258
    %s261 = sphi 0, %s260
    %s275 = sphi 0, %s261
    %s279 = sphi 0, %s279
    %s281 = sphi 0, %s279
    %s282 = sphi 0, %s281
    %s296 = sphi 0, %s282
    %s300 = sphi 0, %s300
    %s302 = sphi 0, %s300
    %s303 = sphi 0, %s302
    %s317 = sphi 0, %s303
    %s321 = sphi 0, %s321
    %s323 = sphi 0, %s321
    %s324 = sphi 0, %s323
    %s338 = sphi 0, %s324
    %s342 = sphi 0, %s342
    %s344 = sphi 0, %s342
    %s345 = sphi 0, %s344
    %s359 = sphi 0, %s345
    %s363 = sphi 0, %s363
    %s365 = sphi 0, %s363
    %s366 = sphi 0, %s365
    %s380 = sphi 0, %s366
    %s384 = sphi 0, %s384
    %s386 = sphi 0, %s384
    %s387 = sphi 0, %s386
    %s401 = sphi 0, %s387
    %s407 = sphi 0, %s409
    %s410 = sphi 0, %s407
    %s411 = sphi 0, %s410
    %s427 = sphi 0, %s411
    %s433 = sphi 0, %s435
    %s436 = sphi 0, %s433
    %s437 = sphi 0, %s436
    %s453 = sphi 0, %s437
  $region4: #{mv_record_forward.1} parent=0 // loop_header_branch
    %28 = sbr.rel (%p26) target = $region8
  $region5: #{mv_record_forward.1} parent=0 // loop_body
    %s30 = ssub.s32 %s25, 1
    %s31 = ssub.s32 %s25, 2
    %s32 = sadd.s32 %s25, 1
    %s33 = ssub.s32 %s25, %s32
    %p34 = scmp.eq.s32.totalorder %s33, 0
    %s36 = sadd.s32 %s35, 1
    %s37 = scalar_select %p34, %s35, %s36
    %p40 = pneg %p34
    %p41 = scmp.eq.s32.totalorder %s25, 1
    %p42 = por %p40, %p41
    %p43 = scmp.ne.s32.totalorder %s35, %s38
    %p44 = scmp.eq.s32.totalorder %s25, 0
    %p45 = por %p43, %p44
    %p46 = scmp.ne.s32.totalorder %s35, %s38
    %p47 = scmp.eq.s32.totalorder %s30, 1
    %p48 = por %p46, %p47
    %p49 = scmp.ne.s32.totalorder %s38, %s39
    %p50 = scmp.eq.s32.totalorder %s30, 0
    %p51 = por %p49, %p50
    %p52 = scmp.ne.s32.totalorder %s38, %s39
    %p53 = scmp.eq.s32.totalorder %s31, 1
    %p54 = por %p52, %p53
    %p56 = scmp.ne.s32.totalorder %s39, %s55
    %p57 = scmp.eq.s32.totalorder %s31, 0
    %p58 = por %p56, %p57
    %s59 = ssub.s32 %s25, %s32
    %p60 = scmp.eq.s32.totalorder %s59, 0
    %s62 = sadd.s32 %s61, 1
    %s63 = scalar_select %p60, %s61, %s62
    %p66 = pneg %p60
    %p67 = scmp.eq.s32.totalorder %s25, 1
    %p68 = por %p66, %p67
    %p69 = scmp.ne.s32.totalorder %s61, %s64
    %p70 = scmp.eq.s32.totalorder %s25, 0
    %p71 = por %p69, %p70
    %p72 = scmp.ne.s32.totalorder %s61, %s64
    %p73 = scmp.eq.s32.totalorder %s30, 1
    %p74 = por %p72, %p73
    %p75 = scmp.ne.s32.totalorder %s64, %s65
    %p76 = scmp.eq.s32.totalorder %s30, 0
    %p77 = por %p75, %p76
    %p78 = scmp.ne.s32.totalorder %s64, %s65
    %p79 = scmp.eq.s32.totalorder %s31, 1
    %p80 = por %p78, %p79
    %p82 = scmp.ne.s32.totalorder %s65, %s81
    %p83 = scmp.eq.s32.totalorder %s31, 0
    %p84 = por %p82, %p83
    %s85 = ssub.s32 %s25, %s32
    %p86 = scmp.eq.s32.totalorder %s85, 0
    %s88 = sadd.s32 %s87, 1
    %s89 = scalar_select %p86, %s87, %s88
    %p92 = pneg %p86
    %p93 = scmp.eq.s32.totalorder %s25, 1
    %p94 = por %p92, %p93
    %p95 = scmp.ne.s32.totalorder %s87, %s90
    %p96 = scmp.eq.s32.totalorder %s25, 0
    %p97 = por %p95, %p96
    %p98 = scmp.ne.s32.totalorder %s87, %s90
    %p99 = scmp.eq.s32.totalorder %s30, 1
    %p100 = por %p98, %p99
    %p101 = scmp.ne.s32.totalorder %s90, %s91
    %p102 = scmp.eq.s32.totalorder %s30, 0
    %p103 = por %p101, %p102
    %p104 = scmp.ne.s32.totalorder %s90, %s91
    %p105 = scmp.eq.s32.totalorder %s31, 1
    %p106 = por %p104, %p105
    %p108 = scmp.ne.s32.totalorder %s91, %s107
    %p109 = scmp.eq.s32.totalorder %s31, 0
    %p110 = por %p108, %p109
    %s112 = sadd.s32 %s111, 1
    %p115 = scmp.eq.s32.totalorder %s25, 1
    %p116 = scmp.ne.s32.totalorder %s111, %s113
    %p117 = scmp.eq.s32.totalorder %s25, 0
    %p118 = por %p116, %p117
    %p119 = scmp.ne.s32.totalorder %s111, %s113
    %p120 = scmp.eq.s32.totalorder %s30, 1
    %p121 = por %p119, %p120
    %p122 = scmp.ne.s32.totalorder %s113, %s114
    %p123 = scmp.eq.s32.totalorder %s30, 0
    %p124 = por %p122, %p123
    %p125 = scmp.ne.s32.totalorder %s113, %s114
    %p126 = scmp.eq.s32.totalorder %s31, 1
    %p127 = por %p125, %p126
    %p129 = scmp.ne.s32.totalorder %s114, %s128
    %p130 = scmp.eq.s32.totalorder %s31, 0
    %p131 = por %p129, %p130
    %s133 = sadd.s32 %s132, 1
    %p136 = scmp.eq.s32.totalorder %s25, 1
    %p137 = scmp.ne.s32.totalorder %s132, %s134
    %p138 = scmp.eq.s32.totalorder %s25, 0
    %p139 = por %p137, %p138
    %p140 = scmp.ne.s32.totalorder %s132, %s134
    %p141 = scmp.eq.s32.totalorder %s30, 1
    %p142 = por %p140, %p141
    %p143 = scmp.ne.s32.totalorder %s134, %s135
    %p144 = scmp.eq.s32.totalorder %s30, 0
    %p145 = por %p143, %p144
    %p146 = scmp.ne.s32.totalorder %s134, %s135
    %p147 = scmp.eq.s32.totalorder %s31, 1
    %p148 = por %p146, %p147
    %p150 = scmp.ne.s32.totalorder %s135, %s149
    %p151 = scmp.eq.s32.totalorder %s31, 0
    %p152 = por %p150, %p151
    %s154 = sadd.s32 %s153, 1
    %p157 = scmp.eq.s32.totalorder %s25, 1
    %p158 = scmp.ne.s32.totalorder %s153, %s155
    %p159 = scmp.eq.s32.totalorder %s25, 0
    %p160 = por %p158, %p159
    %p161 = scmp.ne.s32.totalorder %s153, %s155
    %p162 = scmp.eq.s32.totalorder %s30, 1
    %p163 = por %p161, %p162
    %p164 = scmp.ne.s32.totalorder %s155, %s156
    %p165 = scmp.eq.s32.totalorder %s30, 0
    %p166 = por %p164, %p165
    %p167 = scmp.ne.s32.totalorder %s155, %s156
    %p168 = scmp.eq.s32.totalorder %s31, 1
    %p169 = por %p167, %p168
    %p171 = scmp.ne.s32.totalorder %s156, %s170
    %p172 = scmp.eq.s32.totalorder %s31, 0
    %p173 = por %p171, %p172
    %s175 = sadd.s32 %s174, 1
    %p178 = scmp.eq.s32.totalorder %s25, 1
    %p179 = scmp.ne.s32.totalorder %s174, %s176
    %p180 = scmp.eq.s32.totalorder %s25, 0
    %p181 = por %p179, %p180
    %p182 = scmp.ne.s32.totalorder %s174, %s176
    %p183 = scmp.eq.s32.totalorder %s30, 1
    %p184 = por %p182, %p183
    %p185 = scmp.ne.s32.totalorder %s176, %s177
    %p186 = scmp.eq.s32.totalorder %s30, 0
    %p187 = por %p185, %p186
    %p188 = scmp.ne.s32.totalorder %s176, %s177
    %p189 = scmp.eq.s32.totalorder %s31, 1
    %p190 = por %p188, %p189
    %p192 = scmp.ne.s32.totalorder %s177, %s191
    %p193 = scmp.eq.s32.totalorder %s31, 0
    %p194 = por %p192, %p193
    %s196 = sadd.s32 %s195, 1
    %p199 = scmp.eq.s32.totalorder %s25, 1
    %p200 = scmp.ne.s32.totalorder %s195, %s197
    %p201 = scmp.eq.s32.totalorder %s25, 0
    %p202 = por %p200, %p201
    %p203 = scmp.ne.s32.totalorder %s195, %s197
    %p204 = scmp.eq.s32.totalorder %s30, 1
    %p205 = por %p203, %p204
    %p206 = scmp.ne.s32.totalorder %s197, %s198
    %p207 = scmp.eq.s32.totalorder %s30, 0
    %p208 = por %p206, %p207
    %p209 = scmp.ne.s32.totalorder %s197, %s198
    %p210 = scmp.eq.s32.totalorder %s31, 1
    %p211 = por %p209, %p210
    %p213 = scmp.ne.s32.totalorder %s198, %s212
    %p214 = scmp.eq.s32.totalorder %s31, 0
    %p215 = por %p213, %p214
    %s217 = sadd.s32 %s216, 1
    %p220 = scmp.eq.s32.totalorder %s25, 1
    %p221 = scmp.ne.s32.totalorder %s216, %s218
    %p222 = scmp.eq.s32.totalorder %s25, 0
    %p223 = por %p221, %p222
    %p224 = scmp.ne.s32.totalorder %s216, %s218
    %p225 = scmp.eq.s32.totalorder %s30, 1
    %p226 = por %p224, %p225
    %p227 = scmp.ne.s32.totalorder %s218, %s219
    %p228 = scmp.eq.s32.totalorder %s30, 0
    %p229 = por %p227, %p228
    %p230 = scmp.ne.s32.totalorder %s218, %s219
    %p231 = scmp.eq.s32.totalorder %s31, 1
    %p232 = por %p230, %p231
    %p234 = scmp.ne.s32.totalorder %s219, %s233
    %p235 = scmp.eq.s32.totalorder %s31, 0
    %p236 = por %p234, %p235
    %s238 = sadd.s32 %s237, 1
    %p241 = scmp.eq.s32.totalorder %s25, 1
    %p242 = scmp.ne.s32.totalorder %s237, %s239
    %p243 = scmp.eq.s32.totalorder %s25, 0
    %p244 = por %p242, %p243
    %p245 = scmp.ne.s32.totalorder %s237, %s239
    %p246 = scmp.eq.s32.totalorder %s30, 1
    %p247 = por %p245, %p246
    %p248 = scmp.ne.s32.totalorder %s239, %s240
    %p249 = scmp.eq.s32.totalorder %s30, 0
    %p250 = por %p248, %p249
    %p251 = scmp.ne.s32.totalorder %s239, %s240
    %p252 = scmp.eq.s32.totalorder %s31, 1
    %p253 = por %p251, %p252
    %p255 = scmp.ne.s32.totalorder %s240, %s254
    %p256 = scmp.eq.s32.totalorder %s31, 0
    %p257 = por %p255, %p256
    %s259 = sadd.s32 %s258, 1
    %p262 = scmp.eq.s32.totalorder %s25, 1
    %p263 = scmp.ne.s32.totalorder %s258, %s260
    %p264 = scmp.eq.s32.totalorder %s25, 0
    %p265 = por %p263, %p264
    %p266 = scmp.ne.s32.totalorder %s258, %s260
    %p267 = scmp.eq.s32.totalorder %s30, 1
    %p268 = por %p266, %p267
    %p269 = scmp.ne.s32.totalorder %s260, %s261
    %p270 = scmp.eq.s32.totalorder %s30, 0
    %p271 = por %p269, %p270
    %p272 = scmp.ne.s32.totalorder %s260, %s261
    %p273 = scmp.eq.s32.totalorder %s31, 1
    %p274 = por %p272, %p273
    %p276 = scmp.ne.s32.totalorder %s261, %s275
    %p277 = scmp.eq.s32.totalorder %s31, 0
    %p278 = por %p276, %p277
    %s280 = sadd.s32 %s279, 1
    %p283 = scmp.eq.s32.totalorder %s25, 1
    %p284 = scmp.ne.s32.totalorder %s279, %s281
    %p285 = scmp.eq.s32.totalorder %s25, 0
    %p286 = por %p284, %p285
    %p287 = scmp.ne.s32.totalorder %s279, %s281
    %p288 = scmp.eq.s32.totalorder %s30, 1
    %p289 = por %p287, %p288
    %p290 = scmp.ne.s32.totalorder %s281, %s282
    %p291 = scmp.eq.s32.totalorder %s30, 0
    %p292 = por %p290, %p291
    %p293 = scmp.ne.s32.totalorder %s281, %s282
    %p294 = scmp.eq.s32.totalorder %s31, 1
    %p295 = por %p293, %p294
    %p297 = scmp.ne.s32.totalorder %s282, %s296
    %p298 = scmp.eq.s32.totalorder %s31, 0
    %p299 = por %p297, %p298
    %s301 = sadd.s32 %s300, 1
    %p304 = scmp.eq.s32.totalorder %s25, 1
    %p305 = scmp.ne.s32.totalorder %s300, %s302
    %p306 = scmp.eq.s32.totalorder %s25, 0
    %p307 = por %p305, %p306
    %p308 = scmp.ne.s32.totalorder %s300, %s302
    %p309 = scmp.eq.s32.totalorder %s30, 1
    %p310 = por %p308, %p309
    %p311 = scmp.ne.s32.totalorder %s302, %s303
    %p312 = scmp.eq.s32.totalorder %s30, 0
    %p313 = por %p311, %p312
    %p314 = scmp.ne.s32.totalorder %s302, %s303
    %p315 = scmp.eq.s32.totalorder %s31, 1
    %p316 = por %p314, %p315
    %p318 = scmp.ne.s32.totalorder %s303, %s317
    %p319 = scmp.eq.s32.totalorder %s31, 0
    %p320 = por %p318, %p319
    %s322 = sadd.s32 %s321, 1
    %p325 = scmp.eq.s32.totalorder %s25, 1
    %p326 = scmp.ne.s32.totalorder %s321, %s323
    %p327 = scmp.eq.s32.totalorder %s25, 0
    %p328 = por %p326, %p327
    %p329 = scmp.ne.s32.totalorder %s321, %s323
    %p330 = scmp.eq.s32.totalorder %s30, 1
    %p331 = por %p329, %p330
    %p332 = scmp.ne.s32.totalorder %s323, %s324
    %p333 = scmp.eq.s32.totalorder %s30, 0
    %p334 = por %p332, %p333
    %p335 = scmp.ne.s32.totalorder %s323, %s324
    %p336 = scmp.eq.s32.totalorder %s31, 1
    %p337 = por %p335, %p336
    %p339 = scmp.ne.s32.totalorder %s324, %s338
    %p340 = scmp.eq.s32.totalorder %s31, 0
    %p341 = por %p339, %p340
    %s343 = sadd.s32 %s342, 1
    %p346 = scmp.eq.s32.totalorder %s25, 1
    %p347 = scmp.ne.s32.totalorder %s342, %s344
    %p348 = scmp.eq.s32.totalorder %s25, 0
    %p349 = por %p347, %p348
    %p350 = scmp.ne.s32.totalorder %s342, %s344
    %p351 = scmp.eq.s32.totalorder %s30, 1
    %p352 = por %p350, %p351
    %p353 = scmp.ne.s32.totalorder %s344, %s345
    %p354 = scmp.eq.s32.totalorder %s30, 0
    %p355 = por %p353, %p354
    %p356 = scmp.ne.s32.totalorder %s344, %s345
    %p357 = scmp.eq.s32.totalorder %s31, 1
    %p358 = por %p356, %p357
    %p360 = scmp.ne.s32.totalorder %s345, %s359
    %p361 = scmp.eq.s32.totalorder %s31, 0
    %p362 = por %p360, %p361
    %s364 = sadd.s32 %s363, 1
    %p367 = scmp.eq.s32.totalorder %s25, 1
    %p368 = scmp.ne.s32.totalorder %s363, %s365
    %p369 = scmp.eq.s32.totalorder %s25, 0
    %p370 = por %p368, %p369
    %p371 = scmp.ne.s32.totalorder %s363, %s365
    %p372 = scmp.eq.s32.totalorder %s30, 1
    %p373 = por %p371, %p372
    %p374 = scmp.ne.s32.totalorder %s365, %s366
    %p375 = scmp.eq.s32.totalorder %s30, 0
    %p376 = por %p374, %p375
    %p377 = scmp.ne.s32.totalorder %s365, %s366
    %p378 = scmp.eq.s32.totalorder %s31, 1
    %p379 = por %p377, %p378
    %p381 = scmp.ne.s32.totalorder %s366, %s380
    %p382 = scmp.eq.s32.totalorder %s31, 0
    %p383 = por %p381, %p382
    %s385 = sadd.s32 %s384, 1
    %p388 = scmp.eq.s32.totalorder %s25, 1
    %p389 = scmp.ne.s32.totalorder %s384, %s386
    %p390 = scmp.eq.s32.totalorder %s25, 0
    %p391 = por %p389, %p390
    %p392 = scmp.ne.s32.totalorder %s384, %s386
    %p393 = scmp.eq.s32.totalorder %s30, 1
    %p394 = por %p392, %p393
    %p395 = scmp.ne.s32.totalorder %s386, %s387
    %p396 = scmp.eq.s32.totalorder %s30, 0
    %p397 = por %p395, %p396
    %p398 = scmp.ne.s32.totalorder %s386, %s387
    %p399 = scmp.eq.s32.totalorder %s31, 1
    %p400 = por %p398, %p399
    %p402 = scmp.ne.s32.totalorder %s387, %s401
    %p403 = scmp.eq.s32.totalorder %s31, 0
    %p404 = por %p402, %p403
    %s405 = ssub.s32 %s25, %s32
    %p406 = scmp.eq.s32.totalorder %s405, 0
    %s408 = sadd.s32 %s407, 1
    %s409 = scalar_select %p406, %s407, %s408
    %p412 = pneg %p406
    %p413 = scmp.eq.s32.totalorder %s25, 1
    %p414 = por %p412, %p413
    %p415 = scmp.ne.s32.totalorder %s407, %s410
    %p416 = scmp.eq.s32.totalorder %s25, 0
    %p417 = por %p415, %p416
    %p418 = scmp.ne.s32.totalorder %s407, %s410
    %p419 = scmp.eq.s32.totalorder %s30, 1
    %p420 = por %p418, %p419
    %p421 = scmp.ne.s32.totalorder %s410, %s411
    %p422 = scmp.eq.s32.totalorder %s30, 0
    %p423 = por %p421, %p422
    %p424 = scmp.ne.s32.totalorder %s410, %s411
    %p425 = scmp.eq.s32.totalorder %s31, 1
    %p426 = por %p424, %p425
    %p428 = scmp.ne.s32.totalorder %s411, %s427
    %p429 = scmp.eq.s32.totalorder %s31, 0
    %p430 = por %p428, %p429
    %s431 = ssub.s32 %s25, %s32
    %p432 = scmp.eq.s32.totalorder %s431, 0
    %s434 = sadd.s32 %s433, 1
    %s435 = scalar_select %p432, %s433, %s434
    %p438 = pneg %p432
    %p439 = scmp.eq.s32.totalorder %s25, 1
    %p440 = por %p438, %p439
    %p441 = scmp.ne.s32.totalorder %s433, %s436
    %p442 = scmp.eq.s32.totalorder %s25, 0
    %p443 = por %p441, %p442
    %p444 = scmp.ne.s32.totalorder %s433, %s436
    %p445 = scmp.eq.s32.totalorder %s30, 1
    %p446 = por %p444, %p445
    %p447 = scmp.ne.s32.totalorder %s436, %s437
    %p448 = scmp.eq.s32.totalorder %s30, 0
    %p449 = por %p447, %p448
    %p450 = scmp.ne.s32.totalorder %s436, %s437
    %p451 = scmp.eq.s32.totalorder %s31, 1
    %p452 = por %p450, %p451
    %p454 = scmp.ne.s32.totalorder %s437, %s453
    %p455 = scmp.eq.s32.totalorder %s31, 0
    %p456 = por %p454, %p455
    %p457 = scmp.le.s32.totalorder 1, %s25
    %p458 = scmp.lt.s32.totalorder %s25, 3
    %p459 = pnand %p457, %p458
    %p460 = pneg %p459
    // Predicated region
    $region9: #{mv_record_forward.1} parent=5 // pred_check
      _
    $region10: #{mv_record_forward.1} parent=5 // pred_check_branch
      %462 = sbr.rel (%p459) target = $region12
    $region11: #{mv_record_forward.1} parent=5 // pred_region
      %s463 = ssub.s32 %s25, 1
      // Predicated region
      $region13: #{mv_record_forward.1} parent=11 // pred_check
        %p464 = pneg %p124
      $region14: #{mv_record_forward.1} parent=11 // pred_check_branch
        %466 = sbr.rel (%p464) target = $region16
      $region15: #{mv_record_forward.1} parent=11 // pred_region
        _
      $region16: #{mv_record_forward.1} parent=11 // pred_fallthru
        _
      // Predicated region
      $region17: #{mv_record_forward.1} parent=11 // pred_check
        %p467 = pneg %p145
      $region18: #{mv_record_forward.1} parent=11 // pred_check_branch
        %469 = sbr.rel (%p467) target = $region20
      $region19: #{mv_record_forward.1} parent=11 // pred_region
        _
      $region20: #{mv_record_forward.1} parent=11 // pred_fallthru
        _
      // Predicated region
      $region21: #{mv_record_forward.1} parent=11 // pred_check
        %p470 = pneg %p166
      $region22: #{mv_record_forward.1} parent=11 // pred_check_branch
        %472 = sbr.rel (%p470) target = $region24
      $region23: #{mv_record_forward.1} parent=11 // pred_region
        _
      $region24: #{mv_record_forward.1} parent=11 // pred_fallthru
        _
      // Predicated region
      $region25: #{mv_record_forward.1} parent=11 // pred_check
        %p473 = pneg %p187
      $region26: #{mv_record_forward.1} parent=11 // pred_check_branch
        %475 = sbr.rel (%p473) target = $region28
      $region27: #{mv_record_forward.1} parent=11 // pred_region
        _
      $region28: #{mv_record_forward.1} parent=11 // pred_fallthru
        _
      // Predicated region
      $region29: #{mv_record_forward.1} parent=11 // pred_check
        %p476 = pneg %p208
      $region30: #{mv_record_forward.1} parent=11 // pred_check_branch
        %478 = sbr.rel (%p476) target = $region32
      $region31: #{mv_record_forward.1} parent=11 // pred_region
        _
      $region32: #{mv_record_forward.1} parent=11 // pred_fallthru
        _
      // Predicated region
      $region33: #{mv_record_forward.1} parent=11 // pred_check
        %p479 = pneg %p229
      $region34: #{mv_record_forward.1} parent=11 // pred_check_branch
        %481 = sbr.rel (%p479) target = $region36
      $region35: #{mv_record_forward.1} parent=11 // pred_region
        _
      $region36: #{mv_record_forward.1} parent=11 // pred_fallthru
        _
      // Predicated region
      $region37: #{mv_record_forward.1} parent=11 // pred_check
        %p482 = pneg %p250
      $region38: #{mv_record_forward.1} parent=11 // pred_check_branch
        %484 = sbr.rel (%p482) target = $region40
      $region39: #{mv_record_forward.1} parent=11 // pred_region
        _
      $region40: #{mv_record_forward.1} parent=11 // pred_fallthru
        _
      // Predicated region
      $region41: #{mv_record_forward.1} parent=11 // pred_check
        %p485 = pneg %p271
      $region42: #{mv_record_forward.1} parent=11 // pred_check_branch
        %487 = sbr.rel (%p485) target = $region44
      $region43: #{mv_record_forward.1} parent=11 // pred_region
        _
      $region44: #{mv_record_forward.1} parent=11 // pred_fallthru
        _
      // Predicated region
      $region45: #{mv_record_forward.1} parent=11 // pred_check
        %p488 = pneg %p292
      $region46: #{mv_record_forward.1} parent=11 // pred_check_branch
        %490 = sbr.rel (%p488) target = $region48
      $region47: #{mv_record_forward.1} parent=11 // pred_region
        _
      $region48: #{mv_record_forward.1} parent=11 // pred_fallthru
        _
      // Predicated region
      $region49: #{mv_record_forward.1} parent=11 // pred_check
        %p491 = pneg %p313
      $region50: #{mv_record_forward.1} parent=11 // pred_check_branch
        %493 = sbr.rel (%p491) target = $region52
      $region51: #{mv_record_forward.1} parent=11 // pred_region
        _
      $region52: #{mv_record_forward.1} parent=11 // pred_fallthru
        _
      // Predicated region
      $region53: #{mv_record_forward.1} parent=11 // pred_check
        %p494 = pneg %p334
      $region54: #{mv_record_forward.1} parent=11 // pred_check_branch
        %496 = sbr.rel (%p494) target = $region56
      $region55: #{mv_record_forward.1} parent=11 // pred_region
        _
      $region56: #{mv_record_forward.1} parent=11 // pred_fallthru
        _
      // Predicated region
      $region57: #{mv_record_forward.1} parent=11 // pred_check
        %p497 = pneg %p355
      $region58: #{mv_record_forward.1} parent=11 // pred_check_branch
        %499 = sbr.rel (%p497) target = $region60
      $region59: #{mv_record_forward.1} parent=11 // pred_region
        _
      $region60: #{mv_record_forward.1} parent=11 // pred_fallthru
        _
      // Predicated region
      $region61: #{mv_record_forward.1} parent=11 // pred_check
        %p500 = pneg %p376
      $region62: #{mv_record_forward.1} parent=11 // pred_check_branch
        %502 = sbr.rel (%p500) target = $region64
      $region63: #{mv_record_forward.1} parent=11 // pred_region
        _
      $region64: #{mv_record_forward.1} parent=11 // pred_fallthru
        _
      // Predicated region
      $region65: #{mv_record_forward.1} parent=11 // pred_check
        %p503 = pneg %p397
      $region66: #{mv_record_forward.1} parent=11 // pred_check_branch
        %505 = sbr.rel (%p503) target = $region68
      $region67: #{mv_record_forward.1} parent=11 // pred_region
        _
      $region68: #{mv_record_forward.1} parent=11 // pred_fallthru
        _
    $region12: #{mv_record_forward.1} parent=5 // pred_fallthru
      _
    %p506 = scmp.lt.s32.totalorder %s25, 2
    // Predicated region
    $region69: #{mv_record_forward.1} parent=5 // pred_check
      %p507 = pneg %p506
    $region70: #{mv_record_forward.1} parent=5 // pred_check_branch
      %509 = sbr.rel (%p507) target = $region72
    $region71: #{mv_record_forward.1} parent=5 // pred_region
      // Predicated region
      $region73: #{mv_record_forward.1} parent=71 // pred_check
        %p510 = pneg %p45
      $region74: #{mv_record_forward.1} parent=71 // pred_check_branch
        %512 = sbr.rel (%p510) target = $region76
      $region75: #{mv_record_forward.1} parent=71 // pred_region
        %p513 = scmp.lt.s32.totalorder %s25, 1
        %s514 = scalar_select %p513, %s25, 1
        %s515 = smul.addr %s514, 2
        %s516 = scalar_lea.vmem %s0, %s515
      $region76: #{mv_record_forward.1} parent=71 // pred_fallthru
        _
      // Predicated region
      $region77: #{mv_record_forward.1} parent=71 // pred_check
        %p517 = pneg %p71
      $region78: #{mv_record_forward.1} parent=71 // pred_check_branch
        %519 = sbr.rel (%p517) target = $region80
      $region79: #{mv_record_forward.1} parent=71 // pred_region
        %p520 = scmp.lt.s32.totalorder %s25, 1
        %s521 = scalar_select %p520, %s25, 1
        %s522 = smul.addr %s521, 4
        %s523 = scalar_lea.vmem %s1, %s522
      $region80: #{mv_record_forward.1} parent=71 // pred_fallthru
        _
      // Predicated region
      $region81: #{mv_record_forward.1} parent=71 // pred_check
        %p524 = pneg %p97
      $region82: #{mv_record_forward.1} parent=71 // pred_check_branch
        %526 = sbr.rel (%p524) target = $region84
      $region83: #{mv_record_forward.1} parent=71 // pred_region
        %p527 = scmp.lt.s32.totalorder %s25, 1
        %s528 = scalar_select %p527, %s25, 1
        %s529 = smul.addr %s528, 2
        %s530 = scalar_lea.vmem %s2, %s529
      $region84: #{mv_record_forward.1} parent=71 // pred_fallthru
        _
    $region72: #{mv_record_forward.1} parent=5 // pred_fallthru
      _
    %p531 = scmp.le.s32.totalorder 1, %s25
    %p532 = scmp.lt.s32.totalorder %s25, 3
    %p533 = pnand %p531, %p532
    %p534 = pneg %p533
    // Predicated region
    $region85: #{mv_record_forward.1} parent=5 // pred_check
      _
    $region86: #{mv_record_forward.1} parent=5 // pred_check_branch
      %536 = sbr.rel (%p533) target = $region88
    $region87: #{mv_record_forward.1} parent=5 // pred_region
      %s537 = ssub.s32 %s25, 1
      %p538 = scmp.lt.s32.totalorder %s30, 1
      %s539 = scalar_select %p538, %s30, 1
      %s540 = smul.addr %s539, 2
      %s541 = scalar_lea.vmem %s0, %s540
      %p542 = pneg %p51
      %p543 = pneg %p48
      %p544 = scmp.lt.s32.totalorder %s30, 1
      %s545 = scalar_select %p544, %s30, 1
      %s546 = smul.addr %s545, 4
      %s547 = scalar_lea.vmem %s1, %s546
      %p548 = pneg %p77
      %p549 = pneg %p74
      %p550 = scmp.lt.s32.totalorder %s30, 1
      %s551 = scalar_select %p550, %s30, 1
      %s552 = smul.addr %s551, 2
      %s553 = scalar_lea.vmem %s2, %s552
      %p554 = pneg %p103
      %p555 = pneg %p100
      %p556 = pneg %p124
      %p557 = pneg %p121
      %p558 = pneg %p145
      %p559 = pneg %p142
      %p560 = pneg %p166
      %p561 = pneg %p163
      %p562 = pneg %p187
      %p563 = pneg %p184
      %p564 = pneg %p208
      %p565 = pneg %p205
      %p566 = pneg %p229
      %p567 = pneg %p226
      %p568 = pneg %p250
      %p569 = pneg %p247
      %p570 = pneg %p271
      %p571 = pneg %p268
      %p572 = pneg %p292
      %p573 = pneg %p289
      %p574 = pneg %p313
      %p575 = pneg %p310
      %p576 = pneg %p334
      %p577 = pneg %p331
      %p578 = pneg %p355
      %p579 = pneg %p352
      %p580 = pneg %p376
      %p581 = pneg %p373
      %p582 = pneg %p397
      %p583 = pneg %p394
      %p584 = pneg %p423
      %p585 = pneg %p420
      %p586 = scmp.lt.s32.totalorder %s30, 1
      %s587 = scalar_select %p586, %s30, 1
      %s588 = smul.addr %s587, 2
      %s589 = smul.addr %s588, 4
      %s590 = scalar_lea.vmem %s17, %s589
      %p591 = pneg %p449
      %p592 = pneg %p446
      %p593 = scmp.lt.s32.totalorder %s30, 1
      %s594 = scalar_select %p593, %s30, 1
      %s595 = smul.addr %s594, 4
      %s596 = smul.addr %s595, 4
      %s597 = scalar_lea.vmem %s18, %s596
      %p598 = scmp.lt.s32.totalorder %s30, 1
      %s599 = scalar_select %p598, %s30, 1
      %s600 = smul.addr %s599, 2
      %s601 = scalar_lea.vmem %s0, %s600
      %p602 = scmp.lt.s32.totalorder %s30, 1
      %s603 = scalar_select %p602, %s30, 1
      %s604 = smul.addr %s603, 4
      %s605 = scalar_lea.vmem %s1, %s604
      %p606 = scmp.lt.s32.totalorder %s30, 1
      %s607 = scalar_select %p606, %s30, 1
      %s608 = smul.addr %s607, 2
      %s609 = scalar_lea.vmem %s2, %s608
      %p610 = scmp.lt.s32.totalorder %s30, 1
      %s611 = scalar_select %p610, %s30, 1
      %s612 = smul.addr %s611, 2
      %s613 = smul.addr %s612, 4
      %s614 = scalar_lea.vmem %s17, %s613
      %p615 = scmp.lt.s32.totalorder %s30, 1
      %s616 = scalar_select %p615, %s30, 1
      %s617 = smul.addr %s616, 4
      %s618 = smul.addr %s617, 4
      %s619 = scalar_lea.vmem %s18, %s618
      %v621 = vld [vmem:[%s601] sm:$0x3]
      %v622 = vld [vmem:[%s3] sm:$0xf]
      %v623 = vunpack.c.l.bf16 %v622
      %625 = vset.pattern.permute.xlu0 0
      %626 = vperm.xlu0 %625, %v623
      %v627 = vpop.permute.xlu0 %626
      %v630 = vlaneseq
      %v631 = vshrl.u32 %v630, 7
      %v632 = vsub.s32 0, %v631
      %v633 = vrot.slane %v621, %v632
      %v634 = vlaneseq
      %v635 = vshrl.u32 %v634, 7
      %v636 = vsub.s32 1, %v635
      %v637 = vrot.slane %v621, %v636
      %v640 = vmul.f32 %v627, %v633
      %v641 = vmul.f32 %v627, %v637
      %v642 = vld [vmem:[%s4] sm:$0xff]
      %644 = vset.pattern.permute.xlu0 0
      %645 = vperm.xlu0 %644, %v642
      %v646 = vpop.permute.xlu0 %645
      %v648 = vadd.f32 %v640, %v646
      %v649 = vadd.f32 %v641, %v646
      %v650 = vmax.f32 %v648, 0.0
      %v651 = vmax.f32 %v649, 0.0
      %v652 = vpack.c.bf16 %v650, %v650
      %v653 = vpack.c.bf16 %v651, %v651
      %v654 = vld [vmem:[%s5] sm:$0xf]
      %v655 = vld [vmem:[%s5 + $0x4] sm:$0xf]
      %v656 = vld [vmem:[%s5 + $0x8] sm:$0xf]
      %v657 = vld [vmem:[%s5 + $0xc] sm:$0xf]
      %v658 = vld [vmem:[%s5 + $0x10] sm:$0xf]
      %v659 = vld [vmem:[%s5 + $0x14] sm:$0xf]
      %v660 = vld [vmem:[%s5 + $0x18] sm:$0xf]
      %v661 = vld [vmem:[%s5 + $0x1c] sm:$0xf]
      %v662 = vld [vmem:[%s5 + $0x20] sm:$0xf]
      %v663 = vld [vmem:[%s5 + $0x24] sm:$0xf]
      %v664 = vld [vmem:[%s5 + $0x28] sm:$0xf]
      %v665 = vld [vmem:[%s5 + $0x2c] sm:$0xf]
      %v666 = vld [vmem:[%s5 + $0x30] sm:$0xf]
      %v667 = vld [vmem:[%s5 + $0x34] sm:$0xf]
      %v668 = vld [vmem:[%s5 + $0x38] sm:$0xf]
      %v669 = vld [vmem:[%s5 + $0x3c] sm:$0xf]
      %v670 = vld [vmem:[%s5 + $0x40] sm:$0xf]
      %v671 = vld [vmem:[%s5 + $0x44] sm:$0xf]
      %v672 = vld [vmem:[%s5 + $0x48] sm:$0xf]
      %v673 = vld [vmem:[%s5 + $0x4c] sm:$0xf]
      %v674 = vld [vmem:[%s5 + $0x50] sm:$0xf]
      %v675 = vld [vmem:[%s5 + $0x54] sm:$0xf]
      %v676 = vld [vmem:[%s5 + $0x58] sm:$0xf]
      %v677 = vld [vmem:[%s5 + $0x5c] sm:$0xf]
      %v678 = vld [vmem:[%s5 + $0x60] sm:$0xf]
      %v679 = vld [vmem:[%s5 + $0x64] sm:$0xf]
      %v680 = vld [vmem:[%s5 + $0x68] sm:$0xf]
      %v681 = vld [vmem:[%s5 + $0x6c] sm:$0xf]
      %v682 = vld [vmem:[%s5 + $0x70] sm:$0xf]
      %v683 = vld [vmem:[%s5 + $0x74] sm:$0xf]
      %v684 = vld [vmem:[%s5 + $0x78] sm:$0xf]
      %v685 = vld [vmem:[%s5 + $0x7c] sm:$0xf]
      %v718 = vunpack.c.l.b16 %v654
      %v719 = vunpack.c.l.b16 %v655
      %v720 = vunpack.c.l.b16 %v656
      %v721 = vunpack.c.l.b16 %v657
      %v722 = vunpack.c.l.b16 %v658
      %v723 = vunpack.c.l.b16 %v659
      %v724 = vunpack.c.l.b16 %v660
      %v725 = vunpack.c.l.b16 %v661
      %v726 = vunpack.c.l.b16 %v662
      %v727 = vunpack.c.l.b16 %v663
      %v728 = vunpack.c.l.b16 %v664
      %v729 = vunpack.c.l.b16 %v665
      %v730 = vunpack.c.l.b16 %v666
      %v731 = vunpack.c.l.b16 %v667
      %v732 = vunpack.c.l.b16 %v668
      %v733 = vunpack.c.l.b16 %v669
      %v734 = vunpack.c.l.b16 %v670
      %v735 = vunpack.c.l.b16 %v671
      %v736 = vunpack.c.l.b16 %v672
      %v737 = vunpack.c.l.b16 %v673
      %v738 = vunpack.c.l.b16 %v674
      %v739 = vunpack.c.l.b16 %v675
      %v740 = vunpack.c.l.b16 %v676
      %v741 = vunpack.c.l.b16 %v677
      %v742 = vunpack.c.l.b16 %v678
      %v743 = vunpack.c.l.b16 %v679
      %v744 = vunpack.c.l.b16 %v680
      %v745 = vunpack.c.l.b16 %v681
      %v746 = vunpack.c.l.b16 %v682
      %v747 = vunpack.c.l.b16 %v683
      %v748 = vunpack.c.l.b16 %v684
      %v749 = vunpack.c.l.b16 %v685
      %v750 = vpack.c.b16 %v719, %v718
      %v751 = vpack.c.b16 %v721, %v720
      %v752 = vpack.c.b16 %v723, %v722
      %v753 = vpack.c.b16 %v725, %v724
      %v754 = vpack.c.b16 %v727, %v726
      %v755 = vpack.c.b16 %v729, %v728
      %v756 = vpack.c.b16 %v731, %v730
      %v757 = vpack.c.b16 %v733, %v732
      %v758 = vpack.c.b16 %v735, %v734
      %v759 = vpack.c.b16 %v737, %v736
      %v760 = vpack.c.b16 %v739, %v738
      %v761 = vpack.c.b16 %v741, %v740
      %v762 = vpack.c.b16 %v743, %v742
      %v763 = vpack.c.b16 %v745, %v744
      %v764 = vpack.c.b16 %v747, %v746
      %v765 = vpack.c.b16 %v749, %v748
      %782 = vmatprep.subr.bf16.mxu0 0
      %783 = vmatpush1.bf16.msra.mxu0 %v750
      %784 = vmatprep.subr.bf16.mxu0 0
      %785 = vmatpush1.bf16.msra.mxu0 %v751
      %786 = vmatprep.subr.bf16.mxu0 0
      %787 = vmatpush1.bf16.msra.mxu0 %v752
      %788 = vmatprep.subr.bf16.mxu0 0
      %789 = vmatpush1.bf16.msra.mxu0 %v753
      %790 = vmatprep.subr.bf16.mxu0 0
      %791 = vmatpush1.bf16.msra.mxu0 %v754
      %792 = vmatprep.subr.bf16.mxu0 0
      %793 = vmatpush1.bf16.msra.mxu0 %v755
      %794 = vmatprep.subr.bf16.mxu0 0
      %795 = vmatpush1.bf16.msra.mxu0 %v756
      %796 = vmatprep.subr.bf16.mxu0 0
      %797 = vmatpush1.bf16.msra.mxu0 %v757
      %798 = vmatprep.subr.bf16.mxu0 0
      %799 = vmatpush1.bf16.msra.mxu0 %v758
      %800 = vmatprep.subr.bf16.mxu0 0
      %801 = vmatpush1.bf16.msra.mxu0 %v759
      %802 = vmatprep.subr.bf16.mxu0 0
      %803 = vmatpush1.bf16.msra.mxu0 %v760
      %804 = vmatprep.subr.bf16.mxu0 0
      %805 = vmatpush1.bf16.msra.mxu0 %v761
      %806 = vmatprep.subr.bf16.mxu0 0
      %807 = vmatpush1.bf16.msra.mxu0 %v762
      %808 = vmatprep.subr.bf16.mxu0 0
      %809 = vmatpush1.bf16.msra.mxu0 %v763
      %810 = vmatprep.subr.bf16.mxu0 0
      %811 = vmatpush1.bf16.msra.mxu0 %v764
      %812 = vmatprep.subr.bf16.mxu0 0
      %813 = vmatpush1.bf16.msra.mxu0 %v765
      %814 = vmatprep.mubr.bf16.mxu0 %v653
      %815 = vmatmul.mubr.bf16.gmra.mrb[0].mxu0 %v652
      %v816 = vpop.f32.mrb[0].mxu0
      %v817 = vadd.f32 0.0, %v816
      %v818 = vpop.f32.mrb[0].mxu0
      %v819 = vpop.f32.mrb[0].mxu0
      %v820 = vpop.f32.mrb[0].mxu0
      %821 = vdwg.mxu0
      %v822 = vld [vmem:[%s3 + $0x4] sm:$0xf]
      %v823 = vld [vmem:[%s3 + $0x8] sm:$0xf]
      %v824 = vpack.c.bf16 %v817, %v817
      %v825 = vld [vmem:[%s4 + $0x8] sm:$0xff]
      %v826 = vld [vmem:[%s4 + $0x10] sm:$0xff]
      %828 = vset.pattern.permute.xlu0 0
      %829 = vperm.xlu0 %828, %v825
      %v830 = vpop.permute.xlu0 %829
      %833 = vset.pattern.permute.xlu0 0
      %834 = vperm.xlu0 %833, %v826
      %v835 = vpop.permute.xlu0 %834
      %v839 = vunpack.c.l.b16 %v822
      %v840 = vunpack.c.l.b16 %v823
      %v841 = vpack.c.b16 %v840, %v839
      %vm842 = vcmask 64512
      %v844 = vsel %vm842, %v841, 0
      %vm846 = vcmask 1043456
      %v848 = vsel %vm846, %v824, 0
      %850 = vmatprep.subr.bf16.mxu0 0
      %851 = vmatpush1.bf16.msra.mxu0 %v848
      %852 = vmatprep.subr.bf16.mxu0 0
      %853 = vmatpush1.bf16.msra.mxu0 0
      %854 = vmatprep.subr.bf16.mxu0 0
      %855 = vmatpush1.bf16.msra.mxu0 0
      %856 = vmatprep.subr.bf16.mxu0 0
      %857 = vmatpush1.bf16.msra.mxu0 0
      %858 = vmatprep.subr.bf16.mxu0 0
      %859 = vmatpush1.bf16.msra.mxu0 0
      %860 = vmatprep.subr.bf16.mxu0 0
      %861 = vmatpush1.bf16.msra.mxu0 0
      %862 = vmatprep.subr.bf16.mxu0 0
      %863 = vmatpush1.bf16.msra.mxu0 0
      %864 = vmatprep.subr.bf16.mxu0 0
      %865 = vmatpush1.bf16.msra.mxu0 0
      %866 = vmatprep.subr.bf16.mxu0 0
      %867 = vmatpush1.bf16.msra.mxu0 0
      %868 = vmatprep.subr.bf16.mxu0 0
      %869 = vmatpush1.bf16.msra.mxu0 0
      %870 = vmatprep.subr.bf16.mxu0 0
      %871 = vmatpush1.bf16.msra.mxu0 0
      %872 = vmatprep.subr.bf16.mxu0 0
      %873 = vmatpush1.bf16.msra.mxu0 0
      %874 = vmatprep.subr.bf16.mxu0 0
      %875 = vmatpush1.bf16.msra.mxu0 0
      %876 = vmatprep.subr.bf16.mxu0 0
      %877 = vmatpush1.bf16.msra.mxu0 0
      %878 = vmatprep.subr.bf16.mxu0 0
      %879 = vmatpush1.bf16.msra.mxu0 0
      %880 = vmatprep.subr.bf16.mxu0 0
      %881 = vmatpush1.bf16.msra.mxu0 0
      %882 = vmatprep.mubr.bf16.mxu0 0
      %883 = vmatmul.mubr.bf16.gmra.mrb[0].mxu0 %v844
      %v884 = vpop.f32.mrb[0].mxu0
      %v885 = vadd.f32 %v830, %v884
      %v886 = vpop.f32.mrb[0].mxu0
      %v887 = vpop.f32.mrb[0].mxu0
      %v888 = vadd.f32 %v835, %v887
      %v889 = vpop.f32.mrb[0].mxu0
      %890 = vdwg.mxu0
      %v891 = vmax.f32 %v885, 0.0
      %v892 = vmax.f32 %v888, 0.0
      %v893 = vpack.c.bf16 %v892, %v891
      %v894 = vld [vmem:[%s7] sm:$0xf]
      %v895 = vld [vmem:[%s7 + $0x4] sm:$0xf]
      %v896 = vld [vmem:[%s7 + $0x8] sm:$0xf]
      %v897 = vld [vmem:[%s7 + $0xc] sm:$0xf]
      %v898 = vld [vmem:[%s7 + $0x10] sm:$0xf]
      %v899 = vld [vmem:[%s7 + $0x14] sm:$0xf]
      %v900 = vld [vmem:[%s7 + $0x18] sm:$0xf]
      %v901 = vld [vmem:[%s7 + $0x1c] sm:$0xf]
      %v910 = vunpack.c.l.b16 %v894
      %v911 = vunpack.c.l.b16 %v895
      %v912 = vunpack.c.l.b16 %v896
      %v913 = vunpack.c.l.b16 %v897
      %v914 = vunpack.c.l.b16 %v898
      %v915 = vunpack.c.l.b16 %v899
      %v916 = vunpack.c.l.b16 %v900
      %v917 = vunpack.c.l.b16 %v901
      %v918 = vpack.c.b16 %v911, %v910
      %v919 = vpack.c.b16 %v913, %v912
      %v920 = vpack.c.b16 %v915, %v914
      %v921 = vpack.c.b16 %v917, %v916
      %vm926 = vcmask 523264
      %v928 = vsel %vm926, %v893, 0
      %930 = vmatprep.subr.bf16.mxu0 0
      %931 = vmatpush1.bf16.msra.mxu0 %v918
      %932 = vmatprep.subr.bf16.mxu0 0
      %933 = vmatpush1.bf16.msra.mxu0 %v919
      %934 = vmatprep.subr.bf16.mxu0 0
      %935 = vmatpush1.bf16.msra.mxu0 %v920
      %936 = vmatprep.subr.bf16.mxu0 0
      %937 = vmatpush1.bf16.msra.mxu0 %v921
      %938 = vmatprep.subr.bf16.mxu0 0
      %939 = vmatpush1.bf16.msra.mxu0 0
      %940 = vmatprep.subr.bf16.mxu0 0
      %941 = vmatpush1.bf16.msra.mxu0 0
      %942 = vmatprep.subr.bf16.mxu0 0
      %943 = vmatpush1.bf16.msra.mxu0 0
      %944 = vmatprep.subr.bf16.mxu0 0
      %945 = vmatpush1.bf16.msra.mxu0 0
      %946 = vmatprep.subr.bf16.mxu0 0
      %947 = vmatpush1.bf16.msra.mxu0 0
      %948 = vmatprep.subr.bf16.mxu0 0
      %949 = vmatpush1.bf16.msra.mxu0 0
      %950 = vmatprep.subr.bf16.mxu0 0
      %951 = vmatpush1.bf16.msra.mxu0 0
      %952 = vmatprep.subr.bf16.mxu0 0
      %953 = vmatpush1.bf16.msra.mxu0 0
      %954 = vmatprep.subr.bf16.mxu0 0
      %955 = vmatpush1.bf16.msra.mxu0 0
      %956 = vmatprep.subr.bf16.mxu0 0
      %957 = vmatpush1.bf16.msra.mxu0 0
      %958 = vmatprep.subr.bf16.mxu0 0
      %959 = vmatpush1.bf16.msra.mxu0 0
      %960 = vmatprep.subr.bf16.mxu0 0
      %961 = vmatpush1.bf16.msra.mxu0 0
      %962 = vmatprep.mubr.bf16.mxu0 0
      %963 = vmatmul.mubr.bf16.gmra.mrb[0].mxu0 %v928
      %v964 = vpop.f32.mrb[0].mxu0
      %v965 = vadd.f32 0.0, %v964
      %v966 = vpop.f32.mrb[0].mxu0
      %v967 = vpop.f32.mrb[0].mxu0
      %v968 = vadd.f32 0.0, %v967
      %v969 = vpop.f32.mrb[0].mxu0
      %970 = vdwg.mxu0
      %v971 = vld [vmem:[%s3 + $0xc] sm:$0xf]
      %v972 = vld [vmem:[%s3 + $0x10] sm:$0xf]
      %v973 = vld [vmem:[%s3 + $0x14] sm:$0xf]
      %v974 = vld [vmem:[%s3 + $0x18] sm:$0xf]
      %v975 = vpack.c.bf16 %v968, %v965
      %v976 = vld [vmem:[%s4 + $0x18] sm:$0xff]
      %v977 = vld [vmem:[%s4 + $0x20] sm:$0xff]
      %v978 = vld [vmem:[%s4 + $0x28] sm:$0xff]
      %v979 = vld [vmem:[%s4 + $0x30] sm:$0xff]
      %981 = vset.pattern.permute.xlu0 0
      %982 = vperm.xlu0 %981, %v976
      %v983 = vpop.permute.xlu0 %982
      %986 = vset.pattern.permute.xlu0 0
      %987 = vperm.xlu0 %986, %v977
      %v988 = vpop.permute.xlu0 %987
      %991 = vset.pattern.permute.xlu0 0
      %992 = vperm.xlu0 %991, %v978
      %v993 = vpop.permute.xlu0 %992
      %996 = vset.pattern.permute.xlu0 0
      %997 = vperm.xlu0 %996, %v979
      %v998 = vpop.permute.xlu0 %997
      %v1004 = vunpack.c.l.b16 %v971
      %v1005 = vunpack.c.l.b16 %v972
      %v1006 = vunpack.c.l.b16 %v973
      %v1007 = vunpack.c.l.b16 %v974
      %v1008 = vpack.c.b16 %v1005, %v1004
      %v1009 = vpack.c.b16 %v1007, %v1006
      %vm1010 = vcmask 130048
      %v1012 = vsel %vm1010, %v1008, 0
      %v1015 = vsel %vm1010, %v1009, 0
      %1017 = vmatprep.subr.bf16.mxu0 0
      %1018 = vmatpush1.bf16.msra.mxu0 %v975
      %1019 = vmatprep.subr.bf16.mxu0 0
      %1020 = vmatpush1.bf16.msra.mxu0 0
      %1021 = vmatprep.subr.bf16.mxu0 0
      %1022 = vmatpush1.bf16.msra.mxu0 0
      %1023 = vmatprep.subr.bf16.mxu0 0
      %1024 = vmatpush1.bf16.msra.mxu0 0
      %1025 = vmatprep.subr.bf16.mxu0 0
      %1026 = vmatpush1.bf16.msra.mxu0 0
      %1027 = vmatprep.subr.bf16.mxu0 0
      %1028 = vmatpush1.bf16.msra.mxu0 0
      %1029 = vmatprep.subr.bf16.mxu0 0
      %1030 = vmatpush1.bf16.msra.mxu0 0
      %1031 = vmatprep.subr.bf16.mxu0 0
      %1032 = vmatpush1.bf16.msra.mxu0 0
      %1033 = vmatprep.subr.bf16.mxu0 0
      %1034 = vmatpush1.bf16.msra.mxu0 0
      %1035 = vmatprep.subr.bf16.mxu0 0
      %1036 = vmatpush1.bf16.msra.mxu0 0
      %1037 = vmatprep.subr.bf16.mxu0 0
      %1038 = vmatpush1.bf16.msra.mxu0 0
      %1039 = vmatprep.subr.bf16.mxu0 0
      %1040 = vmatpush1.bf16.msra.mxu0 0
      %1041 = vmatprep.subr.bf16.mxu0 0
      %1042 = vmatpush1.bf16.msra.mxu0 0
      %1043 = vmatprep.subr.bf16.mxu0 0
      %1044 = vmatpush1.bf16.msra.mxu0 0
      %1045 = vmatprep.subr.bf16.mxu0 0
      %1046 = vmatpush1.bf16.msra.mxu0 0
      %1047 = vmatprep.subr.bf16.mxu0 0
      %1048 = vmatpush1.bf16.msra.mxu0 0
      %1049 = vmatprep.mubr.bf16.mxu0 0
      %1050 = vmatmul.mubr.bf16.gmra.mrb[0].mxu0 %v1012
      %v1051 = vpop.f32.mrb[0].mxu0
      %v1052 = vadd.f32 %v983, %v1051
      %v1053 = vpop.f32.mrb[0].mxu0
      %v1054 = vpop.f32.mrb[0].mxu0
      %v1055 = vadd.f32 %v988, %v1054
      %v1056 = vpop.f32.mrb[0].mxu0
      %1057 = vmatprep.mubr.bf16.mxu0 0
      %1058 = vmatmul.mubr.bf16.gmra.mrb[0].mxu0 %v1015
      %v1059 = vpop.f32.mrb[0].mxu0
      %v1060 = vadd.f32 %v993, %v1059
      %v1061 = vpop.f32.mrb[0].mxu0
      %v1062 = vpop.f32.mrb[0].mxu0
      %v1063 = vadd.f32 %v998, %v1062
      %v1064 = vpop.f32.mrb[0].mxu0
      %1065 = vdwg.mxu0
      %v1066 = vmax.f32 %v1052, 0.0
      %v1067 = vmax.f32 %v1055, 0.0
      %v1068 = vmax.f32 %v1060, 0.0
      %v1069 = vmax.f32 %v1063, 0.0
      %v1070 = vpack.c.bf16 %v1067, %v1066
      %v1071 = vpack.c.bf16 %v1069, %v1068
      %v1072 = vld [vmem:[%s9] sm:$0xf]
      %v1073 = vld [vmem:[%s9 + $0x4] sm:$0xf]
      %v1076 = vunpack.c.l.b16 %v1072
      %v1077 = vunpack.c.l.b16 %v1073
      %v1078 = vpack.c.b16 %v1077, %v1076
      %v1081 = vsel %vm1010, %v1070, 0
      %v1084 = vsel %vm1010, %v1071, 0
      %1086 = vmatprep.subr.bf16.mxu0 0
      %1087 = vmatpush1.bf16.msra.mxu0 %v1078
      %1088 = vmatprep.subr.bf16.mxu0 0
      %1089 = vmatpush1.bf16.msra.mxu0 0
      %1090 = vmatprep.subr.bf16.mxu0 0
      %1091 = vmatpush1.bf16.msra.mxu0 0
      %1092 = vmatprep.subr.bf16.mxu0 0
      %1093 = vmatpush1.bf16.msra.mxu0 0
      %1094 = vmatprep.subr.bf16.mxu0 0
      %1095 = vmatpush1.bf16.msra.mxu0 0
      %1096 = vmatprep.subr.bf16.mxu0 0
      %1097 = vmatpush1.bf16.msra.mxu0 0
      %1098 = vmatprep.subr.bf16.mxu0 0
      %1099 = vmatpush1.bf16.msra.mxu0 0
      %1100 = vmatprep.subr.bf16.mxu0 0
      %1101 = vmatpush1.bf16.msra.mxu0 0
      %1102 = vmatprep.subr.bf16.mxu0 0
      %1103 = vmatpush1.bf16.msra.mxu0 0
      %1104 = vmatprep.subr.bf16.mxu0 0
      %1105 = vmatpush1.bf16.msra.mxu0 0
      %1106 = vmatprep.subr.bf16.mxu0 0
      %1107 = vmatpush1.bf16.msra.mxu0 0
      %1108 = vmatprep.subr.bf16.mxu0 0
      %1109 = vmatpush1.bf16.msra.mxu0 0
      %1110 = vmatprep.subr.bf16.mxu0 0
      %1111 = vmatpush1.bf16.msra.mxu0 0
      %1112 = vmatprep.subr.bf16.mxu0 0
      %1113 = vmatpush1.bf16.msra.mxu0 0
      %1114 = vmatprep.subr.bf16.mxu0 0
      %1115 = vmatpush1.bf16.msra.mxu0 0
      %1116 = vmatprep.subr.bf16.mxu0 0
      %1117 = vmatpush1.bf16.msra.mxu0 0
      %1118 = vmatprep.mubr.bf16.mxu0 0
      %1119 = vmatmul.mubr.bf16.gmra.mrb[0].mxu0 %v1081
      %v1120 = vpop.f32.mrb[0].mxu0
      %v1121 = vadd.f32 0.0, %v1120
      %v1122 = vpop.f32.mrb[0].mxu0
      %v1123 = vpop.f32.mrb[0].mxu0
      %v1124 = vadd.f32 0.0, %v1123
      %v1125 = vpop.f32.mrb[0].mxu0
      %1126 = vmatprep.mubr.bf16.mxu0 0
      %1127 = vmatmul.mubr.bf16.gmra.mrb[0].mxu0 %v1084
      %v1128 = vpop.f32.mrb[0].mxu0
      %v1129 = vadd.f32 0.0, %v1128
      %v1130 = vpop.f32.mrb[0].mxu0
      %v1131 = vpop.f32.mrb[0].mxu0
      %v1132 = vadd.f32 0.0, %v1131
      %v1133 = vpop.f32.mrb[0].mxu0
      %1134 = vdwg.mxu0
      %v1135 = vld [vmem:[%s605] sm:$0xf]
      %v1136 = vld [vmem:[%s3 + $0x1c] sm:$0xf]
      %v1137 = vunpack.c.l.bf16 %v1136
      %1139 = vset.pattern.permute.xlu0 0
      %1140 = vperm.xlu0 %1139, %v1137
      %v1141 = vpop.permute.xlu0 %1140
      %v1144 = vlaneseq
      %v1145 = vshrl.u32 %v1144, 7
      %v1146 = vsub.s32 0, %v1145
      %v1147 = vrot.slane %v1135, %v1146
      %v1148 = vlaneseq
      %v1149 = vshrl.u32 %v1148, 7
      %v1150 = vsub.s32 1, %v1149
      %v1151 = vrot.slane %v1135, %v1150
      %v1152 = vlaneseq
      %v1153 = vshrl.u32 %v1152, 7
      %v1154 = vsub.s32 2, %v1153
      %v1155 = vrot.slane %v1135, %v1154
      %v1156 = vlaneseq
      %v1157 = vshrl.u32 %v1156, 7
      %v1158 = vsub.s32 3, %v1157
      %v1159 = vrot.slane %v1135, %v1158
      %v1164 = vmul.f32 %v1141, %v1147
      %v1165 = vmul.f32 %v1141, %v1151
      %v1166 = vmul.f32 %v1141, %v1155
      %v1167 = vmul.f32 %v1141, %v1159
      %v1168 = vld [vmem:[%s4 + $0x38] sm:$0xff]
      %1170 = vset.pattern.permute.xlu0 0
      %1171 = vperm.xlu0 %1170, %v1168
      %v1172 = vpop.permute.xlu0 %1171
      %v1174 = vadd.f32 %v1164, %v1172
      %v1175 = vadd.f32 %v1165, %v1172
      %v1176 = vadd.f32 %v1166, %v1172
      %v1177 = vadd.f32 %v1167, %v1172
      %v1178 = vmax.f32 %v1174, 0.0
      %v1179 = vmax.f32 %v1175, 0.0
      %v1180 = vmax.f32 %v1176, 0.0
      %v1181 = vmax.f32 %v1177, 0.0
      %v1182 = vpack.c.bf16 %v1178, %v1178
      %v1183 = vpack.c.bf16 %v1179, %v1179
      %v1184 = vpack.c.bf16 %v1180, %v1180
      %v1185 = vpack.c.bf16 %v1181, %v1181
      %v1186 = vld [vmem:[%s6] sm:$0xf]
      %v1187 = vld [vmem:[%s6 + $0x4] sm:$0xf]
      %v1188 = vld [vmem:[%s6 + $0x8] sm:$0xf]
      %v1189 = vld [vmem:[%s6 + $0xc] sm:$0xf]
      %v1190 = vld [vmem:[%s6 + $0x10] sm:$0xf]
      %v1191 = vld [vmem:[%s6 + $0x14] sm:$0xf]
      %v1192 = vld [vmem:[%s6 + $0x18] sm:$0xf]
      %v1193 = vld [vmem:[%s6 + $0x1c] sm:$0xf]
      %v1194 = vld [vmem:[%s6 + $0x20] sm:$0xf]
      %v1195 = vld [vmem:[%s6 + $0x24] sm:$0xf]
      %v1196 = vld [vmem:[%s6 + $0x28] sm:$0xf]
      %v1197 = vld [vmem:[%s6 + $0x2c] sm:$0xf]
      %v1198 = vld [vmem:[%s6 + $0x30] sm:$0xf]
      %v1199 = vld [vmem:[%s6 + $0x34] sm:$0xf]
      %v1200 = vld [vmem:[%s6 + $0x38] sm:$0xf]
      %v1201 = vld [vmem:[%s6 + $0x3c] sm:$0xf]
      %v1202 = vld [vmem:[%s6 + $0x40] sm:$0xf]
      %v1203 = vld [vmem:[%s6 + $0x44] sm:$0xf]
      %v1204 = vld [vmem:[%s6 + $0x48] sm:$0xf]
      %v1205 = vld [vmem:[%s6 + $0x4c] sm:$0xf]
      %v1206 = vld [vmem:[%s6 + $0x50] sm:$0xf]
      %v1207 = vld [vmem:[%s6 + $0x54] sm:$0xf]
      %v1208 = vld [vmem:[%s6 + $0x58] sm:$0xf]
      %v1209 = vld [vmem:[%s6 + $0x5c] sm:$0xf]
      %v1210 = vld [vmem:[%s6 + $0x60] sm:$0xf]
      %v1211 = vld [vmem:[%s6 + $0x64] sm:$0xf]
      %v1212 = vld [vmem:[%s6 + $0x68] sm:$0xf]
      %v1213 = vld [vmem:[%s6 + $0x6c] sm:$0xf]
      %v1214 = vld [vmem:[%s6 + $0x70] sm:$0xf]
      %v1215 = vld [vmem:[%s6 + $0x74] sm:$0xf]
      %v1216 = vld [vmem:[%s6 + $0x78] sm:$0xf]
      %v1217 = vld [vmem:[%s6 + $0x7c] sm:$0xf]
      %v1218 = vld [vmem:[%s6 + $0x80] sm:$0xf]
      %v1219 = vld [vmem:[%s6 + $0x84] sm:$0xf]
      %v1220 = vld [vmem:[%s6 + $0x88] sm:$0xf]
      %v1221 = vld [vmem:[%s6 + $0x8c] sm:$0xf]
      %v1222 = vld [vmem:[%s6 + $0x90] sm:$0xf]
      %v1223 = vld [vmem:[%s6 + $0x94] sm:$0xf]
      %v1224 = vld [vmem:[%s6 + $0x98] sm:$0xf]
      %v1225 = vld [vmem:[%s6 + $0x9c] sm:$0xf]
      %v1226 = vld [vmem:[%s6 + $0xa0] sm:$0xf]
      %v1227 = vld [vmem:[%s6 + $0xa4] sm:$0xf]
      %v1228 = vld [vmem:[%s6 + $0xa8] sm:$0xf]
      %v1229 = vld [vmem:[%s6 + $0xac] sm:$0xf]
      %v1230 = vld [vmem:[%s6 + $0xb0] sm:$0xf]
      %v1231 = vld [vmem:[%s6 + $0xb4] sm:$0xf]
      %v1232 = vld [vmem:[%s6 + $0xb8] sm:$0xf]
      %v1233 = vld [vmem:[%s6 + $0xbc] sm:$0xf]
      %v1234 = vld [vmem:[%s6 + $0xc0] sm:$0xf]
      %v1235 = vld [vmem:[%s6 + $0xc4] sm:$0xf]
      %v1236 = vld [vmem:[%s6 + $0xc8] sm:$0xf]
      %v1237 = vld [vmem:[%s6 + $0xcc] sm:$0xf]
      %v1238 = vld [vmem:[%s6 + $0xd0] sm:$0xf]
      %v1239 = vld [vmem:[%s6 + $0xd4] sm:$0xf]
      %v1240 = vld [vmem:[%s6 + $0xd8] sm:$0xf]
      %v1241 = vld [vmem:[%s6 + $0xdc] sm:$0xf]
      %v1242 = vld [vmem:[%s6 + $0xe0] sm:$0xf]
      %v1243 = vld [vmem:[%s6 + $0xe4] sm:$0xf]
      %v1244 = vld [vmem:[%s6 + $0xe8] sm:$0xf]
      %v1245 = vld [vmem:[%s6 + $0xec] sm:$0xf]
      %v1246 = vld [vmem:[%s6 + $0xf0] sm:$0xf]
      %v1247 = vld [vmem:[%s6 + $0xf4] sm:$0xf]
      %v1248 = vld [vmem:[%s6 + $0xf8] sm:$0xf]
      %v1249 = vld [vmem:[%s6 + $0xfc] sm:$0xf]
      %v1314 = vunpack.c.l.b16 %v1186
      %v1315 = vunpack.c.l.b16 %v1187
      %v1316 = vunpack.c.l.b16 %v1188
      %v1317 = vunpack.c.l.b16 %v1189
      %v1318 = vunpack.c.l.b16 %v1190
      %v1319 = vunpack.c.l.b16 %v1191
      %v1320 = vunpack.c.l.b16 %v1192
      %v1321 = vunpack.c.l.b16 %v1193
      %v1322 = vunpack.c.l.b16 %v1194
      %v1323 = vunpack.c.l.b16 %v1195
      %v1324 = vunpack.c.l.b16 %v1196
      %v1325 = vunpack.c.l.b16 %v1197
      %v1326 = vunpack.c.l.b16 %v1198
      %v1327 = vunpack.c.l.b16 %v1199
      %v1328 = vunpack.c.l.b16 %v1200
      %v1329 = vunpack.c.l.b16 %v1201
      %v1330 = vunpack.c.l.b16 %v1202
      %v1331 = vunpack.c.l.b16 %v1203
      %v1332 = vunpack.c.l.b16 %v1204
      %v1333 = vunpack.c.l.b16 %v1205
      %v1334 = vunpack.c.l.b16 %v1206
      %v1335 = vunpack.c.l.b16 %v1207
      %v1336 = vunpack.c.l.b16 %v1208
      %v1337 = vunpack.c.l.b16 %v1209
      %v1338 = vunpack.c.l.b16 %v1210
      %v1339 = vunpack.c.l.b16 %v1211
      %v1340 = vunpack.c.l.b16 %v1212
      %v1341 = vunpack.c.l.b16 %v1213
      %v1342 = vunpack.c.l.b16 %v1214
      %v1343 = vunpack.c.l.b16 %v1215
      %v1344 = vunpack.c.l.b16 %v1216
      %v1345 = vunpack.c.l.b16 %v1217
      %v1346 = vunpack.c.l.b16 %v1218
      %v1347 = vunpack.c.l.b16 %v1219
      %v1348 = vunpack.c.l.b16 %v1220
      %v1349 = vunpack.c.l.b16 %v1221
      %v1350 = vunpack.c.l.b16 %v1222
      %v1351 = vunpack.c.l.b16 %v1223
      %v1352 = vunpack.c.l.b16 %v1224
      %v1353 = vunpack.c.l.b16 %v1225
      %v1354 = vunpack.c.l.b16 %v1226
      %v1355 = vunpack.c.l.b16 %v1227
      %v1356 = vunpack.c.l.b16 %v1228
      %v1357 = vunpack.c.l.b16 %v1229
      %v1358 = vunpack.c.l.b16 %v1230
      %v1359 = vunpack.c.l.b16 %v1231
      %v1360 = vunpack.c.l.b16 %v1232
      %v1361 = vunpack.c.l.b16 %v1233
      %v1362 = vunpack.c.l.b16 %v1234
      %v1363 = vunpack.c.l.b16 %v1235
      %v1364 = vunpack.c.l.b16 %v1236
      %v1365 = vunpack.c.l.b16 %v1237
      %v1366 = vunpack.c.l.b16 %v1238
      %v1367 = vunpack.c.l.b16 %v1239
      %v1368 = vunpack.c.l.b16 %v1240
      %v1369 = vunpack.c.l.b16 %v1241
      %v1370 = vunpack.c.l.b16 %v1242
      %v1371 = vunpack.c.l.b16 %v1243
      %v1372 = vunpack.c.l.b16 %v1244
      %v1373 = vunpack.c.l.b16 %v1245
      %v1374 = vunpack.c.l.b16 %v1246
      %v1375 = vunpack.c.l.b16 %v1247
      %v1376 = vunpack.c.l.b16 %v1248
      %v1377 = vunpack.c.l.b16 %v1249
      %v1378 = vpack.c.b16 %v1315, %v1314
      %v1379 = vpack.c.b16 %v1317, %v1316
      %v1380 = vpack.c.b16 %v1319, %v1318
      %v1381 = vpack.c.b16 %v1321, %v1320
      %v1382 = vpack.c.b16 %v1323, %v1322
      %v1383 = vpack.c.b16 %v1325, %v1324
      %v1384 = vpack.c.b16 %v1327, %v1326
      %v1385 = vpack.c.b16 %v1329, %v1328
      %v1386 = vpack.c.b16 %v1331, %v1330
      %v1387 = vpack.c.b16 %v1333, %v1332
      %v1388 = vpack.c.b16 %v1335, %v1334
      %v1389 = vpack.c.b16 %v1337, %v1336
      %v1390 = vpack.c.b16 %v1339, %v1338
      %v1391 = vpack.c.b16 %v1341, %v1340
      %v1392 = vpack.c.b16 %v1343, %v1342
      %v1393 = vpack.c.b16 %v1345, %v1344
      %v1394 = vpack.c.b16 %v1347, %v1346
      %v1395 = vpack.c.b16 %v1349, %v1348
      %v1396 = vpack.c.b16 %v1351, %v1350
      %v1397 = vpack.c.b16 %v1353, %v1352
      %v1398 = vpack.c.b16 %v1355, %v1354
      %v1399 = vpack.c.b16 %v1357, %v1356
      %v1400 = vpack.c.b16 %v1359, %v1358
      %v1401 = vpack.c.b16 %v1361, %v1360
      %v1402 = vpack.c.b16 %v1363, %v1362
      %v1403 = vpack.c.b16 %v1365, %v1364
      %v1404 = vpack.c.b16 %v1367, %v1366
      %v1405 = vpack.c.b16 %v1369, %v1368
      %v1406 = vpack.c.b16 %v1371, %v1370
      %v1407 = vpack.c.b16 %v1373, %v1372
      %v1408 = vpack.c.b16 %v1375, %v1374
      %v1409 = vpack.c.b16 %v1377, %v1376
      %1442 = vmatprep.subr.bf16.mxu0 0
      %1443 = vmatpush1.bf16.msra.mxu0 %v1378
      %1444 = vmatprep.subr.bf16.mxu0 0
      %1445 = vmatpush1.bf16.msra.mxu0 %v1379
      %1446 = vmatprep.subr.bf16.mxu0 0
      %1447 = vmatpush1.bf16.msra.mxu0 %v1380
      %1448 = vmatprep.subr.bf16.mxu0 0
      %1449 = vmatpush1.bf16.msra.mxu0 %v1381
      %1450 = vmatprep.subr.bf16.mxu0 0
      %1451 = vmatpush1.bf16.msra.mxu0 %v1382
      %1452 = vmatprep.subr.bf16.mxu0 0
      %1453 = vmatpush1.bf16.msra.mxu0 %v1383
      %1454 = vmatprep.subr.bf16.mxu0 0
      %1455 = vmatpush1.bf16.msra.mxu0 %v1384
      %1456 = vmatprep.subr.bf16.mxu0 0
      %1457 = vmatpush1.bf16.msra.mxu0 %v1385
      %1458 = vmatprep.subr.bf16.mxu0 0
      %1459 = vmatpush1.bf16.msra.mxu0 %v1386
      %1460 = vmatprep.subr.bf16.mxu0 0
      %1461 = vmatpush1.bf16.msra.mxu0 %v1387
      %1462 = vmatprep.subr.bf16.mxu0 0
      %1463 = vmatpush1.bf16.msra.mxu0 %v1388
      %1464 = vmatprep.subr.bf16.mxu0 0
      %1465 = vmatpush1.bf16.msra.mxu0 %v1389
      %1466 = vmatprep.subr.bf16.mxu0 0
      %1467 = vmatpush1.bf16.msra.mxu0 %v1390
      %1468 = vmatprep.subr.bf16.mxu0 0
      %1469 = vmatpush1.bf16.msra.mxu0 %v1391
      %1470 = vmatprep.subr.bf16.mxu0 0
      %1471 = vmatpush1.bf16.msra.mxu0 %v1392
      %1472 = vmatprep.subr.bf16.mxu0 0
      %1473 = vmatpush1.bf16.msra.mxu0 %v1393
      %1474 = vmatprep.mubr.bf16.mxu0 %v1183
      %1475 = vmatmul.mubr.bf16.gmra.mrb[0].mxu0 %v1182
      %v1476 = vpop.f32.mrb[0].mxu0
      %v1477 = vadd.f32 0.0, %v1476
      %v1478 = vpop.f32.mrb[0].mxu0
      %v1479 = vpop.f32.mrb[0].mxu0
      %v1480 = vpop.f32.mrb[0].mxu0
      %1481 = vdwg.mxu0
      %1482 = vmatprep.subr.bf16.mxu0 0
      %1483 = vmatpush1.bf16.msra.mxu0 %v1394
      %1484 = vmatprep.subr.bf16.mxu0 0
      %1485 = vmatpush1.bf16.msra.mxu0 %v1395
      %1486 = vmatprep.subr.bf16.mxu0 0
      %1487 = vmatpush1.bf16.msra.mxu0 %v1396
      %1488 = vmatprep.subr.bf16.mxu0 0
      %1489 = vmatpush1.bf16.msra.mxu0 %v1397
      %1490 = vmatprep.subr.bf16.mxu0 0
      %1491 = vmatpush1.bf16.msra.mxu0 %v1398
      %1492 = vmatprep.subr.bf16.mxu0 0
      %1493 = vmatpush1.bf16.msra.mxu0 %v1399
      %1494 = vmatprep.subr.bf16.mxu0 0
      %1495 = vmatpush1.bf16.msra.mxu0 %v1400
      %1496 = vmatprep.subr.bf16.mxu0 0
      %1497 = vmatpush1.bf16.msra.mxu0 %v1401
      %1498 = vmatprep.subr.bf16.mxu0 0
      %1499 = vmatpush1.bf16.msra.mxu0 %v1402
      %1500 = vmatprep.subr.bf16.mxu0 0
      %1501 = vmatpush1.bf16.msra.mxu0 %v1403
      %1502 = vmatprep.subr.bf16.mxu0 0
      %1503 = vmatpush1.bf16.msra.mxu0 %v1404
      %1504 = vmatprep.subr.bf16.mxu0 0
      %1505 = vmatpush1.bf16.msra.mxu0 %v1405
      %1506 = vmatprep.subr.bf16.mxu0 0
      %1507 = vmatpush1.bf16.msra.mxu0 %v1406
      %1508 = vmatprep.subr.bf16.mxu0 0
      %1509 = vmatpush1.bf16.msra.mxu0 %v1407
      %1510 = vmatprep.subr.bf16.mxu0 0
      %1511 = vmatpush1.bf16.msra.mxu0 %v1408
      %1512 = vmatprep.subr.bf16.mxu0 0
      %1513 = vmatpush1.bf16.msra.mxu0 %v1409
      %1514 = vmatprep.mubr.bf16.mxu0 %v1185
      %1515 = vmatmul.mubr.bf16.gmra.mrb[0].mxu0 %v1184
      %v1516 = vpop.f32.mrb[0].mxu0
      %v1517 = vadd.f32 %v1477, %v1516
      %v1518 = vpop.f32.mrb[0].mxu0
      %v1519 = vpop.f32.mrb[0].mxu0
      %v1520 = vpop.f32.mrb[0].mxu0
      %1521 = vdwg.mxu0
      %v1522 = vld [vmem:[%s3 + $0x20] sm:$0xf]
      %v1523 = vld [vmem:[%s3 + $0x24] sm:$0xf]
      %v1524 = vpack.c.bf16 %v1517, %v1517
      %v1525 = vld [vmem:[%s4 + $0x40] sm:$0xff]
      %v1526 = vld [vmem:[%s4 + $0x48] sm:$0xff]
      %1528 = vset.pattern.permute.xlu0 0
      %1529 = vperm.xlu0 %1528, %v1525
      %v1530 = vpop.permute.xlu0 %1529
      %1533 = vset.pattern.permute.xlu0 0
      %1534 = vperm.xlu0 %1533, %v1526
      %v1535 = vpop.permute.xlu0 %1534
      %v1539 = vunpack.c.l.b16 %v1522
      %v1540 = vunpack.c.l.b16 %v1523
      %v1541 = vpack.c.b16 %v1540, %v1539
      %v1543 = vsel %vm842, %v1541, 0
      %v1546 = vsel %vm846, %v1524, 0
      %1548 = vmatprep.subr.bf16.mxu0 0
      %1549 = vmatpush1.bf16.msra.mxu0 %v1546
      %1550 = vmatprep.subr.bf16.mxu0 0
      %1551 = vmatpush1.bf16.msra.mxu0 0
      %1552 = vmatprep.subr.bf16.mxu0 0
      %1553 = vmatpush1.bf16.msra.mxu0 0
      %1554 = vmatprep.subr.bf16.mxu0 0
      %1555 = vmatpush1.bf16.msra.mxu0 0
      %1556 = vmatprep.subr.bf16.mxu0 0
      %1557 = vmatpush1.bf16.msra.mxu0 0
      %1558 = vmatprep.subr.bf16.mxu0 0
      %1559 = vmatpush1.bf16.msra.mxu0 0
      %1560 = vmatprep.subr.bf16.mxu0 0
      %1561 = vmatpush1.bf16.msra.mxu0 0
      %1562 = vmatprep.subr.bf16.mxu0 0
      %1563 = vmatpush1.bf16.msra.mxu0 0
      %1564 = vmatprep.subr.bf16.mxu0 0
      %1565 = vmatpush1.bf16.msra.mxu0 0
      %1566 = vmatprep.subr.bf16.mxu0 0
      %1567 = vmatpush1.bf16.msra.mxu0 0
      %1568 = vmatprep.subr.bf16.mxu0 0
      %1569 = vmatpush1.bf16.msra.mxu0 0
      %1570 = vmatprep.subr.bf16.mxu0 0
      %1571 = vmatpush1.bf16.msra.mxu0 0
      %1572 = vmatprep.subr.bf16.mxu0 0
      %1573 = vmatpush1.bf16.msra.mxu0 0
      %1574 = vmatprep.subr.bf16.mxu0 0
      %1575 = vmatpush1.bf16.msra.mxu0 0
      %1576 = vmatprep.subr.bf16.mxu0 0
      %1577 = vmatpush1.bf16.msra.mxu0 0
      %1578 = vmatprep.subr.bf16.mxu0 0
      %1579 = vmatpush1.bf16.msra.mxu0 0
      %1580 = vmatprep.mubr.bf16.mxu0 0
      %1581 = vmatmul.mubr.bf16.gmra.mrb[0].mxu0 %v1543
      %v1582 = vpop.f32.mrb[0].mxu0
      %v1583 = vadd.f32 %v1530, %v1582
      %v1584 = vpop.f32.mrb[0].mxu0
      %v1585 = vpop.f32.mrb[0].mxu0
      %v1586 = vadd.f32 %v1535, %v1585
      %v1587 = vpop.f32.mrb[0].mxu0
      %1588 = vdwg.mxu0
      %v1589 = vmax.f32 %v1583, 0.0
      %v1590 = vmax.f32 %v1586, 0.0
      %v1591 = vpack.c.bf16 %v1590, %v1589
      %v1592 = vld [vmem:[%s8] sm:$0xf]
      %v1593 = vld [vmem:[%s8 + $0x4] sm:$0xf]
      %v1594 = vld [vmem:[%s8 + $0x8] sm:$0xf]
      %v1595 = vld [vmem:[%s8 + $0xc] sm:$0xf]
      %v1596 = vld [vmem:[%s8 + $0x10] sm:$0xf]
      %v1597 = vld [vmem:[%s8 + $0x14] sm:$0xf]
      %v1598 = vld [vmem:[%s8 + $0x18] sm:$0xf]
      %v1599 = vld [vmem:[%s8 + $0x1c] sm:$0xf]
      %v1600 = vld [vmem:[%s8 + $0x20] sm:$0xf]
      %v1601 = vld [vmem:[%s8 + $0x24] sm:$0xf]
      %v1602 = vld [vmem:[%s8 + $0x28] sm:$0xf]
      %v1603 = vld [vmem:[%s8 + $0x2c] sm:$0xf]
      %v1604 = vld [vmem:[%s8 + $0x30] sm:$0xf]
      %v1605 = vld [vmem:[%s8 + $0x34] sm:$0xf]
      %v1606 = vld [vmem:[%s8 + $0x38] sm:$0xf]
      %v1607 = vld [vmem:[%s8 + $0x3c] sm:$0xf]
      %v1624 = vunpack.c.l.b16 %v1592
      %v1625 = vunpack.c.l.b16 %v1593
      %v1626 = vunpack.c.l.b16 %v1594
      %v1627 = vunpack.c.l.b16 %v1595
      %v1628 = vunpack.c.l.b16 %v1596
      %v1629 = vunpack.c.l.b16 %v1597
      %v1630 = vunpack.c.l.b16 %v1598
      %v1631 = vunpack.c.l.b16 %v1599
      %v1632 = vunpack.c.l.b16 %v1600
      %v1633 = vunpack.c.l.b16 %v1601
      %v1634 = vunpack.c.l.b16 %v1602
      %v1635 = vunpack.c.l.b16 %v1603
      %v1636 = vunpack.c.l.b16 %v1604
      %v1637 = vunpack.c.l.b16 %v1605
      %v1638 = vunpack.c.l.b16 %v1606
      %v1639 = vunpack.c.l.b16 %v1607
      %v1640 = vpack.c.b16 %v1625, %v1624
      %v1641 = vpack.c.b16 %v1627, %v1626
      %v1642 = vpack.c.b16 %v1629, %v1628
      %v1643 = vpack.c.b16 %v1631, %v1630
      %v1644 = vpack.c.b16 %v1633, %v1632
      %v1645 = vpack.c.b16 %v1635, %v1634
      %v1646 = vpack.c.b16 %v1637, %v1636
      %v1647 = vpack.c.b16 %v1639, %v1638
      %1656 = vmatprep.subr.bf16.mxu0 0
      %1657 = vmatpush1.bf16.msra.mxu0 %v1640
      %1658 = vmatprep.subr.bf16.mxu0 0
      %1659 = vmatpush1.bf16.msra.mxu0 %v1641
      %1660 = vmatprep.subr.bf16.mxu0 0
      %1661 = vmatpush1.bf16.msra.mxu0 %v1642
      %1662 = vmatprep.subr.bf16.mxu0 0
      %1663 = vmatpush1.bf16.msra.mxu0 %v1643
      %1664 = vmatprep.subr.bf16.mxu0 0
      %1665 = vmatpush1.bf16.msra.mxu0 %v1644
      %1666 = vmatprep.subr.bf16.mxu0 0
      %1667 = vmatpush1.bf16.msra.mxu0 %v1645
      %1668 = vmatprep.subr.bf16.mxu0 0
      %1669 = vmatpush1.bf16.msra.mxu0 %v1646
      %1670 = vmatprep.subr.bf16.mxu0 0
      %1671 = vmatpush1.bf16.msra.mxu0 %v1647
      %1672 = vmatprep.subr.bf16.mxu0 0
      %1673 = vmatpush1.bf16.msra.mxu0 0
      %1674 = vmatprep.subr.bf16.mxu0 0
      %1675 = vmatpush1.bf16.msra.mxu0 0
      %1676 = vmatprep.subr.bf16.mxu0 0
      %1677 = vmatpush1.bf16.msra.mxu0 0
      %1678 = vmatprep.subr.bf16.mxu0 0
      %1679 = vmatpush1.bf16.msra.mxu0 0
      %1680 = vmatprep.subr.bf16.mxu0 0
      %1681 = vmatpush1.bf16.msra.mxu0 0
      %1682 = vmatprep.subr.bf16.mxu0 0
      %1683 = vmatpush1.bf16.msra.mxu0 0
      %1684 = vmatprep.subr.bf16.mxu0 0
      %1685 = vmatpush1.bf16.msra.mxu0 0
      %1686 = vmatprep.subr.bf16.mxu0 0
      %1687 = vmatpush1.bf16.msra.mxu0 0
      %1688 = vmatprep.mubr.bf16.mxu0 0
      %1689 = vmatmul.mubr.bf16.gmra.mrb[0].mxu0 %v1591
      %v1690 = vpop.f32.mrb[0].mxu0
      %v1691 = vadd.f32 0.0, %v1690
      %v1692 = vpop.f32.mrb[0].mxu0
      %v1693 = vpop.f32.mrb[0].mxu0
      %v1694 = vadd.f32 0.0, %v1693
      %v1695 = vpop.f32.mrb[0].mxu0
      %1696 = vdwg.mxu0
      %v1697 = vld [vmem:[%s3 + $0x28] sm:$0xf]
      %v1698 = vld [vmem:[%s3 + $0x2c] sm:$0xf]
      %v1699 = vld [vmem:[%s3 + $0x30] sm:$0xf]
      %v1700 = vld [vmem:[%s3 + $0x34] sm:$0xf]
      %v1701 = vpack.c.bf16 %v1694, %v1691
      %v1702 = vld [vmem:[%s4 + $0x50] sm:$0xff]
      %v1703 = vld [vmem:[%s4 + $0x58] sm:$0xff]
      %v1704 = vld [vmem:[%s4 + $0x60] sm:$0xff]
      %v1705 = vld [vmem:[%s4 + $0x68] sm:$0xff]
      %1707 = vset.pattern.permute.xlu0 0
      %1708 = vperm.xlu0 %1707, %v1702
      %v1709 = vpop.permute.xlu0 %1708
      %1712 = vset.pattern.permute.xlu0 0
      %1713 = vperm.xlu0 %1712, %v1703
      %v1714 = vpop.permute.xlu0 %1713
      %1717 = vset.pattern.permute.xlu0 0
      %1718 = vperm.xlu0 %1717, %v1704
      %v1719 = vpop.permute.xlu0 %1718
      %1722 = vset.pattern.permute.xlu0 0
      %1723 = vperm.xlu0 %1722, %v1705
      %v1724 = vpop.permute.xlu0 %1723
      %v1730 = vunpack.c.l.b16 %v1697
      %v1731 = vunpack.c.l.b16 %v1698
      %v1732 = vunpack.c.l.b16 %v1699
      %v1733 = vunpack.c.l.b16 %v1700
      %v1734 = vpack.c.b16 %v1731, %v1730
      %v1735 = vpack.c.b16 %v1733, %v1732
      %v1737 = vsel %vm1010, %v1734, 0
      %v1740 = vsel %vm1010, %v1735, 0
      %1742 = vmatprep.subr.bf16.mxu0 0
      %1743 = vmatpush1.bf16.msra.mxu0 %v1701
      %1744 = vmatprep.subr.bf16.mxu0 0
      %1745 = vmatpush1.bf16.msra.mxu0 0
      %1746 = vmatprep.subr.bf16.mxu0 0
      %1747 = vmatpush1.bf16.msra.mxu0 0
      %1748 = vmatprep.subr.bf16.mxu0 0
      %1749 = vmatpush1.bf16.msra.mxu0 0
      %1750 = vmatprep.subr.bf16.mxu0 0
      %1751 = vmatpush1.bf16.msra.mxu0 0
      %1752 = vmatprep.subr.bf16.mxu0 0
      %1753 = vmatpush1.bf16.msra.mxu0 0
      %1754 = vmatprep.subr.bf16.mxu0 0
      %1755 = vmatpush1.bf16.msra.mxu0 0
      %1756 = vmatprep.subr.bf16.mxu0 0
      %1757 = vmatpush1.bf16.msra.mxu0 0
      %1758 = vmatprep.subr.bf16.mxu0 0
      %1759 = vmatpush1.bf16.msra.mxu0 0
      %1760 = vmatprep.subr.bf16.mxu0 0
      %1761 = vmatpush1.bf16.msra.mxu0 0
      %1762 = vmatprep.subr.bf16.mxu0 0
      %1763 = vmatpush1.bf16.msra.mxu0 0
      %1764 = vmatprep.subr.bf16.mxu0 0
      %1765 = vmatpush1.bf16.msra.mxu0 0
      %1766 = vmatprep.subr.bf16.mxu0 0
      %1767 = vmatpush1.bf16.msra.mxu0 0
      %1768 = vmatprep.subr.bf16.mxu0 0
      %1769 = vmatpush1.bf16.msra.mxu0 0
      %1770 = vmatprep.subr.bf16.mxu0 0
      %1771 = vmatpush1.bf16.msra.mxu0 0
      %1772 = vmatprep.subr.bf16.mxu0 0
      %1773 = vmatpush1.bf16.msra.mxu0 0
      %1774 = vmatprep.mubr.bf16.mxu0 0
      %1775 = vmatmul.mubr.bf16.gmra.mrb[0].mxu0 %v1737
      %v1776 = vpop.f32.mrb[0].mxu0
      %v1777 = vadd.f32 %v1709, %v1776
      %v1778 = vpop.f32.mrb[0].mxu0
      %v1779 = vpop.f32.mrb[0].mxu0
      %v1780 = vadd.f32 %v1714, %v1779
      %v1781 = vpop.f32.mrb[0].mxu0
      %1782 = vmatprep.mubr.bf16.mxu0 0
      %1783 = vmatmul.mubr.bf16.gmra.mrb[0].mxu0 %v1740
      %v1784 = vpop.f32.mrb[0].mxu0
      %v1785 = vadd.f32 %v1719, %v1784
      %v1786 = vpop.f32.mrb[0].mxu0
      %v1787 = vpop.f32.mrb[0].mxu0
      %v1788 = vadd.f32 %v1724, %v1787
      %v1789 = vpop.f32.mrb[0].mxu0
      %1790 = vdwg.mxu0
      %v1791 = vmax.f32 %v1777, 0.0
      %v1792 = vmax.f32 %v1780, 0.0
      %v1793 = vmax.f32 %v1785, 0.0
      %v1794 = vmax.f32 %v1788, 0.0
      %v1795 = vpack.c.bf16 %v1792, %v1791
      %v1796 = vpack.c.bf16 %v1794, %v1793
      %v1798 = vsel %vm1010, %v1795, 0
      %v1801 = vsel %vm1010, %v1796, 0
      %1803 = vmatprep.subr.bf16.mxu0 0
      %1804 = vmatpush1.bf16.msra.mxu0 %v1078
      %1805 = vmatprep.subr.bf16.mxu0 0
      %1806 = vmatpush1.bf16.msra.mxu0 0
      %1807 = vmatprep.subr.bf16.mxu0 0
      %1808 = vmatpush1.bf16.msra.mxu0 0
      %1809 = vmatprep.subr.bf16.mxu0 0
      %1810 = vmatpush1.bf16.msra.mxu0 0
      %1811 = vmatprep.subr.bf16.mxu0 0
      %1812 = vmatpush1.bf16.msra.mxu0 0
      %1813 = vmatprep.subr.bf16.mxu0 0
      %1814 = vmatpush1.bf16.msra.mxu0 0
      %1815 = vmatprep.subr.bf16.mxu0 0
      %1816 = vmatpush1.bf16.msra.mxu0 0
      %1817 = vmatprep.subr.bf16.mxu0 0
      %1818 = vmatpush1.bf16.msra.mxu0 0
      %1819 = vmatprep.subr.bf16.mxu0 0
      %1820 = vmatpush1.bf16.msra.mxu0 0
      %1821 = vmatprep.subr.bf16.mxu0 0
      %1822 = vmatpush1.bf16.msra.mxu0 0
      %1823 = vmatprep.subr.bf16.mxu0 0
      %1824 = vmatpush1.bf16.msra.mxu0 0
      %1825 = vmatprep.subr.bf16.mxu0 0
      %1826 = vmatpush1.bf16.msra.mxu0 0
      %1827 = vmatprep.subr.bf16.mxu0 0
      %1828 = vmatpush1.bf16.msra.mxu0 0
      %1829 = vmatprep.subr.bf16.mxu0 0
      %1830 = vmatpush1.bf16.msra.mxu0 0
      %1831 = vmatprep.subr.bf16.mxu0 0
      %1832 = vmatpush1.bf16.msra.mxu0 0
      %1833 = vmatprep.subr.bf16.mxu0 0
      %1834 = vmatpush1.bf16.msra.mxu0 0
      %1835 = vmatprep.mubr.bf16.mxu0 0
      %1836 = vmatmul.mubr.bf16.gmra.mrb[0].mxu0 %v1798
      %v1837 = vpop.f32.mrb[0].mxu0
      %v1838 = vadd.f32 0.0, %v1837
      %v1839 = vpop.f32.mrb[0].mxu0
      %v1840 = vpop.f32.mrb[0].mxu0
      %v1841 = vadd.f32 0.0, %v1840
      %v1842 = vpop.f32.mrb[0].mxu0
      %1843 = vmatprep.mubr.bf16.mxu0 0
      %1844 = vmatmul.mubr.bf16.gmra.mrb[0].mxu0 %v1801
      %v1845 = vpop.f32.mrb[0].mxu0
      %v1846 = vadd.f32 0.0, %v1845
      %v1847 = vpop.f32.mrb[0].mxu0
      %v1848 = vpop.f32.mrb[0].mxu0
      %v1849 = vadd.f32 0.0, %v1848
      %v1850 = vpop.f32.mrb[0].mxu0
      %1851 = vdwg.mxu0
      %v1852 = vld [vmem:[%s609] sm:$0x3]
      %v1853 = vld [vmem:[%s3 + $0x38] sm:$0xf]
      %v1854 = vunpack.c.l.bf16 %v1853
      %1856 = vset.pattern.permute.xlu0 0
      %1857 = vperm.xlu0 %1856, %v1854
      %v1858 = vpop.permute.xlu0 %1857
      %v1861 = vlaneseq
      %v1862 = vshrl.u32 %v1861, 7
      %v1863 = vsub.s32 0, %v1862
      %v1864 = vrot.slane %v1852, %v1863
      %v1865 = vlaneseq
      %v1866 = vshrl.u32 %v1865, 7
      %v1867 = vsub.s32 1, %v1866
      %v1868 = vrot.slane %v1852, %v1867
      %v1871 = vmul.f32 %v1858, %v1864
      %v1872 = vmul.f32 %v1858, %v1868
      %v1873 = vld [vmem:[%s4 + $0x70] sm:$0xff]
      %1875 = vset.pattern.permute.xlu0 0
      %1876 = vperm.xlu0 %1875, %v1873
      %v1877 = vpop.permute.xlu0 %1876
      %v1879 = vadd.f32 %v1871, %v1877
      %v1880 = vadd.f32 %v1872, %v1877
      %v1881 = vmax.f32 %v1879, 0.0
      %v1882 = vmax.f32 %v1880, 0.0
      %v1883 = vpack.c.bf16 %v1881, %v1881
      %v1884 = vpack.c.bf16 %v1882, %v1882
      %1885 = vmatprep.subr.bf16.mxu0 0
      %1886 = vmatpush1.bf16.msra.mxu0 %v750
      %1887 = vmatprep.subr.bf16.mxu0 0
      %1888 = vmatpush1.bf16.msra.mxu0 %v751
      %1889 = vmatprep.subr.bf16.mxu0 0
      %1890 = vmatpush1.bf16.msra.mxu0 %v752
      %1891 = vmatprep.subr.bf16.mxu0 0
      %1892 = vmatpush1.bf16.msra.mxu0 %v753
      %1893 = vmatprep.subr.bf16.mxu0 0
      %1894 = vmatpush1.bf16.msra.mxu0 %v754
      %1895 = vmatprep.subr.bf16.mxu0 0
      %1896 = vmatpush1.bf16.msra.mxu0 %v755
      %1897 = vmatprep.subr.bf16.mxu0 0
      %1898 = vmatpush1.bf16.msra.mxu0 %v756
      %1899 = vmatprep.subr.bf16.mxu0 0
      %1900 = vmatpush1.bf16.msra.mxu0 %v757
      %1901 = vmatprep.subr.bf16.mxu0 0
      %1902 = vmatpush1.bf16.msra.mxu0 %v758
      %1903 = vmatprep.subr.bf16.mxu0 0
      %1904 = vmatpush1.bf16.msra.mxu0 %v759
      %1905 = vmatprep.subr.bf16.mxu0 0
      %1906 = vmatpush1.bf16.msra.mxu0 %v760
      %1907 = vmatprep.subr.bf16.mxu0 0
      %1908 = vmatpush1.bf16.msra.mxu0 %v761
      %1909 = vmatprep.subr.bf16.mxu0 0
      %1910 = vmatpush1.bf16.msra.mxu0 %v762
      %1911 = vmatprep.subr.bf16.mxu0 0
      %1912 = vmatpush1.bf16.msra.mxu0 %v763
      %1913 = vmatprep.subr.bf16.mxu0 0
      %1914 = vmatpush1.bf16.msra.mxu0 %v764
      %1915 = vmatprep.subr.bf16.mxu0 0
      %1916 = vmatpush1.bf16.msra.mxu0 %v765
      %1917 = vmatprep.mubr.bf16.mxu0 %v1884
      %1918 = vmatmul.mubr.bf16.gmra.mrb[0].mxu0 %v1883
      %v1919 = vpop.f32.mrb[0].mxu0
      %v1920 = vadd.f32 0.0, %v1919
      %v1921 = vpop.f32.mrb[0].mxu0
      %v1922 = vpop.f32.mrb[0].mxu0
      %v1923 = vpop.f32.mrb[0].mxu0
      %1924 = vdwg.mxu0
      %v1925 = vld [vmem:[%s3 + $0x3c] sm:$0xf]
      %v1926 = vld [vmem:[%s3 + $0x40] sm:$0xf]
      %v1927 = vpack.c.bf16 %v1920, %v1920
      %v1928 = vld [vmem:[%s4 + $0x78] sm:$0xff]
      %v1929 = vld [vmem:[%s4 + $0x80] sm:$0xff]
      %1931 = vset.pattern.permute.xlu0 0
      %1932 = vperm.xlu0 %1931, %v1928
      %v1933 = vpop.permute.xlu0 %1932
      %1936 = vset.pattern.permute.xlu0 0
      %1937 = vperm.xlu0 %1936, %v1929
      %v1938 = vpop.permute.xlu0 %1937
      %v1942 = vunpack.c.l.b16 %v1925
      %v1943 = vunpack.c.l.b16 %v1926
      %v1944 = vpack.c.b16 %v1943, %v1942
      %v1946 = vsel %vm842, %v1944, 0
      %v1949 = vsel %vm846, %v1927, 0
      %1951 = vmatprep.subr.bf16.mxu0 0
      %1952 = vmatpush1.bf16.msra.mxu0 %v1949
      %1953 = vmatprep.subr.bf16.mxu0 0
      %1954 = vmatpush1.bf16.msra.mxu0 0
      %1955 = vmatprep.subr.bf16.mxu0 0
      %1956 = vmatpush1.bf16.msra.mxu0 0
      %1957 = vmatprep.subr.bf16.mxu0 0
      %1958 = vmatpush1.bf16.msra.mxu0 0
      %1959 = vmatprep.subr.bf16.mxu0 0
      %1960 = vmatpush1.bf16.msra.mxu0 0
      %1961 = vmatprep.subr.bf16.mxu0 0
      %1962 = vmatpush1.bf16.msra.mxu0 0
      %1963 = vmatprep.subr.bf16.mxu0 0
      %1964 = vmatpush1.bf16.msra.mxu0 0
      %1965 = vmatprep.subr.bf16.mxu0 0
      %1966 = vmatpush1.bf16.msra.mxu0 0
      %1967 = vmatprep.subr.bf16.mxu0 0
      %1968 = vmatpush1.bf16.msra.mxu0 0
      %1969 = vmatprep.subr.bf16.mxu0 0
      %1970 = vmatpush1.bf16.msra.mxu0 0
      %1971 = vmatprep.subr.bf16.mxu0 0
      %1972 = vmatpush1.bf16.msra.mxu0 0
      %1973 = vmatprep.subr.bf16.mxu0 0
      %1974 = vmatpush1.bf16.msra.mxu0 0
      %1975 = vmatprep.subr.bf16.mxu0 0
      %1976 = vmatpush1.bf16.msra.mxu0 0
      %1977 = vmatprep.subr.bf16.mxu0 0
      %1978 = vmatpush1.bf16.msra.mxu0 0
      %1979 = vmatprep.subr.bf16.mxu0 0
      %1980 = vmatpush1.bf16.msra.mxu0 0
      %1981 = vmatprep.subr.bf16.mxu0 0
      %1982 = vmatpush1.bf16.msra.mxu0 0
      %1983 = vmatprep.mubr.bf16.mxu0 0
      %1984 = vmatmul.mubr.bf16.gmra.mrb[0].mxu0 %v1946
      %v1985 = vpop.f32.mrb[0].mxu0
      %v1986 = vadd.f32 %v1933, %v1985
      %v1987 = vpop.f32.mrb[0].mxu0
      %v1988 = vpop.f32.mrb[0].mxu0
      %v1989 = vadd.f32 %v1938, %v1988
      %v1990 = vpop.f32.mrb[0].mxu0
      %1991 = vdwg.mxu0
      %v1992 = vmax.f32 %v1986, 0.0
      %v1993 = vmax.f32 %v1989, 0.0
      %v1994 = vpack.c.bf16 %v1993, %v1992
      %v1996 = vsel %vm926, %v1994, 0
      %1998 = vmatprep.subr.bf16.mxu0 0
      %1999 = vmatpush1.bf16.msra.mxu0 %v918
      %2000 = vmatprep.subr.bf16.mxu0 0
      %2001 = vmatpush1.bf16.msra.mxu0 %v919
      %2002 = vmatprep.subr.bf16.mxu0 0
      %2003 = vmatpush1.bf16.msra.mxu0 %v920
      %2004 = vmatprep.subr.bf16.mxu0 0
      %2005 = vmatpush1.bf16.msra.mxu0 %v921
      %2006 = vmatprep.subr.bf16.mxu0 0
      %2007 = vmatpush1.bf16.msra.mxu0 0
      %2008 = vmatprep.subr.bf16.mxu0 0
      %2009 = vmatpush1.bf16.msra.mxu0 0
      %2010 = vmatprep.subr.bf16.mxu0 0
      %2011 = vmatpush1.bf16.msra.mxu0 0
      %2012 = vmatprep.subr.bf16.mxu0 0
      %2013 = vmatpush1.bf16.msra.mxu0 0
      %2014 = vmatprep.subr.bf16.mxu0 0
      %2015 = vmatpush1.bf16.msra.mxu0 0
      %2016 = vmatprep.subr.bf16.mxu0 0
      %2017 = vmatpush1.bf16.msra.mxu0 0
      %2018 = vmatprep.subr.bf16.mxu0 0
      %2019 = vmatpush1.bf16.msra.mxu0 0
      %2020 = vmatprep.subr.bf16.mxu0 0
      %2021 = vmatpush1.bf16.msra.mxu0 0
      %2022 = vmatprep.subr.bf16.mxu0 0
      %2023 = vmatpush1.bf16.msra.mxu0 0
      %2024 = vmatprep.subr.bf16.mxu0 0
      %2025 = vmatpush1.bf16.msra.mxu0 0
      %2026 = vmatprep.subr.bf16.mxu0 0
      %2027 = vmatpush1.bf16.msra.mxu0 0
      %2028 = vmatprep.subr.bf16.mxu0 0
      %2029 = vmatpush1.bf16.msra.mxu0 0
      %2030 = vmatprep.mubr.bf16.mxu0 0
      %2031 = vmatmul.mubr.bf16.gmra.mrb[0].mxu0 %v1996
      %v2032 = vpop.f32.mrb[0].mxu0
      %v2033 = vadd.f32 0.0, %v2032
      %v2034 = vpop.f32.mrb[0].mxu0
      %v2035 = vpop.f32.mrb[0].mxu0
      %v2036 = vadd.f32 0.0, %v2035
      %v2037 = vpop.f32.mrb[0].mxu0
      %2038 = vdwg.mxu0
      %v2039 = vld [vmem:[%s3 + $0x44] sm:$0xf]
      %v2040 = vld [vmem:[%s3 + $0x48] sm:$0xf]
      %v2041 = vld [vmem:[%s3 + $0x4c] sm:$0xf]
      %v2042 = vld [vmem:[%s3 + $0x50] sm:$0xf]
      %v2043 = vpack.c.bf16 %v2036, %v2033
      %v2044 = vld [vmem:[%s4 + $0x88] sm:$0xff]
      %v2045 = vld [vmem:[%s4 + $0x90] sm:$0xff]
      %v2046 = vld [vmem:[%s4 + $0x98] sm:$0xff]
      %v2047 = vld [vmem:[%s4 + $0xa0] sm:$0xff]
      %2049 = vset.pattern.permute.xlu0 0
      %2050 = vperm.xlu0 %2049, %v2044
      %v2051 = vpop.permute.xlu0 %2050
      %2054 = vset.pattern.permute.xlu0 0
      %2055 = vperm.xlu0 %2054, %v2045
      %v2056 = vpop.permute.xlu0 %2055
      %2059 = vset.pattern.permute.xlu0 0
      %2060 = vperm.xlu0 %2059, %v2046
      %v2061 = vpop.permute.xlu0 %2060
      %2064 = vset.pattern.permute.xlu0 0
      %2065 = vperm.xlu0 %2064, %v2047
      %v2066 = vpop.permute.xlu0 %2065
      %v2072 = vunpack.c.l.b16 %v2039
      %v2073 = vunpack.c.l.b16 %v2040
      %v2074 = vunpack.c.l.b16 %v2041
      %v2075 = vunpack.c.l.b16 %v2042
      %v2076 = vpack.c.b16 %v2073, %v2072
      %v2077 = vpack.c.b16 %v2075, %v2074
      %v2079 = vsel %vm1010, %v2076, 0
      %v2082 = vsel %vm1010, %v2077, 0
      %2084 = vmatprep.subr.bf16.mxu0 0
      %2085 = vmatpush1.bf16.msra.mxu0 %v2043
      %2086 = vmatprep.subr.bf16.mxu0 0
      %2087 = vmatpush1.bf16.msra.mxu0 0
      %2088 = vmatprep.subr.bf16.mxu0 0
      %2089 = vmatpush1.bf16.msra.mxu0 0
      %2090 = vmatprep.subr.bf16.mxu0 0
      %2091 = vmatpush1.bf16.msra.mxu0 0
      %2092 = vmatprep.subr.bf16.mxu0 0
      %2093 = vmatpush1.bf16.msra.mxu0 0
      %2094 = vmatprep.subr.bf16.mxu0 0
      %2095 = vmatpush1.bf16.msra.mxu0 0
      %2096 = vmatprep.subr.bf16.mxu0 0
      %2097 = vmatpush1.bf16.msra.mxu0 0
      %2098 = vmatprep.subr.bf16.mxu0 0
      %2099 = vmatpush1.bf16.msra.mxu0 0
      %2100 = vmatprep.subr.bf16.mxu0 0
      %2101 = vmatpush1.bf16.msra.mxu0 0
      %2102 = vmatprep.subr.bf16.mxu0 0
      %2103 = vmatpush1.bf16.msra.mxu0 0
      %2104 = vmatprep.subr.bf16.mxu0 0
      %2105 = vmatpush1.bf16.msra.mxu0 0
      %2106 = vmatprep.subr.bf16.mxu0 0
      %2107 = vmatpush1.bf16.msra.mxu0 0
      %2108 = vmatprep.subr.bf16.mxu0 0
      %2109 = vmatpush1.bf16.msra.mxu0 0
      %2110 = vmatprep.subr.bf16.mxu0 0
      %2111 = vmatpush1.bf16.msra.mxu0 0
      %2112 = vmatprep.subr.bf16.mxu0 0
      %2113 = vmatpush1.bf16.msra.mxu0 0
      %2114 = vmatprep.subr.bf16.mxu0 0
      %2115 = vmatpush1.bf16.msra.mxu0 0
      %2116 = vmatprep.mubr.bf16.mxu0 0
      %2117 = vmatmul.mubr.bf16.gmra.mrb[0].mxu0 %v2079
      %v2118 = vpop.f32.mrb[0].mxu0
      %v2119 = vadd.f32 %v2051, %v2118
      %v2120 = vpop.f32.mrb[0].mxu0
      %v2121 = vpop.f32.mrb[0].mxu0
      %v2122 = vadd.f32 %v2056, %v2121
      %v2123 = vpop.f32.mrb[0].mxu0
      %2124 = vmatprep.mubr.bf16.mxu0 0
      %2125 = vmatmul.mubr.bf16.gmra.mrb[0].mxu0 %v2082
      %v2126 = vpop.f32.mrb[0].mxu0
      %v2127 = vadd.f32 %v2061, %v2126
      %v2128 = vpop.f32.mrb[0].mxu0
      %v2129 = vpop.f32.mrb[0].mxu0
      %v2130 = vadd.f32 %v2066, %v2129
      %v2131 = vpop.f32.mrb[0].mxu0
      %2132 = vdwg.mxu0
      %v2133 = vmax.f32 %v2119, 0.0
      %v2134 = vmax.f32 %v2122, 0.0
      %v2135 = vmax.f32 %v2127, 0.0
      %v2136 = vmax.f32 %v2130, 0.0
      %v2137 = vpack.c.bf16 %v2134, %v2133
      %v2138 = vpack.c.bf16 %v2136, %v2135
      %v2140 = vsel %vm1010, %v2137, 0
      %v2143 = vsel %vm1010, %v2138, 0
      %2145 = vmatprep.subr.bf16.mxu0 0
      %2146 = vmatpush1.bf16.msra.mxu0 %v1078
      %2147 = vmatprep.subr.bf16.mxu0 0
      %2148 = vmatpush1.bf16.msra.mxu0 0
      %2149 = vmatprep.subr.bf16.mxu0 0
      %2150 = vmatpush1.bf16.msra.mxu0 0
      %2151 = vmatprep.subr.bf16.mxu0 0
      %2152 = vmatpush1.bf16.msra.mxu0 0
      %2153 = vmatprep.subr.bf16.mxu0 0
      %2154 = vmatpush1.bf16.msra.mxu0 0
      %2155 = vmatprep.subr.bf16.mxu0 0
      %2156 = vmatpush1.bf16.msra.mxu0 0
      %2157 = vmatprep.subr.bf16.mxu0 0
      %2158 = vmatpush1.bf16.msra.mxu0 0
      %2159 = vmatprep.subr.bf16.mxu0 0
      %2160 = vmatpush1.bf16.msra.mxu0 0
      %2161 = vmatprep.subr.bf16.mxu0 0
      %2162 = vmatpush1.bf16.msra.mxu0 0
      %2163 = vmatprep.subr.bf16.mxu0 0
      %2164 = vmatpush1.bf16.msra.mxu0 0
      %2165 = vmatprep.subr.bf16.mxu0 0
      %2166 = vmatpush1.bf16.msra.mxu0 0
      %2167 = vmatprep.subr.bf16.mxu0 0
      %2168 = vmatpush1.bf16.msra.mxu0 0
      %2169 = vmatprep.subr.bf16.mxu0 0
      %2170 = vmatpush1.bf16.msra.mxu0 0
      %2171 = vmatprep.subr.bf16.mxu0 0
      %2172 = vmatpush1.bf16.msra.mxu0 0
      %2173 = vmatprep.subr.bf16.mxu0 0
      %2174 = vmatpush1.bf16.msra.mxu0 0
      %2175 = vmatprep.subr.bf16.mxu0 0
      %2176 = vmatpush1.bf16.msra.mxu0 0
      %2177 = vmatprep.mubr.bf16.mxu0 0
      %2178 = vmatmul.mubr.bf16.gmra.mrb[0].mxu0 %v2140
      %v2179 = vpop.f32.mrb[0].mxu0
      %v2180 = vadd.f32 0.0, %v2179
      %v2181 = vpop.f32.mrb[0].mxu0
      %v2182 = vpop.f32.mrb[0].mxu0
      %v2183 = vadd.f32 0.0, %v2182
      %v2184 = vpop.f32.mrb[0].mxu0
      %2185 = vmatprep.mubr.bf16.mxu0 0
      %2186 = vmatmul.mubr.bf16.gmra.mrb[0].mxu0 %v2143
      %v2187 = vpop.f32.mrb[0].mxu0
      %v2188 = vadd.f32 0.0, %v2187
      %v2189 = vpop.f32.mrb[0].mxu0
      %v2190 = vpop.f32.mrb[0].mxu0
      %v2191 = vadd.f32 0.0, %v2190
      %v2192 = vpop.f32.mrb[0].mxu0
      %2193 = vdwg.mxu0
      %v2194 = vld [vmem:[%s3 + $0x60] sm:$0xf]
      %v2195 = vld [vmem:[%s3 + $0x64] sm:$0xf]
      %v2196 = vld [vmem:[%s3 + $0x68] sm:$0xf]
      %v2197 = vld [vmem:[%s3 + $0x6c] sm:$0xf]
      %v2200 = vunpack.c.l.b16 %v2196
      %v2201 = vunpack.c.l.b16 %v2197
      %v2202 = vpack.c.b16 %v2201, %v2200
      %v2204 = vsel %vm1010, %v2202, 0
      %2206 = vmatprep.subr.bf16.mxu0 0
      %2207 = vmatpush1.bf16.msra.mxu0 %v1701
      %2208 = vmatprep.subr.bf16.mxu0 0
      %2209 = vmatpush1.bf16.msra.mxu0 0
      %2210 = vmatprep.subr.bf16.mxu0 0
      %2211 = vmatpush1.bf16.msra.mxu0 0
      %2212 = vmatprep.subr.bf16.mxu0 0
      %2213 = vmatpush1.bf16.msra.mxu0 0
      %2214 = vmatprep.subr.bf16.mxu0 0
      %2215 = vmatpush1.bf16.msra.mxu0 0
      %2216 = vmatprep.subr.bf16.mxu0 0
      %2217 = vmatpush1.bf16.msra.mxu0 0
      %2218 = vmatprep.subr.bf16.mxu0 0
      %2219 = vmatpush1.bf16.msra.mxu0 0
      %2220 = vmatprep.subr.bf16.mxu0 0
      %2221 = vmatpush1.bf16.msra.mxu0 0
      %2222 = vmatprep.subr.bf16.mxu0 0
      %2223 = vmatpush1.bf16.msra.mxu0 0
      %2224 = vmatprep.subr.bf16.mxu0 0
      %2225 = vmatpush1.bf16.msra.mxu0 0
      %2226 = vmatprep.subr.bf16.mxu0 0
      %2227 = vmatpush1.bf16.msra.mxu0 0
      %2228 = vmatprep.subr.bf16.mxu0 0
      %2229 = vmatpush1.bf16.msra.mxu0 0
      %2230 = vmatprep.subr.bf16.mxu0 0
      %2231 = vmatpush1.bf16.msra.mxu0 0
      %2232 = vmatprep.subr.bf16.mxu0 0
      %2233 = vmatpush1.bf16.msra.mxu0 0
      %2234 = vmatprep.subr.bf16.mxu0 0
      %2235 = vmatpush1.bf16.msra.mxu0 0
      %2236 = vmatprep.subr.bf16.mxu0 0
      %2237 = vmatpush1.bf16.msra.mxu0 0
      %2238 = vmatprep.mubr.bf16.mxu0 0
      %2239 = vmatmul.mubr.bf16.gmra.mrb[0].mxu0 %v2204
      %v2240 = vpop.f32.mrb[0].mxu0
      %v2241 = vadd.f32 0.0, %v2240
      %v2242 = vpop.f32.mrb[0].mxu0
      %v2243 = vpop.f32.mrb[0].mxu0
      %v2244 = vadd.f32 0.0, %v2243
      %v2245 = vpop.f32.mrb[0].mxu0
      %2246 = vdwg.mxu0
      %v2249 = vunpack.c.l.b16 %v2194
      %v2250 = vunpack.c.l.b16 %v2195
      %v2251 = vpack.c.b16 %v2250, %v2249
      %v2253 = vsel %vm1010, %v2251, 0
      %2255 = vmatprep.subr.bf16.mxu0 0
      %2256 = vmatpush1.bf16.msra.mxu0 %v975
      %2257 = vmatprep.subr.bf16.mxu0 0
      %2258 = vmatpush1.bf16.msra.mxu0 0
      %2259 = vmatprep.subr.bf16.mxu0 0
      %2260 = vmatpush1.bf16.msra.mxu0 0
      %2261 = vmatprep.subr.bf16.mxu0 0
      %2262 = vmatpush1.bf16.msra.mxu0 0
      %2263 = vmatprep.subr.bf16.mxu0 0
      %2264 = vmatpush1.bf16.msra.mxu0 0
      %2265 = vmatprep.subr.bf16.mxu0 0
      %2266 = vmatpush1.bf16.msra.mxu0 0
      %2267 = vmatprep.subr.bf16.mxu0 0
      %2268 = vmatpush1.bf16.msra.mxu0 0
      %2269 = vmatprep.subr.bf16.mxu0 0
      %2270 = vmatpush1.bf16.msra.mxu0 0
      %2271 = vmatprep.subr.bf16.mxu0 0
      %2272 = vmatpush1.bf16.msra.mxu0 0
      %2273 = vmatprep.subr.bf16.mxu0 0
      %2274 = vmatpush1.bf16.msra.mxu0 0
      %2275 = vmatprep.subr.bf16.mxu0 0
      %2276 = vmatpush1.bf16.msra.mxu0 0
      %2277 = vmatprep.subr.bf16.mxu0 0
      %2278 = vmatpush1.bf16.msra.mxu0 0
      %2279 = vmatprep.subr.bf16.mxu0 0
      %2280 = vmatpush1.bf16.msra.mxu0 0
      %2281 = vmatprep.subr.bf16.mxu0 0
      %2282 = vmatpush1.bf16.msra.mxu0 0
      %2283 = vmatprep.subr.bf16.mxu0 0
      %2284 = vmatpush1.bf16.msra.mxu0 0
      %2285 = vmatprep.subr.bf16.mxu0 0
      %2286 = vmatpush1.bf16.msra.mxu0 0
      %2287 = vmatprep.mubr.bf16.mxu0 0
      %2288 = vmatmul.mubr.bf16.gmra.mrb[0].mxu0 %v2253
      %v2289 = vpop.f32.mrb[0].mxu0
      %v2290 = vadd.f32 %v2241, %v2289
      %v2291 = vpop.f32.mrb[0].mxu0
      %v2292 = vpop.f32.mrb[0].mxu0
      %v2293 = vadd.f32 %v2244, %v2292
      %v2294 = vpop.f32.mrb[0].mxu0
      %2295 = vdwg.mxu0
      %v2296 = vld [vmem:[%s3 + $0x70] sm:$0xf]
      %v2297 = vld [vmem:[%s3 + $0x74] sm:$0xf]
      %v2300 = vunpack.c.l.b16 %v2296
      %v2301 = vunpack.c.l.b16 %v2297
      %v2302 = vpack.c.b16 %v2301, %v2300
      %v2304 = vsel %vm1010, %v2302, 0
      %2306 = vmatprep.subr.bf16.mxu0 0
      %2307 = vmatpush1.bf16.msra.mxu0 %v2043
      %2308 = vmatprep.subr.bf16.mxu0 0
      %2309 = vmatpush1.bf16.msra.mxu0 0
      %2310 = vmatprep.subr.bf16.mxu0 0
      %2311 = vmatpush1.bf16.msra.mxu0 0
      %2312 = vmatprep.subr.bf16.mxu0 0
      %2313 = vmatpush1.bf16.msra.mxu0 0
      %2314 = vmatprep.subr.bf16.mxu0 0
      %2315 = vmatpush1.bf16.msra.mxu0 0
      %2316 = vmatprep.subr.bf16.mxu0 0
      %2317 = vmatpush1.bf16.msra.mxu0 0
      %2318 = vmatprep.subr.bf16.mxu0 0
      %2319 = vmatpush1.bf16.msra.mxu0 0
      %2320 = vmatprep.subr.bf16.mxu0 0
      %2321 = vmatpush1.bf16.msra.mxu0 0
      %2322 = vmatprep.subr.bf16.mxu0 0
      %2323 = vmatpush1.bf16.msra.mxu0 0
      %2324 = vmatprep.subr.bf16.mxu0 0
      %2325 = vmatpush1.bf16.msra.mxu0 0
      %2326 = vmatprep.subr.bf16.mxu0 0
      %2327 = vmatpush1.bf16.msra.mxu0 0
      %2328 = vmatprep.subr.bf16.mxu0 0
      %2329 = vmatpush1.bf16.msra.mxu0 0
      %2330 = vmatprep.subr.bf16.mxu0 0
      %2331 = vmatpush1.bf16.msra.mxu0 0
      %2332 = vmatprep.subr.bf16.mxu0 0
      %2333 = vmatpush1.bf16.msra.mxu0 0
      %2334 = vmatprep.subr.bf16.mxu0 0
      %2335 = vmatpush1.bf16.msra.mxu0 0
      %2336 = vmatprep.subr.bf16.mxu0 0
      %2337 = vmatpush1.bf16.msra.mxu0 0
      %2338 = vmatprep.mubr.bf16.mxu0 0
      %2339 = vmatmul.mubr.bf16.gmra.mrb[0].mxu0 %v2304
      %v2340 = vpop.f32.mrb[0].mxu0
      %v2341 = vadd.f32 0.0, %v2340
      %v2342 = vpop.f32.mrb[0].mxu0
      %v2343 = vpop.f32.mrb[0].mxu0
      %v2344 = vadd.f32 0.0, %v2343
      %v2345 = vpop.f32.mrb[0].mxu0
      %2346 = vdwg.mxu0
      %v2347 = vadd.f32 %v2290, %v2341
      %v2348 = vadd.f32 %v2293, %v2344
      %v2349 = vld [vmem:[%s4 + $0xb0] sm:$0xff]
      %v2350 = vld [vmem:[%s4 + $0xb8] sm:$0xff]
      %2352 = vset.pattern.permute.xlu0 0
      %2353 = vperm.xlu0 %2352, %v2349
      %v2354 = vpop.permute.xlu0 %2353
      %2357 = vset.pattern.permute.xlu0 0
      %2358 = vperm.xlu0 %2357, %v2350
      %v2359 = vpop.permute.xlu0 %2358
      %v2361 = vadd.f32 %v2347, %v2354
      %v2362 = vadd.f32 %v2348, %v2359
      %v2363 = vld [vmem:[%s10] sm:$0xf]
      %v2364 = vld [vmem:[%s10 + $0x4] sm:$0xf]
      %v2365 = vld [vmem:[%s10 + $0x8] sm:$0xf]
      %v2366 = vld [vmem:[%s10 + $0xc] sm:$0xf]
      %v2367 = vld [vmem:[%s10 + $0x10] sm:$0xf]
      %v2368 = vld [vmem:[%s10 + $0x14] sm:$0xf]
      %v2369 = vld [vmem:[%s10 + $0x18] sm:$0xf]
      %v2370 = vld [vmem:[%s10 + $0x1c] sm:$0xf]
      %v2371 = vld [vmem:[%s10 + $0x20] sm:$0xf]
      %v2372 = vld [vmem:[%s10 + $0x24] sm:$0xf]
      %v2373 = vld [vmem:[%s10 + $0x28] sm:$0xf]
      %v2374 = vld [vmem:[%s10 + $0x2c] sm:$0xf]
      %v2375 = vld [vmem:[%s10 + $0x30] sm:$0xf]
      %v2376 = vld [vmem:[%s10 + $0x34] sm:$0xf]
      %v2377 = vld [vmem:[%s10 + $0x38] sm:$0xf]
      %v2378 = vld [vmem:[%s10 + $0x3c] sm:$0xf]
      %v2395 = vunpack.c.l.b16 %v2363
      %v2396 = vunpack.c.l.b16 %v2364
      %v2397 = vunpack.c.l.b16 %v2365
      %v2398 = vunpack.c.l.b16 %v2366
      %v2399 = vunpack.c.l.b16 %v2367
      %v2400 = vunpack.c.l.b16 %v2368
      %v2401 = vunpack.c.l.b16 %v2369
      %v2402 = vunpack.c.l.b16 %v2370
      %v2403 = vunpack.c.l.b16 %v2371
      %v2404 = vunpack.c.l.b16 %v2372
      %v2405 = vunpack.c.l.b16 %v2373
      %v2406 = vunpack.c.l.b16 %v2374
      %v2407 = vunpack.c.l.b16 %v2375
      %v2408 = vunpack.c.l.b16 %v2376
      %v2409 = vunpack.c.l.b16 %v2377
      %v2410 = vunpack.c.l.b16 %v2378
      %v2411 = vpack.c.b16 %v2396, %v2395
      %v2412 = vpack.c.b16 %v2398, %v2397
      %v2413 = vpack.c.b16 %v2400, %v2399
      %v2414 = vpack.c.b16 %v2402, %v2401
      %v2415 = vpack.c.b16 %v2404, %v2403
      %v2416 = vpack.c.b16 %v2406, %v2405
      %v2417 = vpack.c.b16 %v2408, %v2407
      %v2418 = vpack.c.b16 %v2410, %v2409
      %2427 = vmatprep.subr.bf16.mxu0 0
      %2428 = vmatpush1.bf16.msra.mxu0 %v2411
      %2429 = vmatprep.subr.bf16.mxu0 0
      %2430 = vmatpush1.bf16.msra.mxu0 %v2412
      %2431 = vmatprep.subr.bf16.mxu0 0
      %2432 = vmatpush1.bf16.msra.mxu0 %v2413
      %2433 = vmatprep.subr.bf16.mxu0 0
      %2434 = vmatpush1.bf16.msra.mxu0 %v2414
      %2435 = vmatprep.subr.bf16.mxu0 0
      %2436 = vmatpush1.bf16.msra.mxu0 %v2415
      %2437 = vmatprep.subr.bf16.mxu0 0
      %2438 = vmatpush1.bf16.msra.mxu0 %v2416
      %2439 = vmatprep.subr.bf16.mxu0 0
      %2440 = vmatpush1.bf16.msra.mxu0 %v2417
      %2441 = vmatprep.subr.bf16.mxu0 0
      %2442 = vmatpush1.bf16.msra.mxu0 %v2418
      %2443 = vmatprep.subr.bf16.mxu0 0
      %2444 = vmatpush1.bf16.msra.mxu0 0
      %2445 = vmatprep.subr.bf16.mxu0 0
      %2446 = vmatpush1.bf16.msra.mxu0 0
      %2447 = vmatprep.subr.bf16.mxu0 0
      %2448 = vmatpush1.bf16.msra.mxu0 0
      %2449 = vmatprep.subr.bf16.mxu0 0
      %2450 = vmatpush1.bf16.msra.mxu0 0
      %2451 = vmatprep.subr.bf16.mxu0 0
      %2452 = vmatpush1.bf16.msra.mxu0 0
      %2453 = vmatprep.subr.bf16.mxu0 0
      %2454 = vmatpush1.bf16.msra.mxu0 0
      %2455 = vmatprep.subr.bf16.mxu0 0
      %2456 = vmatpush1.bf16.msra.mxu0 0
      %2457 = vmatprep.subr.bf16.mxu0 0
      %2458 = vmatpush1.bf16.msra.mxu0 0
      %2459 = vmatprep.mubr.bf16.mxu0 0
      %2460 = vmatmul.mubr.bf16.gmra.mrb[0].mxu0 %v1524
      %v2461 = vpop.f32.mrb[0].mxu0
      %v2462 = vadd.f32 0.0, %v2461
      %v2463 = vpop.f32.mrb[0].mxu0
      %v2464 = vpop.f32.mrb[0].mxu0
      %v2465 = vpop.f32.mrb[0].mxu0
      %2466 = vdwg.mxu0
      %v2467 = vld [vmem:[%s3 + $0x54] sm:$0xf]
      %v2468 = vld [vmem:[%s3 + $0x58] sm:$0xf]
      %v2469 = vpack.c.bf16 %v2462, %v2462
      %v2471 = vsel %vm842, %v2468, 0
      %v2474 = vsel %vm846, %v2469, 0
      %2476 = vmatprep.subr.bf16.mxu0 0
      %2477 = vmatpush1.bf16.msra.mxu0 %v2474
      %2478 = vmatprep.subr.bf16.mxu0 0
      %2479 = vmatpush1.bf16.msra.mxu0 0
      %2480 = vmatprep.subr.bf16.mxu0 0
      %2481 = vmatpush1.bf16.msra.mxu0 0
      %2482 = vmatprep.subr.bf16.mxu0 0
      %2483 = vmatpush1.bf16.msra.mxu0 0
      %2484 = vmatprep.subr.bf16.mxu0 0
      %2485 = vmatpush1.bf16.msra.mxu0 0
      %2486 = vmatprep.subr.bf16.mxu0 0
      %2487 = vmatpush1.bf16.msra.mxu0 0
      %2488 = vmatprep.subr.bf16.mxu0 0
      %2489 = vmatpush1.bf16.msra.mxu0 0
      %2490 = vmatprep.subr.bf16.mxu0 0
      %2491 = vmatpush1.bf16.msra.mxu0 0
      %2492 = vmatprep.subr.bf16.mxu0 0
      %2493 = vmatpush1.bf16.msra.mxu0 0
      %2494 = vmatprep.subr.bf16.mxu0 0
      %2495 = vmatpush1.bf16.msra.mxu0 0
      %2496 = vmatprep.subr.bf16.mxu0 0
      %2497 = vmatpush1.bf16.msra.mxu0 0
      %2498 = vmatprep.subr.bf16.mxu0 0
      %2499 = vmatpush1.bf16.msra.mxu0 0
      %2500 = vmatprep.subr.bf16.mxu0 0
      %2501 = vmatpush1.bf16.msra.mxu0 0
      %2502 = vmatprep.subr.bf16.mxu0 0
      %2503 = vmatpush1.bf16.msra.mxu0 0
      %2504 = vmatprep.subr.bf16.mxu0 0
      %2505 = vmatpush1.bf16.msra.mxu0 0
      %2506 = vmatprep.subr.bf16.mxu0 0
      %2507 = vmatpush1.bf16.msra.mxu0 0
      %2508 = vmatprep.mubr.bf16.mxu0 0
      %2509 = vmatmul.mubr.bf16.gmra.mrb[0].mxu0 %v2471
      %v2510 = vpop.f32.mrb[0].mxu0
      %v2511 = vadd.f32 0.0, %v2510
      %v2512 = vpop.f32.mrb[0].mxu0
      %v2513 = vpop.f32.mrb[0].mxu0
      %v2514 = vpop.f32.mrb[0].mxu0
      %2515 = vdwg.mxu0
      %v2517 = vsel %vm842, %v2467, 0
      %2519 = vmatprep.subr.bf16.mxu0 0
      %2520 = vmatpush1.bf16.msra.mxu0 %v848
      %2521 = vmatprep.subr.bf16.mxu0 0
      %2522 = vmatpush1.bf16.msra.mxu0 0
      %2523 = vmatprep.subr.bf16.mxu0 0
      %2524 = vmatpush1.bf16.msra.mxu0 0
      %2525 = vmatprep.subr.bf16.mxu0 0
      %2526 = vmatpush1.bf16.msra.mxu0 0
      %2527 = vmatprep.subr.bf16.mxu0 0
      %2528 = vmatpush1.bf16.msra.mxu0 0
      %2529 = vmatprep.subr.bf16.mxu0 0
      %2530 = vmatpush1.bf16.msra.mxu0 0
      %2531 = vmatprep.subr.bf16.mxu0 0
      %2532 = vmatpush1.bf16.msra.mxu0 0
      %2533 = vmatprep.subr.bf16.mxu0 0
      %2534 = vmatpush1.bf16.msra.mxu0 0
      %2535 = vmatprep.subr.bf16.mxu0 0
      %2536 = vmatpush1.bf16.msra.mxu0 0
      %2537 = vmatprep.subr.bf16.mxu0 0
      %2538 = vmatpush1.bf16.msra.mxu0 0
      %2539 = vmatprep.subr.bf16.mxu0 0
      %2540 = vmatpush1.bf16.msra.mxu0 0
      %2541 = vmatprep.subr.bf16.mxu0 0
      %2542 = vmatpush1.bf16.msra.mxu0 0
      %2543 = vmatprep.subr.bf16.mxu0 0
      %2544 = vmatpush1.bf16.msra.mxu0 0
      %2545 = vmatprep.subr.bf16.mxu0 0
      %2546 = vmatpush1.bf16.msra.mxu0 0
      %2547 = vmatprep.subr.bf16.mxu0 0
      %2548 = vmatpush1.bf16.msra.mxu0 0
      %2549 = vmatprep.subr.bf16.mxu0 0
      %2550 = vmatpush1.bf16.msra.mxu0 0
      %2551 = vmatprep.mubr.bf16.mxu0 0
      %2552 = vmatmul.mubr.bf16.gmra.mrb[0].mxu0 %v2517
      %v2553 = vpop.f32.mrb[0].mxu0
      %v2554 = vadd.f32 %v2511, %v2553
      %v2555 = vpop.f32.mrb[0].mxu0
      %v2556 = vpop.f32.mrb[0].mxu0
      %v2557 = vpop.f32.mrb[0].mxu0
      %2558 = vdwg.mxu0
      %v2559 = vld [vmem:[%s3 + $0x5c] sm:$0xf]
      %v2561 = vsel %vm842, %v2559, 0
      %2563 = vmatprep.subr.bf16.mxu0 0
      %2564 = vmatpush1.bf16.msra.mxu0 %v1949
      %2565 = vmatprep.subr.bf16.mxu0 0
      %2566 = vmatpush1.bf16.msra.mxu0 0
      %2567 = vmatprep.subr.bf16.mxu0 0
      %2568 = vmatpush1.bf16.msra.mxu0 0
      %2569 = vmatprep.subr.bf16.mxu0 0
      %2570 = vmatpush1.bf16.msra.mxu0 0
      %2571 = vmatprep.subr.bf16.mxu0 0
      %2572 = vmatpush1.bf16.msra.mxu0 0
      %2573 = vmatprep.subr.bf16.mxu0 0
      %2574 = vmatpush1.bf16.msra.mxu0 0
      %2575 = vmatprep.subr.bf16.mxu0 0
      %2576 = vmatpush1.bf16.msra.mxu0 0
      %2577 = vmatprep.subr.bf16.mxu0 0
      %2578 = vmatpush1.bf16.msra.mxu0 0
      %2579 = vmatprep.subr.bf16.mxu0 0
      %2580 = vmatpush1.bf16.msra.mxu0 0
      %2581 = vmatprep.subr.bf16.mxu0 0
      %2582 = vmatpush1.bf16.msra.mxu0 0
      %2583 = vmatprep.subr.bf16.mxu0 0
      %2584 = vmatpush1.bf16.msra.mxu0 0
      %2585 = vmatprep.subr.bf16.mxu0 0
      %2586 = vmatpush1.bf16.msra.mxu0 0
      %2587 = vmatprep.subr.bf16.mxu0 0
      %2588 = vmatpush1.bf16.msra.mxu0 0
      %2589 = vmatprep.subr.bf16.mxu0 0
      %2590 = vmatpush1.bf16.msra.mxu0 0
      %2591 = vmatprep.subr.bf16.mxu0 0
      %2592 = vmatpush1.bf16.msra.mxu0 0
      %2593 = vmatprep.subr.bf16.mxu0 0
      %2594 = vmatpush1.bf16.msra.mxu0 0
      %2595 = vmatprep.mubr.bf16.mxu0 0
      %2596 = vmatmul.mubr.bf16.gmra.mrb[0].mxu0 %v2561
      %v2597 = vpop.f32.mrb[0].mxu0
      %v2598 = vadd.f32 0.0, %v2597
      %v2599 = vpop.f32.mrb[0].mxu0
      %v2600 = vpop.f32.mrb[0].mxu0
      %v2601 = vpop.f32.mrb[0].mxu0
      %2602 = vdwg.mxu0
      %v2603 = vadd.f32 %v2554, %v2598
      %v2604 = vld [vmem:[%s4 + $0xa8] sm:$0xff]
      %2606 = vset.pattern.permute.xlu0 0
      %2607 = vperm.xlu0 %2606, %v2604
      %v2608 = vpop.permute.xlu0 %2607
      %v2610 = vadd.f32 %v2603, %v2608
      %v2611 = vld [vmem:[%s11] sm:$0xf]
      %v2612 = vld [vmem:[%s11 + $0x4] sm:$0xf]
      %v2613 = vld [vmem:[%s11 + $0x8] sm:$0xf]
      %v2614 = vld [vmem:[%s11 + $0xc] sm:$0xf]
      %v2615 = vld [vmem:[%s11 + $0x10] sm:$0xf]
      %v2616 = vld [vmem:[%s11 + $0x14] sm:$0xf]
      %v2617 = vld [vmem:[%s11 + $0x18] sm:$0xf]
      %v2618 = vld [vmem:[%s11 + $0x1c] sm:$0xf]
      %v2627 = vunpack.c.l.b16 %v2611
      %v2628 = vunpack.c.l.b16 %v2612
      %v2629 = vunpack.c.l.b16 %v2613
      %v2630 = vunpack.c.l.b16 %v2614
      %v2631 = vunpack.c.l.b16 %v2615
      %v2632 = vunpack.c.l.b16 %v2616
      %v2633 = vunpack.c.l.b16 %v2617
      %v2634 = vunpack.c.l.b16 %v2618
      %v2635 = vpack.c.b16 %v2628, %v2627
      %v2636 = vpack.c.b16 %v2630, %v2629
      %v2637 = vpack.c.b16 %v2632, %v2631
      %v2638 = vpack.c.b16 %v2634, %v2633
      %v2643 = vsel %vm926, %v824, 0
      %2645 = vmatprep.subr.bf16.mxu0 0
      %2646 = vmatpush1.bf16.msra.mxu0 %v2635
      %2647 = vmatprep.subr.bf16.mxu0 0
      %2648 = vmatpush1.bf16.msra.mxu0 %v2636
      %2649 = vmatprep.subr.bf16.mxu0 0
      %2650 = vmatpush1.bf16.msra.mxu0 %v2637
      %2651 = vmatprep.subr.bf16.mxu0 0
      %2652 = vmatpush1.bf16.msra.mxu0 %v2638
      %2653 = vmatprep.subr.bf16.mxu0 0
      %2654 = vmatpush1.bf16.msra.mxu0 0
      %2655 = vmatprep.subr.bf16.mxu0 0
      %2656 = vmatpush1.bf16.msra.mxu0 0
      %2657 = vmatprep.subr.bf16.mxu0 0
      %2658 = vmatpush1.bf16.msra.mxu0 0
      %2659 = vmatprep.subr.bf16.mxu0 0
      %2660 = vmatpush1.bf16.msra.mxu0 0
      %2661 = vmatprep.subr.bf16.mxu0 0
      %2662 = vmatpush1.bf16.msra.mxu0 0
      %2663 = vmatprep.subr.bf16.mxu0 0
      %2664 = vmatpush1.bf16.msra.mxu0 0
      %2665 = vmatprep.subr.bf16.mxu0 0
      %2666 = vmatpush1.bf16.msra.mxu0 0
      %2667 = vmatprep.subr.bf16.mxu0 0
      %2668 = vmatpush1.bf16.msra.mxu0 0
      %2669 = vmatprep.subr.bf16.mxu0 0
      %2670 = vmatpush1.bf16.msra.mxu0 0
      %2671 = vmatprep.subr.bf16.mxu0 0
      %2672 = vmatpush1.bf16.msra.mxu0 0
      %2673 = vmatprep.subr.bf16.mxu0 0
      %2674 = vmatpush1.bf16.msra.mxu0 0
      %2675 = vmatprep.subr.bf16.mxu0 0
      %2676 = vmatpush1.bf16.msra.mxu0 0
      %2677 = vmatprep.mubr.bf16.mxu0 0
      %2678 = vmatmul.mubr.bf16.gmra.mrb[0].mxu0 %v2643
      %v2679 = vpop.f32.mrb[0].mxu0
      %v2680 = vadd.f32 0.0, %v2679
      %v2681 = vpop.f32.mrb[0].mxu0
      %v2682 = vpop.f32.mrb[0].mxu0
      %v2683 = vpop.f32.mrb[0].mxu0
      %2684 = vdwg.mxu0
      %v2685 = vsel %vm926, %v1927, 0
      %2687 = vmatprep.subr.bf16.mxu0 0
      %2688 = vmatpush1.bf16.msra.mxu0 %v2635
      %2689 = vmatprep.subr.bf16.mxu0 0
      %2690 = vmatpush1.bf16.msra.mxu0 %v2636
      %2691 = vmatprep.subr.bf16.mxu0 0
      %2692 = vmatpush1.bf16.msra.mxu0 %v2637
      %2693 = vmatprep.subr.bf16.mxu0 0
      %2694 = vmatpush1.bf16.msra.mxu0 %v2638
      %2695 = vmatprep.subr.bf16.mxu0 0
      %2696 = vmatpush1.bf16.msra.mxu0 0
      %2697 = vmatprep.subr.bf16.mxu0 0
      %2698 = vmatpush1.bf16.msra.mxu0 0
      %2699 = vmatprep.subr.bf16.mxu0 0
      %2700 = vmatpush1.bf16.msra.mxu0 0
      %2701 = vmatprep.subr.bf16.mxu0 0
      %2702 = vmatpush1.bf16.msra.mxu0 0
      %2703 = vmatprep.subr.bf16.mxu0 0
      %2704 = vmatpush1.bf16.msra.mxu0 0
      %2705 = vmatprep.subr.bf16.mxu0 0
      %2706 = vmatpush1.bf16.msra.mxu0 0
      %2707 = vmatprep.subr.bf16.mxu0 0
      %2708 = vmatpush1.bf16.msra.mxu0 0
      %2709 = vmatprep.subr.bf16.mxu0 0
      %2710 = vmatpush1.bf16.msra.mxu0 0
      %2711 = vmatprep.subr.bf16.mxu0 0
      %2712 = vmatpush1.bf16.msra.mxu0 0
      %2713 = vmatprep.subr.bf16.mxu0 0
      %2714 = vmatpush1.bf16.msra.mxu0 0
      %2715 = vmatprep.subr.bf16.mxu0 0
      %2716 = vmatpush1.bf16.msra.mxu0 0
      %2717 = vmatprep.subr.bf16.mxu0 0
      %2718 = vmatpush1.bf16.msra.mxu0 0
      %2719 = vmatprep.mubr.bf16.mxu0 0
      %2720 = vmatmul.mubr.bf16.gmra.mrb[0].mxu0 %v2685
      %v2721 = vpop.f32.mrb[0].mxu0
      %v2722 = vadd.f32 0.0, %v2721
      %v2723 = vpop.f32.mrb[0].mxu0
      %v2724 = vpop.f32.mrb[0].mxu0
      %v2725 = vpop.f32.mrb[0].mxu0
      %2726 = vdwg.mxu0
      %v2727 = vpack.c.bf16 %v2680, %v2680
      %2728 = vmatprep.subr.bf16.mxu0 0
      %2729 = vmatpush1.bf16.msra.mxu0 %v1546
      %2730 = vmatprep.subr.bf16.mxu0 0
      %2731 = vmatpush1.bf16.msra.mxu0 0
      %2732 = vmatprep.subr.bf16.mxu0 0
      %2733 = vmatpush1.bf16.msra.mxu0 0
      %2734 = vmatprep.subr.bf16.mxu0 0
      %2735 = vmatpush1.bf16.msra.mxu0 0
      %2736 = vmatprep.subr.bf16.mxu0 0
      %2737 = vmatpush1.bf16.msra.mxu0 0
      %2738 = vmatprep.subr.bf16.mxu0 0
      %2739 = vmatpush1.bf16.msra.mxu0 0
      %2740 = vmatprep.subr.bf16.mxu0 0
      %2741 = vmatpush1.bf16.msra.mxu0 0
      %2742 = vmatprep.subr.bf16.mxu0 0
      %2743 = vmatpush1.bf16.msra.mxu0 0
      %2744 = vmatprep.subr.bf16.mxu0 0
      %2745 = vmatpush1.bf16.msra.mxu0 0
      %2746 = vmatprep.subr.bf16.mxu0 0
      %2747 = vmatpush1.bf16.msra.mxu0 0
      %2748 = vmatprep.subr.bf16.mxu0 0
      %2749 = vmatpush1.bf16.msra.mxu0 0
      %2750 = vmatprep.subr.bf16.mxu0 0
      %2751 = vmatpush1.bf16.msra.mxu0 0
      %2752 = vmatprep.subr.bf16.mxu0 0
      %2753 = vmatpush1.bf16.msra.mxu0 0
      %2754 = vmatprep.subr.bf16.mxu0 0
      %2755 = vmatpush1.bf16.msra.mxu0 0
      %2756 = vmatprep.subr.bf16.mxu0 0
      %2757 = vmatpush1.bf16.msra.mxu0 0
      %2758 = vmatprep.subr.bf16.mxu0 0
      %2759 = vmatpush1.bf16.msra.mxu0 0
      %2760 = vmatprep.mubr.bf16.mxu0 0
      %2761 = vmatmul.mubr.bf16.gmra.mrb[0].mxu0 %v2471
      %v2762 = vpop.f32.mrb[0].mxu0
      %v2763 = vadd.f32 0.0, %v2762
      %v2764 = vpop.f32.mrb[0].mxu0
      %v2765 = vpop.f32.mrb[0].mxu0
      %v2766 = vpop.f32.mrb[0].mxu0
      %2767 = vdwg.mxu0
      %v2769 = vsel %vm846, %v2727, 0
      %2771 = vmatprep.subr.bf16.mxu0 0
      %2772 = vmatpush1.bf16.msra.mxu0 %v2769
      %2773 = vmatprep.subr.bf16.mxu0 0
      %2774 = vmatpush1.bf16.msra.mxu0 0
      %2775 = vmatprep.subr.bf16.mxu0 0
      %2776 = vmatpush1.bf16.msra.mxu0 0
      %2777 = vmatprep.subr.bf16.mxu0 0
      %2778 = vmatpush1.bf16.msra.mxu0 0
      %2779 = vmatprep.subr.bf16.mxu0 0
      %2780 = vmatpush1.bf16.msra.mxu0 0
      %2781 = vmatprep.subr.bf16.mxu0 0
      %2782 = vmatpush1.bf16.msra.mxu0 0
      %2783 = vmatprep.subr.bf16.mxu0 0
      %2784 = vmatpush1.bf16.msra.mxu0 0
      %2785 = vmatprep.subr.bf16.mxu0 0
      %2786 = vmatpush1.bf16.msra.mxu0 0
      %2787 = vmatprep.subr.bf16.mxu0 0
      %2788 = vmatpush1.bf16.msra.mxu0 0
      %2789 = vmatprep.subr.bf16.mxu0 0
      %2790 = vmatpush1.bf16.msra.mxu0 0
      %2791 = vmatprep.subr.bf16.mxu0 0
      %2792 = vmatpush1.bf16.msra.mxu0 0
      %2793 = vmatprep.subr.bf16.mxu0 0
      %2794 = vmatpush1.bf16.msra.mxu0 0
      %2795 = vmatprep.subr.bf16.mxu0 0
      %2796 = vmatpush1.bf16.msra.mxu0 0
      %2797 = vmatprep.subr.bf16.mxu0 0
      %2798 = vmatpush1.bf16.msra.mxu0 0
      %2799 = vmatprep.subr.bf16.mxu0 0
      %2800 = vmatpush1.bf16.msra.mxu0 0
      %2801 = vmatprep.subr.bf16.mxu0 0
      %2802 = vmatpush1.bf16.msra.mxu0 0
      %2803 = vmatprep.mubr.bf16.mxu0 0
      %2804 = vmatmul.mubr.bf16.gmra.mrb[0].mxu0 %v2517
      %v2805 = vpop.f32.mrb[0].mxu0
      %v2806 = vadd.f32 %v2763, %v2805
      %v2807 = vpop.f32.mrb[0].mxu0
      %v2808 = vpop.f32.mrb[0].mxu0
      %v2809 = vpop.f32.mrb[0].mxu0
      %2810 = vdwg.mxu0
      %v2811 = vpack.c.bf16 %v2722, %v2722
      %v2813 = vsel %vm846, %v2811, 0
      %2815 = vmatprep.subr.bf16.mxu0 0
      %2816 = vmatpush1.bf16.msra.mxu0 %v2813
      %2817 = vmatprep.subr.bf16.mxu0 0
      %2818 = vmatpush1.bf16.msra.mxu0 0
      %2819 = vmatprep.subr.bf16.mxu0 0
      %2820 = vmatpush1.bf16.msra.mxu0 0
      %2821 = vmatprep.subr.bf16.mxu0 0
      %2822 = vmatpush1.bf16.msra.mxu0 0
      %2823 = vmatprep.subr.bf16.mxu0 0
      %2824 = vmatpush1.bf16.msra.mxu0 0
      %2825 = vmatprep.subr.bf16.mxu0 0
      %2826 = vmatpush1.bf16.msra.mxu0 0
      %2827 = vmatprep.subr.bf16.mxu0 0
      %2828 = vmatpush1.bf16.msra.mxu0 0
      %2829 = vmatprep.subr.bf16.mxu0 0
      %2830 = vmatpush1.bf16.msra.mxu0 0
      %2831 = vmatprep.subr.bf16.mxu0 0
      %2832 = vmatpush1.bf16.msra.mxu0 0
      %2833 = vmatprep.subr.bf16.mxu0 0
      %2834 = vmatpush1.bf16.msra.mxu0 0
      %2835 = vmatprep.subr.bf16.mxu0 0
      %2836 = vmatpush1.bf16.msra.mxu0 0
      %2837 = vmatprep.subr.bf16.mxu0 0
      %2838 = vmatpush1.bf16.msra.mxu0 0
      %2839 = vmatprep.subr.bf16.mxu0 0
      %2840 = vmatpush1.bf16.msra.mxu0 0
      %2841 = vmatprep.subr.bf16.mxu0 0
      %2842 = vmatpush1.bf16.msra.mxu0 0
      %2843 = vmatprep.subr.bf16.mxu0 0
      %2844 = vmatpush1.bf16.msra.mxu0 0
      %2845 = vmatprep.subr.bf16.mxu0 0
      %2846 = vmatpush1.bf16.msra.mxu0 0
      %2847 = vmatprep.mubr.bf16.mxu0 0
      %2848 = vmatmul.mubr.bf16.gmra.mrb[0].mxu0 %v2561
      %v2849 = vpop.f32.mrb[0].mxu0
      %v2850 = vadd.f32 0.0, %v2849
      %v2851 = vpop.f32.mrb[0].mxu0
      %v2852 = vpop.f32.mrb[0].mxu0
      %v2853 = vpop.f32.mrb[0].mxu0
      %2854 = vdwg.mxu0
      %v2855 = vadd.f32 %v2806, %v2850
      %v2856 = vadd.f32 %v2855, %v2608
      %v2857 = vld [vmem:[%s3 + $0x78] sm:$0xf]
      %v2858 = vld [vmem:[%s3 + $0x7c] sm:$0xf]
      %v2859 = vpack.c.bf16 %v1124, %v1121
      %v2860 = vpack.c.bf16 %v1132, %v1129
      %v2861 = vld [vmem:[%s3 + $0x80] sm:$0xf]
      %v2862 = vld [vmem:[%s3 + $0x84] sm:$0xf]
      %v2863 = vpack.c.bf16 %v1841, %v1838
      %v2864 = vpack.c.bf16 %v1849, %v1846
      %v2867 = vunpack.c.l.b16 %v2861
      %v2868 = vunpack.c.l.b16 %v2862
      %v2869 = vpack.c.b16 %v2868, %v2867
      %vm2870 = vcmask 261120
      %v2872 = vsel %vm2870, %v2869, 0
      %2874 = vmatprep.subr.bf16.mxu0 0
      %2875 = vmatpush1.bf16.msra.mxu0 %v2863
      %2876 = vmatprep.subr.bf16.mxu0 0
      %2877 = vmatpush1.bf16.msra.mxu0 %v2864
      %2878 = vmatprep.subr.bf16.mxu0 0
      %2879 = vmatpush1.bf16.msra.mxu0 0
      %2880 = vmatprep.subr.bf16.mxu0 0
      %2881 = vmatpush1.bf16.msra.mxu0 0
      %2882 = vmatprep.subr.bf16.mxu0 0
      %2883 = vmatpush1.bf16.msra.mxu0 0
      %2884 = vmatprep.subr.bf16.mxu0 0
      %2885 = vmatpush1.bf16.msra.mxu0 0
      %2886 = vmatprep.subr.bf16.mxu0 0
      %2887 = vmatpush1.bf16.msra.mxu0 0
      %2888 = vmatprep.subr.bf16.mxu0 0
      %2889 = vmatpush1.bf16.msra.mxu0 0
      %2890 = vmatprep.subr.bf16.mxu0 0
      %2891 = vmatpush1.bf16.msra.mxu0 0
      %2892 = vmatprep.subr.bf16.mxu0 0
      %2893 = vmatpush1.bf16.msra.mxu0 0
      %2894 = vmatprep.subr.bf16.mxu0 0
      %2895 = vmatpush1.bf16.msra.mxu0 0
      %2896 = vmatprep.subr.bf16.mxu0 0
      %2897 = vmatpush1.bf16.msra.mxu0 0
      %2898 = vmatprep.subr.bf16.mxu0 0
      %2899 = vmatpush1.bf16.msra.mxu0 0
      %2900 = vmatprep.subr.bf16.mxu0 0
      %2901 = vmatpush1.bf16.msra.mxu0 0
      %2902 = vmatprep.subr.bf16.mxu0 0
      %2903 = vmatpush1.bf16.msra.mxu0 0
      %2904 = vmatprep.subr.bf16.mxu0 0
      %2905 = vmatpush1.bf16.msra.mxu0 0
      %2906 = vmatprep.mubr.bf16.mxu0 0
      %2907 = vmatmul.mubr.bf16.gmra.mrb[0].mxu0 %v2872
      %v2908 = vpop.f32.mrb[0].mxu0
      %v2909 = vadd.f32 0.0, %v2908
      %v2910 = vpop.f32.mrb[0].mxu0
      %v2911 = vpop.f32.mrb[0].mxu0
      %v2912 = vadd.f32 0.0, %v2911
      %v2913 = vpop.f32.mrb[0].mxu0
      %2914 = vdwg.mxu0
      %v2917 = vunpack.c.l.b16 %v2857
      %v2918 = vunpack.c.l.b16 %v2858
      %v2919 = vpack.c.b16 %v2918, %v2917
      %v2921 = vsel %vm2870, %v2919, 0
      %2923 = vmatprep.subr.bf16.mxu0 0
      %2924 = vmatpush1.bf16.msra.mxu0 %v2859
      %2925 = vmatprep.subr.bf16.mxu0 0
      %2926 = vmatpush1.bf16.msra.mxu0 %v2860
      %2927 = vmatprep.subr.bf16.mxu0 0
      %2928 = vmatpush1.bf16.msra.mxu0 0
      %2929 = vmatprep.subr.bf16.mxu0 0
      %2930 = vmatpush1.bf16.msra.mxu0 0
      %2931 = vmatprep.subr.bf16.mxu0 0
      %2932 = vmatpush1.bf16.msra.mxu0 0
      %2933 = vmatprep.subr.bf16.mxu0 0
      %2934 = vmatpush1.bf16.msra.mxu0 0
      %2935 = vmatprep.subr.bf16.mxu0 0
      %2936 = vmatpush1.bf16.msra.mxu0 0
      %2937 = vmatprep.subr.bf16.mxu0 0
      %2938 = vmatpush1.bf16.msra.mxu0 0
      %2939 = vmatprep.subr.bf16.mxu0 0
      %2940 = vmatpush1.bf16.msra.mxu0 0
      %2941 = vmatprep.subr.bf16.mxu0 0
      %2942 = vmatpush1.bf16.msra.mxu0 0
      %2943 = vmatprep.subr.bf16.mxu0 0
      %2944 = vmatpush1.bf16.msra.mxu0 0
      %2945 = vmatprep.subr.bf16.mxu0 0
      %2946 = vmatpush1.bf16.msra.mxu0 0
      %2947 = vmatprep.subr.bf16.mxu0 0
      %2948 = vmatpush1.bf16.msra.mxu0 0
      %2949 = vmatprep.subr.bf16.mxu0 0
      %2950 = vmatpush1.bf16.msra.mxu0 0
      %2951 = vmatprep.subr.bf16.mxu0 0
      %2952 = vmatpush1.bf16.msra.mxu0 0
      %2953 = vmatprep.subr.bf16.mxu0 0
      %2954 = vmatpush1.bf16.msra.mxu0 0
      %2955 = vmatprep.mubr.bf16.mxu0 0
      %2956 = vmatmul.mubr.bf16.gmra.mrb[0].mxu0 %v2921
      %v2957 = vpop.f32.mrb[0].mxu0
      %v2958 = vadd.f32 %v2909, %v2957
      %v2959 = vpop.f32.mrb[0].mxu0
      %v2960 = vpop.f32.mrb[0].mxu0
      %v2961 = vadd.f32 %v2912, %v2960
      %v2962 = vpop.f32.mrb[0].mxu0
      %2963 = vdwg.mxu0
      %v2964 = vld [vmem:[%s3 + $0x88] sm:$0xf]
      %v2965 = vld [vmem:[%s3 + $0x8c] sm:$0xf]
      %v2966 = vpack.c.bf16 %v2183, %v2180
      %v2967 = vpack.c.bf16 %v2191, %v2188
      %v2970 = vunpack.c.l.b16 %v2964
      %v2971 = vunpack.c.l.b16 %v2965
      %v2972 = vpack.c.b16 %v2971, %v2970
      %v2974 = vsel %vm2870, %v2972, 0
      %2976 = vmatprep.subr.bf16.mxu0 0
      %2977 = vmatpush1.bf16.msra.mxu0 %v2966
      %2978 = vmatprep.subr.bf16.mxu0 0
      %2979 = vmatpush1.bf16.msra.mxu0 %v2967
      %2980 = vmatprep.subr.bf16.mxu0 0
      %2981 = vmatpush1.bf16.msra.mxu0 0
      %2982 = vmatprep.subr.bf16.mxu0 0
      %2983 = vmatpush1.bf16.msra.mxu0 0
      %2984 = vmatprep.subr.bf16.mxu0 0
      %2985 = vmatpush1.bf16.msra.mxu0 0
      %2986 = vmatprep.subr.bf16.mxu0 0
      %2987 = vmatpush1.bf16.msra.mxu0 0
      %2988 = vmatprep.subr.bf16.mxu0 0
      %2989 = vmatpush1.bf16.msra.mxu0 0
      %2990 = vmatprep.subr.bf16.mxu0 0
      %2991 = vmatpush1.bf16.msra.mxu0 0
      %2992 = vmatprep.subr.bf16.mxu0 0
      %2993 = vmatpush1.bf16.msra.mxu0 0
      %2994 = vmatprep.subr.bf16.mxu0 0
      %2995 = vmatpush1.bf16.msra.mxu0 0
      %2996 = vmatprep.subr.bf16.mxu0 0
      %2997 = vmatpush1.bf16.msra.mxu0 0
      %2998 = vmatprep.subr.bf16.mxu0 0
      %2999 = vmatpush1.bf16.msra.mxu0 0
      %3000 = vmatprep.subr.bf16.mxu0 0
      %3001 = vmatpush1.bf16.msra.mxu0 0
      %3002 = vmatprep.subr.bf16.mxu0 0
      %3003 = vmatpush1.bf16.msra.mxu0 0
      %3004 = vmatprep.subr.bf16.mxu0 0
      %3005 = vmatpush1.bf16.msra.mxu0 0
      %3006 = vmatprep.subr.bf16.mxu0 0
      %3007 = vmatpush1.bf16.msra.mxu0 0
      %3008 = vmatprep.mubr.bf16.mxu0 0
      %3009 = vmatmul.mubr.bf16.gmra.mrb[0].mxu0 %v2974
      %v3010 = vpop.f32.mrb[0].mxu0
      %v3011 = vadd.f32 0.0, %v3010
      %v3012 = vpop.f32.mrb[0].mxu0
      %v3013 = vpop.f32.mrb[0].mxu0
      %v3014 = vadd.f32 0.0, %v3013
      %v3015 = vpop.f32.mrb[0].mxu0
      %3016 = vdwg.mxu0
      %v3017 = vadd.f32 %v2958, %v3011
      %v3018 = vadd.f32 %v2961, %v3014
      %v3019 = vpack.c.bf16 %v3018, %v3017
      %v3020 = vld [vmem:[%s12] sm:$0x3]
      %v3021 = vld [vmem:[%s3 + $0x90] sm:$0xf]
      %v3022 = vld [vmem:[%s3 + $0x94] sm:$0xf]
      %v3023 = vpack.c.bf16 %v2362, %v2361
      %v3026 = vunpack.c.l.b16 %v3021
      %v3027 = vunpack.c.l.b16 %v3022
      %v3028 = vpack.c.b16 %v3027, %v3026
      %v3030 = vsel %vm1010, %v3028, 0
      %3032 = vmatprep.subr.bf16.mxu0 0
      %3033 = vmatpush1.bf16.msra.mxu0 %v3023
      %3034 = vmatprep.subr.bf16.mxu0 0
      %3035 = vmatpush1.bf16.msra.mxu0 0
      %3036 = vmatprep.subr.bf16.mxu0 0
      %3037 = vmatpush1.bf16.msra.mxu0 0
      %3038 = vmatprep.subr.bf16.mxu0 0
      %3039 = vmatpush1.bf16.msra.mxu0 0
      %3040 = vmatprep.subr.bf16.mxu0 0
      %3041 = vmatpush1.bf16.msra.mxu0 0
      %3042 = vmatprep.subr.bf16.mxu0 0
      %3043 = vmatpush1.bf16.msra.mxu0 0
      %3044 = vmatprep.subr.bf16.mxu0 0
      %3045 = vmatpush1.bf16.msra.mxu0 0
      %3046 = vmatprep.subr.bf16.mxu0 0
      %3047 = vmatpush1.bf16.msra.mxu0 0
      %3048 = vmatprep.subr.bf16.mxu0 0
      %3049 = vmatpush1.bf16.msra.mxu0 0
      %3050 = vmatprep.subr.bf16.mxu0 0
      %3051 = vmatpush1.bf16.msra.mxu0 0
      %3052 = vmatprep.subr.bf16.mxu0 0
      %3053 = vmatpush1.bf16.msra.mxu0 0
      %3054 = vmatprep.subr.bf16.mxu0 0
      %3055 = vmatpush1.bf16.msra.mxu0 0
      %3056 = vmatprep.subr.bf16.mxu0 0
      %3057 = vmatpush1.bf16.msra.mxu0 0
      %3058 = vmatprep.subr.bf16.mxu0 0
      %3059 = vmatpush1.bf16.msra.mxu0 0
      %3060 = vmatprep.subr.bf16.mxu0 0
      %3061 = vmatpush1.bf16.msra.mxu0 0
      %3062 = vmatprep.subr.bf16.mxu0 0
      %3063 = vmatpush1.bf16.msra.mxu0 0
      %3064 = vmatprep.mubr.bf16.mxu0 0
      %3065 = vmatmul.mubr.bf16.gmra.mrb[0].mxu0 %v3030
      %v3066 = vpop.f32.mrb[0].mxu0
      %v3067 = vadd.f32 0.0, %v3066
      %v3068 = vpop.f32.mrb[0].mxu0
      %v3069 = vpop.f32.mrb[0].mxu0
      %v3070 = vadd.f32 0.0, %v3069
      %v3071 = vpop.f32.mrb[0].mxu0
      %3072 = vdwg.mxu0
      %vm3073 = vcmask 31744
      %v3075 = vsel %vm3073, %v3019, 0
      %vm3077 = vcmask 1041408
      %v3079 = vsel %vm3077, %v3020, 0
      %3081 = vmatprep.subr.bf16.mxu0 0
      %3082 = vmatpush1.bf16.msra.mxu0 %v3079
      %3083 = vmatprep.subr.bf16.mxu0 0
      %3084 = vmatpush1.bf16.msra.mxu0 0
      %3085 = vmatprep.subr.bf16.mxu0 0
      %3086 = vmatpush1.bf16.msra.mxu0 0
      %3087 = vmatprep.subr.bf16.mxu0 0
      %3088 = vmatpush1.bf16.msra.mxu0 0
      %3089 = vmatprep.subr.bf16.mxu0 0
      %3090 = vmatpush1.bf16.msra.mxu0 0
      %3091 = vmatprep.subr.bf16.mxu0 0
      %3092 = vmatpush1.bf16.msra.mxu0 0
      %3093 = vmatprep.subr.bf16.mxu0 0
      %3094 = vmatpush1.bf16.msra.mxu0 0
      %3095 = vmatprep.subr.bf16.mxu0 0
      %3096 = vmatpush1.bf16.msra.mxu0 0
      %3097 = vmatprep.subr.bf16.mxu0 0
      %3098 = vmatpush1.bf16.msra.mxu0 0
      %3099 = vmatprep.subr.bf16.mxu0 0
      %3100 = vmatpush1.bf16.msra.mxu0 0
      %3101 = vmatprep.subr.bf16.mxu0 0
      %3102 = vmatpush1.bf16.msra.mxu0 0
      %3103 = vmatprep.subr.bf16.mxu0 0
      %3104 = vmatpush1.bf16.msra.mxu0 0
      %3105 = vmatprep.subr.bf16.mxu0 0
      %3106 = vmatpush1.bf16.msra.mxu0 0
      %3107 = vmatprep.subr.bf16.mxu0 0
      %3108 = vmatpush1.bf16.msra.mxu0 0
      %3109 = vmatprep.subr.bf16.mxu0 0
      %3110 = vmatpush1.bf16.msra.mxu0 0
      %3111 = vmatprep.subr.bf16.mxu0 0
      %3112 = vmatpush1.bf16.msra.mxu0 0
      %3113 = vmatprep.mubr.bf16.mxu0 0
      %3114 = vmatmul.mubr.bf16.gmra.mrb[0].mxu0 %v3075
      %v3115 = vpop.f32.mrb[0].mxu0
      %v3116 = vadd.f32 %v3067, %v3115
      %v3117 = vpop.f32.mrb[0].mxu0
      %v3118 = vpop.f32.mrb[0].mxu0
      %v3119 = vadd.f32 %v3070, %v3118
      %v3120 = vpop.f32.mrb[0].mxu0
      %3121 = vdwg.mxu0
      %v3122 = vld [vmem:[%s4 + $0xc0] sm:$0xff]
      %v3123 = vld [vmem:[%s4 + $0xc8] sm:$0xff]
      %3125 = vset.pattern.permute.xlu0 0
      %3126 = vperm.xlu0 %3125, %v3122
      %v3127 = vpop.permute.xlu0 %3126
      %3130 = vset.pattern.permute.xlu0 0
      %3131 = vperm.xlu0 %3130, %v3123
      %v3132 = vpop.permute.xlu0 %3131
      %v3134 = vadd.f32 %v3116, %v3127
      %v3135 = vadd.f32 %v3119, %v3132
      %v3136 = vmax.f32 %v3134, 0.0
      %v3137 = vmax.f32 %v3135, 0.0
      %v3138 = vld [vmem:[%s3 + $0x98] sm:$0xf]
      %v3139 = vpack.c.bf16 %v3137, %v3136
      %v3141 = vsel %vm1010, %v3138, 0
      %3143 = vmatprep.subr.bf16.mxu0 0
      %3144 = vmatpush1.bf16.msra.mxu0 %v3139
      %3145 = vmatprep.subr.bf16.mxu0 0
      %3146 = vmatpush1.bf16.msra.mxu0 0
      %3147 = vmatprep.subr.bf16.mxu0 0
      %3148 = vmatpush1.bf16.msra.mxu0 0
      %3149 = vmatprep.subr.bf16.mxu0 0
      %3150 = vmatpush1.bf16.msra.mxu0 0
      %3151 = vmatprep.subr.bf16.mxu0 0
      %3152 = vmatpush1.bf16.msra.mxu0 0
      %3153 = vmatprep.subr.bf16.mxu0 0
      %3154 = vmatpush1.bf16.msra.mxu0 0
      %3155 = vmatprep.subr.bf16.mxu0 0
      %3156 = vmatpush1.bf16.msra.mxu0 0
      %3157 = vmatprep.subr.bf16.mxu0 0
      %3158 = vmatpush1.bf16.msra.mxu0 0
      %3159 = vmatprep.subr.bf16.mxu0 0
      %3160 = vmatpush1.bf16.msra.mxu0 0
      %3161 = vmatprep.subr.bf16.mxu0 0
      %3162 = vmatpush1.bf16.msra.mxu0 0
      %3163 = vmatprep.subr.bf16.mxu0 0
      %3164 = vmatpush1.bf16.msra.mxu0 0
      %3165 = vmatprep.subr.bf16.mxu0 0
      %3166 = vmatpush1.bf16.msra.mxu0 0
      %3167 = vmatprep.subr.bf16.mxu0 0
      %3168 = vmatpush1.bf16.msra.mxu0 0
      %3169 = vmatprep.subr.bf16.mxu0 0
      %3170 = vmatpush1.bf16.msra.mxu0 0
      %3171 = vmatprep.subr.bf16.mxu0 0
      %3172 = vmatpush1.bf16.msra.mxu0 0
      %3173 = vmatprep.subr.bf16.mxu0 0
      %3174 = vmatpush1.bf16.msra.mxu0 0
      %3175 = vmatprep.mubr.bf16.mxu0 0
      %3176 = vmatmul.mubr.bf16.gmra.mrb[0].mxu0 %v3141
      %v3177 = vpop.f32.mrb[0].mxu0
      %v3178 = vadd.f32 0.0, %v3177
      %v3179 = vpop.f32.mrb[0].mxu0
      %v3180 = vpop.f32.mrb[0].mxu0
      %v3181 = vpop.f32.mrb[0].mxu0
      %3182 = vdwg.mxu0
      %v3183 = vpack.c.bf16 %v3178, %v3178
      %v3184 = vld [vmem:[%s13] sm:$0xf]
      %v3185 = vld [vmem:[%s13 + $0x4] sm:$0xf]
      %v3186 = vld [vmem:[%s3 + $0x9c] sm:$0xf]
      %v3187 = vpack.c.bf16 %v2610, %v2610
      %v3189 = vsel %vm842, %v3186, 0
      %v3192 = vsel %vm846, %v3187, 0
      %3194 = vmatprep.subr.bf16.mxu0 0
      %3195 = vmatpush1.bf16.msra.mxu0 %v3192
      %3196 = vmatprep.subr.bf16.mxu0 0
      %3197 = vmatpush1.bf16.msra.mxu0 0
      %3198 = vmatprep.subr.bf16.mxu0 0
      %3199 = vmatpush1.bf16.msra.mxu0 0
      %3200 = vmatprep.subr.bf16.mxu0 0
      %3201 = vmatpush1.bf16.msra.mxu0 0
      %3202 = vmatprep.subr.bf16.mxu0 0
      %3203 = vmatpush1.bf16.msra.mxu0 0
      %3204 = vmatprep.subr.bf16.mxu0 0
      %3205 = vmatpush1.bf16.msra.mxu0 0
      %3206 = vmatprep.subr.bf16.mxu0 0
      %3207 = vmatpush1.bf16.msra.mxu0 0
      %3208 = vmatprep.subr.bf16.mxu0 0
      %3209 = vmatpush1.bf16.msra.mxu0 0
      %3210 = vmatprep.subr.bf16.mxu0 0
      %3211 = vmatpush1.bf16.msra.mxu0 0
      %3212 = vmatprep.subr.bf16.mxu0 0
      %3213 = vmatpush1.bf16.msra.mxu0 0
      %3214 = vmatprep.subr.bf16.mxu0 0
      %3215 = vmatpush1.bf16.msra.mxu0 0
      %3216 = vmatprep.subr.bf16.mxu0 0
      %3217 = vmatpush1.bf16.msra.mxu0 0
      %3218 = vmatprep.subr.bf16.mxu0 0
      %3219 = vmatpush1.bf16.msra.mxu0 0
      %3220 = vmatprep.subr.bf16.mxu0 0
      %3221 = vmatpush1.bf16.msra.mxu0 0
      %3222 = vmatprep.subr.bf16.mxu0 0
      %3223 = vmatpush1.bf16.msra.mxu0 0
      %3224 = vmatprep.subr.bf16.mxu0 0
      %3225 = vmatpush1.bf16.msra.mxu0 0
      %3226 = vmatprep.mubr.bf16.mxu0 0
      %3227 = vmatmul.mubr.bf16.gmra.mrb[0].mxu0 %v3189
      %v3228 = vpop.f32.mrb[0].mxu0
      %v3229 = vadd.f32 0.0, %v3228
      %v3230 = vpop.f32.mrb[0].mxu0
      %v3231 = vpop.f32.mrb[0].mxu0
      %v3232 = vpop.f32.mrb[0].mxu0
      %3233 = vdwg.mxu0
      %v3236 = vunpack.c.l.b16 %v3184
      %v3237 = vunpack.c.l.b16 %v3185
      %v3238 = vpack.c.b16 %v3237, %v3236
      %v3241 = vsel %vm1010, %v3183, 0
      %3243 = vmatprep.subr.bf16.mxu0 0
      %3244 = vmatpush1.bf16.msra.mxu0 %v3238
      %3245 = vmatprep.subr.bf16.mxu0 0
      %3246 = vmatpush1.bf16.msra.mxu0 0
      %3247 = vmatprep.subr.bf16.mxu0 0
      %3248 = vmatpush1.bf16.msra.mxu0 0
      %3249 = vmatprep.subr.bf16.mxu0 0
      %3250 = vmatpush1.bf16.msra.mxu0 0
      %3251 = vmatprep.subr.bf16.mxu0 0
      %3252 = vmatpush1.bf16.msra.mxu0 0
      %3253 = vmatprep.subr.bf16.mxu0 0
      %3254 = vmatpush1.bf16.msra.mxu0 0
      %3255 = vmatprep.subr.bf16.mxu0 0
      %3256 = vmatpush1.bf16.msra.mxu0 0
      %3257 = vmatprep.subr.bf16.mxu0 0
      %3258 = vmatpush1.bf16.msra.mxu0 0
      %3259 = vmatprep.subr.bf16.mxu0 0
      %3260 = vmatpush1.bf16.msra.mxu0 0
      %3261 = vmatprep.subr.bf16.mxu0 0
      %3262 = vmatpush1.bf16.msra.mxu0 0
      %3263 = vmatprep.subr.bf16.mxu0 0
      %3264 = vmatpush1.bf16.msra.mxu0 0
      %3265 = vmatprep.subr.bf16.mxu0 0
      %3266 = vmatpush1.bf16.msra.mxu0 0
      %3267 = vmatprep.subr.bf16.mxu0 0
      %3268 = vmatpush1.bf16.msra.mxu0 0
      %3269 = vmatprep.subr.bf16.mxu0 0
      %3270 = vmatpush1.bf16.msra.mxu0 0
      %3271 = vmatprep.subr.bf16.mxu0 0
      %3272 = vmatpush1.bf16.msra.mxu0 0
      %3273 = vmatprep.subr.bf16.mxu0 0
      %3274 = vmatpush1.bf16.msra.mxu0 0
      %3275 = vmatprep.mubr.bf16.mxu0 0
      %3276 = vmatmul.mubr.bf16.gmra.mrb[0].mxu0 %v3241
      %v3277 = vpop.f32.mrb[0].mxu0
      %v3278 = vadd.f32 %v3229, %v3277
      %v3279 = vpop.f32.mrb[0].mxu0
      %v3280 = vpop.f32.mrb[0].mxu0
      %v3281 = vpop.f32.mrb[0].mxu0
      %3282 = vdwg.mxu0
      %v3283 = vld [vmem:[%s4 + $0xd0] sm:$0xff]
      %3285 = vset.pattern.permute.xlu0 0
      %3286 = vperm.xlu0 %3285, %v3283
      %v3287 = vpop.permute.xlu0 %3286
      %v3289 = vadd.f32 %v3278, %v3287
      %v3290 = vmax.f32 %v3289, 0.0
      %v3291 = vld [vmem:[%s3 + $0xa0] sm:$0x3]
      %v3292 = vpack.c.bf16 %v3290, %v3290
      %v3293 = vld [vmem:[%s4 + $0xd8] sm:$0xf]
      %3295 = vset.pattern.permute.xlu0 0
      %3296 = vperm.xlu0 %3295, %v3293
      %v3297 = vpop.permute.xlu0 %3296
      %v3300 = vsel %vm842, %v3291, 0
      %v3303 = vsel %vm846, %v3292, 0
      %3305 = vmatprep.subr.bf16.mxu0 0
      %3306 = vmatpush1.bf16.msra.mxu0 %v3303
      %3307 = vmatprep.subr.bf16.mxu0 0
      %3308 = vmatpush1.bf16.msra.mxu0 0
      %3309 = vmatprep.subr.bf16.mxu0 0
      %3310 = vmatpush1.bf16.msra.mxu0 0
      %3311 = vmatprep.subr.bf16.mxu0 0
      %3312 = vmatpush1.bf16.msra.mxu0 0
      %3313 = vmatprep.subr.bf16.mxu0 0
      %3314 = vmatpush1.bf16.msra.mxu0 0
      %3315 = vmatprep.subr.bf16.mxu0 0
      %3316 = vmatpush1.bf16.msra.mxu0 0
      %3317 = vmatprep.subr.bf16.mxu0 0
      %3318 = vmatpush1.bf16.msra.mxu0 0
      %3319 = vmatprep.subr.bf16.mxu0 0
      %3320 = vmatpush1.bf16.msra.mxu0 0
      %3321 = vmatprep.subr.bf16.mxu0 0
      %3322 = vmatpush1.bf16.msra.mxu0 0
      %3323 = vmatprep.subr.bf16.mxu0 0
      %3324 = vmatpush1.bf16.msra.mxu0 0
      %3325 = vmatprep.subr.bf16.mxu0 0
      %3326 = vmatpush1.bf16.msra.mxu0 0
      %3327 = vmatprep.subr.bf16.mxu0 0
      %3328 = vmatpush1.bf16.msra.mxu0 0
      %3329 = vmatprep.subr.bf16.mxu0 0
      %3330 = vmatpush1.bf16.msra.mxu0 0
      %3331 = vmatprep.subr.bf16.mxu0 0
      %3332 = vmatpush1.bf16.msra.mxu0 0
      %3333 = vmatprep.subr.bf16.mxu0 0
      %3334 = vmatpush1.bf16.msra.mxu0 0
      %3335 = vmatprep.subr.bf16.mxu0 0
      %3336 = vmatpush1.bf16.msra.mxu0 0
      %3337 = vmatprep.mubr.bf16.mxu0 0
      %3338 = vmatmul.mubr.bf16.gmra.mrb[0].mxu0 %v3300
      %v3339 = vpop.f32.mrb[0].mxu0
      %v3340 = vadd.f32 %v3297, %v3339
      %v3341 = vpop.f32.mrb[0].mxu0
      %v3342 = vpop.f32.mrb[0].mxu0
      %v3343 = vpop.f32.mrb[0].mxu0
      %3344 = vdwg.mxu0
      %v3345 = vpack.c.bf16 %v3340, %v3340
      %v3346 = vld [vmem:[%s15] sm:$0xff]
      %v3347 = vld [vmem:[%s15 + $0x8] sm:$0xff]
      %v3348 = vld [vmem:[%s15 + $0x10] sm:$0xff]
      %v3349 = vld [vmem:[%s15 + $0x18] sm:$0xff]
      %v3350 = vld [vmem:[%s15 + $0x20] sm:$0xff]
      %v3351 = vld [vmem:[%s15 + $0x28] sm:$0xff]
      %v3352 = vld [vmem:[%s15 + $0x30] sm:$0xff]
      %v3353 = vld [vmem:[%s15 + $0x38] sm:$0xff]
      %v3362 = vunpack.c.l.b16 %v3346
      %v3363 = vunpack.c.h.b16 %v3346
      %v3364 = vunpack.c.l.b16 %v3347
      %v3365 = vunpack.c.h.b16 %v3347
      %v3366 = vunpack.c.l.b16 %v3348
      %v3367 = vunpack.c.h.b16 %v3348
      %v3368 = vunpack.c.l.b16 %v3349
      %v3369 = vunpack.c.h.b16 %v3349
      %v3370 = vunpack.c.l.b16 %v3350
      %v3371 = vunpack.c.h.b16 %v3350
      %v3372 = vunpack.c.l.b16 %v3351
      %v3373 = vunpack.c.h.b16 %v3351
      %v3374 = vunpack.c.l.b16 %v3352
      %v3375 = vunpack.c.h.b16 %v3352
      %v3376 = vunpack.c.l.b16 %v3353
      %v3377 = vunpack.c.h.b16 %v3353
      %v3378 = vpack.c.b16 %v3364, %v3362
      %v3379 = vpack.c.b16 %v3365, %v3363
      %v3380 = vpack.c.b16 %v3368, %v3366
      %v3381 = vpack.c.b16 %v3369, %v3367
      %v3382 = vpack.c.b16 %v3372, %v3370
      %v3383 = vpack.c.b16 %v3373, %v3371
      %v3384 = vpack.c.b16 %v3376, %v3374
      %v3385 = vpack.c.b16 %v3377, %v3375
      %v3395 = vsel %vm926, %v3345, 0
      %3397 = vmatprep.subr.bf16.mxu0 %v3379
      %3398 = vmatpush1.bf16.msra.mxu0 %v3378
      %3399 = vmatprep.subr.bf16.mxu0 %v3381
      %3400 = vmatpush1.bf16.msra.mxu0 %v3380
      %3401 = vmatprep.subr.bf16.mxu0 %v3383
      %3402 = vmatpush1.bf16.msra.mxu0 %v3382
      %3403 = vmatprep.subr.bf16.mxu0 %v3385
      %3404 = vmatpush1.bf16.msra.mxu0 %v3384
      %3405 = vmatprep.subr.bf16.mxu0 0
      %3406 = vmatpush1.bf16.msra.mxu0 0
      %3407 = vmatprep.subr.bf16.mxu0 0
      %3408 = vmatpush1.bf16.msra.mxu0 0
      %3409 = vmatprep.subr.bf16.mxu0 0
      %3410 = vmatpush1.bf16.msra.mxu0 0
      %3411 = vmatprep.subr.bf16.mxu0 0
      %3412 = vmatpush1.bf16.msra.mxu0 0
      %3413 = vmatprep.subr.bf16.mxu0 0
      %3414 = vmatpush1.bf16.msra.mxu0 0
      %3415 = vmatprep.subr.bf16.mxu0 0
      %3416 = vmatpush1.bf16.msra.mxu0 0
      %3417 = vmatprep.subr.bf16.mxu0 0
      %3418 = vmatpush1.bf16.msra.mxu0 0
      %3419 = vmatprep.subr.bf16.mxu0 0
      %3420 = vmatpush1.bf16.msra.mxu0 0
      %3421 = vmatprep.subr.bf16.mxu0 0
      %3422 = vmatpush1.bf16.msra.mxu0 0
      %3423 = vmatprep.subr.bf16.mxu0 0
      %3424 = vmatpush1.bf16.msra.mxu0 0
      %3425 = vmatprep.subr.bf16.mxu0 0
      %3426 = vmatpush1.bf16.msra.mxu0 0
      %3427 = vmatprep.subr.bf16.mxu0 0
      %3428 = vmatpush1.bf16.msra.mxu0 0
      %3429 = vmatprep.mubr.bf16.mxu0 0
      %3430 = vmatmul.mubr.bf16.gmra.mrb[0].mxu0 %v3395
      %v3431 = vpop.f32.mrb[0].mxu0
      %v3432 = vadd.f32 0.0, %v3431
      %v3433 = vpop.f32.mrb[0].mxu0
      %v3434 = vadd.f32 0.0, %v3433
      %v3435 = vpop.f32.mrb[0].mxu0
      %v3436 = vpop.f32.mrb[0].mxu0
      %3437 = vdwg.mxu0
      %v3440 = vcombine.low %v3432, %v3434
      %3442 = vst [vmem:[%s614] sm:$0xff] %v3440
      %v3443 = vld [vmem:[%s3 + $0xa4] sm:$0xf]
      %v3444 = vld [vmem:[%s3 + $0xa8] sm:$0xf]
      %v3445 = vld [vmem:[%s3 + $0xac] sm:$0xf]
      %v3446 = vld [vmem:[%s3 + $0xb0] sm:$0xf]
      %v3449 = vunpack.c.l.b16 %v3445
      %v3450 = vunpack.c.l.b16 %v3446
      %v3451 = vpack.c.b16 %v3450, %v3449
      %v3453 = vsel %vm2870, %v3451, 0
      %3455 = vmatprep.subr.bf16.mxu0 0
      %3456 = vmatpush1.bf16.msra.mxu0 %v2863
      %3457 = vmatprep.subr.bf16.mxu0 0
      %3458 = vmatpush1.bf16.msra.mxu0 %v2864
      %3459 = vmatprep.subr.bf16.mxu0 0
      %3460 = vmatpush1.bf16.msra.mxu0 0
      %3461 = vmatprep.subr.bf16.mxu0 0
      %3462 = vmatpush1.bf16.msra.mxu0 0
      %3463 = vmatprep.subr.bf16.mxu0 0
      %3464 = vmatpush1.bf16.msra.mxu0 0
      %3465 = vmatprep.subr.bf16.mxu0 0
      %3466 = vmatpush1.bf16.msra.mxu0 0
      %3467 = vmatprep.subr.bf16.mxu0 0
      %3468 = vmatpush1.bf16.msra.mxu0 0
      %3469 = vmatprep.subr.bf16.mxu0 0
      %3470 = vmatpush1.bf16.msra.mxu0 0
      %3471 = vmatprep.subr.bf16.mxu0 0
      %3472 = vmatpush1.bf16.msra.mxu0 0
      %3473 = vmatprep.subr.bf16.mxu0 0
      %3474 = vmatpush1.bf16.msra.mxu0 0
      %3475 = vmatprep.subr.bf16.mxu0 0
      %3476 = vmatpush1.bf16.msra.mxu0 0
      %3477 = vmatprep.subr.bf16.mxu0 0
      %3478 = vmatpush1.bf16.msra.mxu0 0
      %3479 = vmatprep.subr.bf16.mxu0 0
      %3480 = vmatpush1.bf16.msra.mxu0 0
      %3481 = vmatprep.subr.bf16.mxu0 0
      %3482 = vmatpush1.bf16.msra.mxu0 0
      %3483 = vmatprep.subr.bf16.mxu0 0
      %3484 = vmatpush1.bf16.msra.mxu0 0
      %3485 = vmatprep.subr.bf16.mxu0 0
      %3486 = vmatpush1.bf16.msra.mxu0 0
      %3487 = vmatprep.mubr.bf16.mxu0 0
      %3488 = vmatmul.mubr.bf16.gmra.mrb[0].mxu0 %v3453
      %v3489 = vpop.f32.mrb[0].mxu0
      %v3490 = vadd.f32 0.0, %v3489
      %v3491 = vpop.f32.mrb[0].mxu0
      %v3492 = vpop.f32.mrb[0].mxu0
      %v3493 = vadd.f32 0.0, %v3492
      %v3494 = vpop.f32.mrb[0].mxu0
      %3495 = vdwg.mxu0
      %v3498 = vunpack.c.l.b16 %v3443
      %v3499 = vunpack.c.l.b16 %v3444
      %v3500 = vpack.c.b16 %v3499, %v3498
      %v3502 = vsel %vm2870, %v3500, 0
      %3504 = vmatprep.subr.bf16.mxu0 0
      %3505 = vmatpush1.bf16.msra.mxu0 %v2859
      %3506 = vmatprep.subr.bf16.mxu0 0
      %3507 = vmatpush1.bf16.msra.mxu0 %v2860
      %3508 = vmatprep.subr.bf16.mxu0 0
      %3509 = vmatpush1.bf16.msra.mxu0 0
      %3510 = vmatprep.subr.bf16.mxu0 0
      %3511 = vmatpush1.bf16.msra.mxu0 0
      %3512 = vmatprep.subr.bf16.mxu0 0
      %3513 = vmatpush1.bf16.msra.mxu0 0
      %3514 = vmatprep.subr.bf16.mxu0 0
      %3515 = vmatpush1.bf16.msra.mxu0 0
      %3516 = vmatprep.subr.bf16.mxu0 0
      %3517 = vmatpush1.bf16.msra.mxu0 0
      %3518 = vmatprep.subr.bf16.mxu0 0
      %3519 = vmatpush1.bf16.msra.mxu0 0
      %3520 = vmatprep.subr.bf16.mxu0 0
      %3521 = vmatpush1.bf16.msra.mxu0 0
      %3522 = vmatprep.subr.bf16.mxu0 0
      %3523 = vmatpush1.bf16.msra.mxu0 0
      %3524 = vmatprep.subr.bf16.mxu0 0
      %3525 = vmatpush1.bf16.msra.mxu0 0
      %3526 = vmatprep.subr.bf16.mxu0 0
      %3527 = vmatpush1.bf16.msra.mxu0 0
      %3528 = vmatprep.subr.bf16.mxu0 0
      %3529 = vmatpush1.bf16.msra.mxu0 0
      %3530 = vmatprep.subr.bf16.mxu0 0
      %3531 = vmatpush1.bf16.msra.mxu0 0
      %3532 = vmatprep.subr.bf16.mxu0 0
      %3533 = vmatpush1.bf16.msra.mxu0 0
      %3534 = vmatprep.subr.bf16.mxu0 0
      %3535 = vmatpush1.bf16.msra.mxu0 0
      %3536 = vmatprep.mubr.bf16.mxu0 0
      %3537 = vmatmul.mubr.bf16.gmra.mrb[0].mxu0 %v3502
      %v3538 = vpop.f32.mrb[0].mxu0
      %v3539 = vadd.f32 %v3490, %v3538
      %v3540 = vpop.f32.mrb[0].mxu0
      %v3541 = vpop.f32.mrb[0].mxu0
      %v3542 = vadd.f32 %v3493, %v3541
      %v3543 = vpop.f32.mrb[0].mxu0
      %3544 = vdwg.mxu0
      %v3545 = vld [vmem:[%s3 + $0xb4] sm:$0xf]
      %v3546 = vld [vmem:[%s3 + $0xb8] sm:$0xf]
      %v3549 = vunpack.c.l.b16 %v3545
      %v3550 = vunpack.c.l.b16 %v3546
      %v3551 = vpack.c.b16 %v3550, %v3549
      %v3553 = vsel %vm2870, %v3551, 0
      %3555 = vmatprep.subr.bf16.mxu0 0
      %3556 = vmatpush1.bf16.msra.mxu0 %v2966
      %3557 = vmatprep.subr.bf16.mxu0 0
      %3558 = vmatpush1.bf16.msra.mxu0 %v2967
      %3559 = vmatprep.subr.bf16.mxu0 0
      %3560 = vmatpush1.bf16.msra.mxu0 0
      %3561 = vmatprep.subr.bf16.mxu0 0
      %3562 = vmatpush1.bf16.msra.mxu0 0
      %3563 = vmatprep.subr.bf16.mxu0 0
      %3564 = vmatpush1.bf16.msra.mxu0 0
      %3565 = vmatprep.subr.bf16.mxu0 0
      %3566 = vmatpush1.bf16.msra.mxu0 0
      %3567 = vmatprep.subr.bf16.mxu0 0
      %3568 = vmatpush1.bf16.msra.mxu0 0
      %3569 = vmatprep.subr.bf16.mxu0 0
      %3570 = vmatpush1.bf16.msra.mxu0 0
      %3571 = vmatprep.subr.bf16.mxu0 0
      %3572 = vmatpush1.bf16.msra.mxu0 0
      %3573 = vmatprep.subr.bf16.mxu0 0
      %3574 = vmatpush1.bf16.msra.mxu0 0
      %3575 = vmatprep.subr.bf16.mxu0 0
      %3576 = vmatpush1.bf16.msra.mxu0 0
      %3577 = vmatprep.subr.bf16.mxu0 0
      %3578 = vmatpush1.bf16.msra.mxu0 0
      %3579 = vmatprep.subr.bf16.mxu0 0
      %3580 = vmatpush1.bf16.msra.mxu0 0
      %3581 = vmatprep.subr.bf16.mxu0 0
      %3582 = vmatpush1.bf16.msra.mxu0 0
      %3583 = vmatprep.subr.bf16.mxu0 0
      %3584 = vmatpush1.bf16.msra.mxu0 0
      %3585 = vmatprep.subr.bf16.mxu0 0
      %3586 = vmatpush1.bf16.msra.mxu0 0
      %3587 = vmatprep.mubr.bf16.mxu0 0
      %3588 = vmatmul.mubr.bf16.gmra.mrb[0].mxu0 %v3553
      %v3589 = vpop.f32.mrb[0].mxu0
      %v3590 = vadd.f32 0.0, %v3589
      %v3591 = vpop.f32.mrb[0].mxu0
      %v3592 = vpop.f32.mrb[0].mxu0
      %v3593 = vadd.f32 0.0, %v3592
      %v3594 = vpop.f32.mrb[0].mxu0
      %3595 = vdwg.mxu0
      %v3596 = vadd.f32 %v3539, %v3590
      %v3597 = vadd.f32 %v3542, %v3593
      %v3598 = vpack.c.bf16 %v3597, %v3596
      %v3599 = vld [vmem:[%s12] sm:$0x3]
      %v3600 = vld [vmem:[%s3 + $0xbc] sm:$0xf]
      %v3601 = vld [vmem:[%s3 + $0xc0] sm:$0xf]
      %v3604 = vunpack.c.l.b16 %v3600
      %v3605 = vunpack.c.l.b16 %v3601
      %v3606 = vpack.c.b16 %v3605, %v3604
      %v3608 = vsel %vm1010, %v3606, 0
      %3610 = vmatprep.subr.bf16.mxu0 0
      %3611 = vmatpush1.bf16.msra.mxu0 %v3023
      %3612 = vmatprep.subr.bf16.mxu0 0
      %3613 = vmatpush1.bf16.msra.mxu0 0
      %3614 = vmatprep.subr.bf16.mxu0 0
      %3615 = vmatpush1.bf16.msra.mxu0 0
      %3616 = vmatprep.subr.bf16.mxu0 0
      %3617 = vmatpush1.bf16.msra.mxu0 0
      %3618 = vmatprep.subr.bf16.mxu0 0
      %3619 = vmatpush1.bf16.msra.mxu0 0
      %3620 = vmatprep.subr.bf16.mxu0 0
      %3621 = vmatpush1.bf16.msra.mxu0 0
      %3622 = vmatprep.subr.bf16.mxu0 0
      %3623 = vmatpush1.bf16.msra.mxu0 0
      %3624 = vmatprep.subr.bf16.mxu0 0
      %3625 = vmatpush1.bf16.msra.mxu0 0
      %3626 = vmatprep.subr.bf16.mxu0 0
      %3627 = vmatpush1.bf16.msra.mxu0 0
      %3628 = vmatprep.subr.bf16.mxu0 0
      %3629 = vmatpush1.bf16.msra.mxu0 0
      %3630 = vmatprep.subr.bf16.mxu0 0
      %3631 = vmatpush1.bf16.msra.mxu0 0
      %3632 = vmatprep.subr.bf16.mxu0 0
      %3633 = vmatpush1.bf16.msra.mxu0 0
      %3634 = vmatprep.subr.bf16.mxu0 0
      %3635 = vmatpush1.bf16.msra.mxu0 0
      %3636 = vmatprep.subr.bf16.mxu0 0
      %3637 = vmatpush1.bf16.msra.mxu0 0
      %3638 = vmatprep.subr.bf16.mxu0 0
      %3639 = vmatpush1.bf16.msra.mxu0 0
      %3640 = vmatprep.subr.bf16.mxu0 0
      %3641 = vmatpush1.bf16.msra.mxu0 0
      %3642 = vmatprep.mubr.bf16.mxu0 0
      %3643 = vmatmul.mubr.bf16.gmra.mrb[0].mxu0 %v3608
      %v3644 = vpop.f32.mrb[0].mxu0
      %v3645 = vadd.f32 0.0, %v3644
      %v3646 = vpop.f32.mrb[0].mxu0
      %v3647 = vpop.f32.mrb[0].mxu0
      %v3648 = vadd.f32 0.0, %v3647
      %v3649 = vpop.f32.mrb[0].mxu0
      %3650 = vdwg.mxu0
      %v3652 = vsel %vm3073, %v3598, 0
      %v3655 = vsel %vm3077, %v3599, 0
      %3657 = vmatprep.subr.bf16.mxu0 0
      %3658 = vmatpush1.bf16.msra.mxu0 %v3655
      %3659 = vmatprep.subr.bf16.mxu0 0
      %3660 = vmatpush1.bf16.msra.mxu0 0
      %3661 = vmatprep.subr.bf16.mxu0 0
      %3662 = vmatpush1.bf16.msra.mxu0 0
      %3663 = vmatprep.subr.bf16.mxu0 0
      %3664 = vmatpush1.bf16.msra.mxu0 0
      %3665 = vmatprep.subr.bf16.mxu0 0
      %3666 = vmatpush1.bf16.msra.mxu0 0
      %3667 = vmatprep.subr.bf16.mxu0 0
      %3668 = vmatpush1.bf16.msra.mxu0 0
      %3669 = vmatprep.subr.bf16.mxu0 0
      %3670 = vmatpush1.bf16.msra.mxu0 0
      %3671 = vmatprep.subr.bf16.mxu0 0
      %3672 = vmatpush1.bf16.msra.mxu0 0
      %3673 = vmatprep.subr.bf16.mxu0 0
      %3674 = vmatpush1.bf16.msra.mxu0 0
      %3675 = vmatprep.subr.bf16.mxu0 0
      %3676 = vmatpush1.bf16.msra.mxu0 0
      %3677 = vmatprep.subr.bf16.mxu0 0
      %3678 = vmatpush1.bf16.msra.mxu0 0
      %3679 = vmatprep.subr.bf16.mxu0 0
      %3680 = vmatpush1.bf16.msra.mxu0 0
      %3681 = vmatprep.subr.bf16.mxu0 0
      %3682 = vmatpush1.bf16.msra.mxu0 0
      %3683 = vmatprep.subr.bf16.mxu0 0
      %3684 = vmatpush1.bf16.msra.mxu0 0
      %3685 = vmatprep.subr.bf16.mxu0 0
      %3686 = vmatpush1.bf16.msra.mxu0 0
      %3687 = vmatprep.subr.bf16.mxu0 0
      %3688 = vmatpush1.bf16.msra.mxu0 0
      %3689 = vmatprep.mubr.bf16.mxu0 0
      %3690 = vmatmul.mubr.bf16.gmra.mrb[0].mxu0 %v3652
      %v3691 = vpop.f32.mrb[0].mxu0
      %v3692 = vadd.f32 %v3645, %v3691
      %v3693 = vpop.f32.mrb[0].mxu0
      %v3694 = vpop.f32.mrb[0].mxu0
      %v3695 = vadd.f32 %v3648, %v3694
      %v3696 = vpop.f32.mrb[0].mxu0
      %3697 = vdwg.mxu0
      %v3698 = vld [vmem:[%s4 + $0xe0] sm:$0xff]
      %v3699 = vld [vmem:[%s4 + $0xe8] sm:$0xff]
      %3701 = vset.pattern.permute.xlu0 0
      %3702 = vperm.xlu0 %3701, %v3698
      %v3703 = vpop.permute.xlu0 %3702
      %3706 = vset.pattern.permute.xlu0 0
      %3707 = vperm.xlu0 %3706, %v3699
      %v3708 = vpop.permute.xlu0 %3707
      %v3710 = vadd.f32 %v3692, %v3703
      %v3711 = vadd.f32 %v3695, %v3708
      %v3712 = vmax.f32 %v3710, 0.0
      %v3713 = vmax.f32 %v3711, 0.0
      %v3714 = vld [vmem:[%s3 + $0xc4] sm:$0xf]
      %v3715 = vpack.c.bf16 %v3713, %v3712
      %v3717 = vsel %vm1010, %v3714, 0
      %3719 = vmatprep.subr.bf16.mxu0 0
      %3720 = vmatpush1.bf16.msra.mxu0 %v3715
      %3721 = vmatprep.subr.bf16.mxu0 0
      %3722 = vmatpush1.bf16.msra.mxu0 0
      %3723 = vmatprep.subr.bf16.mxu0 0
      %3724 = vmatpush1.bf16.msra.mxu0 0
      %3725 = vmatprep.subr.bf16.mxu0 0
      %3726 = vmatpush1.bf16.msra.mxu0 0
      %3727 = vmatprep.subr.bf16.mxu0 0
      %3728 = vmatpush1.bf16.msra.mxu0 0
      %3729 = vmatprep.subr.bf16.mxu0 0
      %3730 = vmatpush1.bf16.msra.mxu0 0
      %3731 = vmatprep.subr.bf16.mxu0 0
      %3732 = vmatpush1.bf16.msra.mxu0 0
      %3733 = vmatprep.subr.bf16.mxu0 0
      %3734 = vmatpush1.bf16.msra.mxu0 0
      %3735 = vmatprep.subr.bf16.mxu0 0
      %3736 = vmatpush1.bf16.msra.mxu0 0
      %3737 = vmatprep.subr.bf16.mxu0 0
      %3738 = vmatpush1.bf16.msra.mxu0 0
      %3739 = vmatprep.subr.bf16.mxu0 0
      %3740 = vmatpush1.bf16.msra.mxu0 0
      %3741 = vmatprep.subr.bf16.mxu0 0
      %3742 = vmatpush1.bf16.msra.mxu0 0
      %3743 = vmatprep.subr.bf16.mxu0 0
      %3744 = vmatpush1.bf16.msra.mxu0 0
      %3745 = vmatprep.subr.bf16.mxu0 0
      %3746 = vmatpush1.bf16.msra.mxu0 0
      %3747 = vmatprep.subr.bf16.mxu0 0
      %3748 = vmatpush1.bf16.msra.mxu0 0
      %3749 = vmatprep.subr.bf16.mxu0 0
      %3750 = vmatpush1.bf16.msra.mxu0 0
      %3751 = vmatprep.mubr.bf16.mxu0 0
      %3752 = vmatmul.mubr.bf16.gmra.mrb[0].mxu0 %v3717
      %v3753 = vpop.f32.mrb[0].mxu0
      %v3754 = vadd.f32 0.0, %v3753
      %v3755 = vpop.f32.mrb[0].mxu0
      %v3756 = vpop.f32.mrb[0].mxu0
      %v3757 = vpop.f32.mrb[0].mxu0
      %3758 = vdwg.mxu0
      %v3759 = vpack.c.bf16 %v3754, %v3754
      %v3760 = vld [vmem:[%s14] sm:$0xf]
      %v3761 = vld [vmem:[%s14 + $0x4] sm:$0xf]
      %v3762 = vld [vmem:[%s3 + $0xc8] sm:$0xf]
      %v3763 = vpack.c.bf16 %v2856, %v2856
      %v3765 = vsel %vm842, %v3762, 0
      %v3768 = vsel %vm846, %v3763, 0
      %3770 = vmatprep.subr.bf16.mxu0 0
      %3771 = vmatpush1.bf16.msra.mxu0 %v3768
      %3772 = vmatprep.subr.bf16.mxu0 0
      %3773 = vmatpush1.bf16.msra.mxu0 0
      %3774 = vmatprep.subr.bf16.mxu0 0
      %3775 = vmatpush1.bf16.msra.mxu0 0
      %3776 = vmatprep.subr.bf16.mxu0 0
      %3777 = vmatpush1.bf16.msra.mxu0 0
      %3778 = vmatprep.subr.bf16.mxu0 0
      %3779 = vmatpush1.bf16.msra.mxu0 0
      %3780 = vmatprep.subr.bf16.mxu0 0
      %3781 = vmatpush1.bf16.msra.mxu0 0
      %3782 = vmatprep.subr.bf16.mxu0 0
      %3783 = vmatpush1.bf16.msra.mxu0 0
      %3784 = vmatprep.subr.bf16.mxu0 0
      %3785 = vmatpush1.bf16.msra.mxu0 0
      %3786 = vmatprep.subr.bf16.mxu0 0
      %3787 = vmatpush1.bf16.msra.mxu0 0
      %3788 = vmatprep.subr.bf16.mxu0 0
      %3789 = vmatpush1.bf16.msra.mxu0 0
      %3790 = vmatprep.subr.bf16.mxu0 0
      %3791 = vmatpush1.bf16.msra.mxu0 0
      %3792 = vmatprep.subr.bf16.mxu0 0
      %3793 = vmatpush1.bf16.msra.mxu0 0
      %3794 = vmatprep.subr.bf16.mxu0 0
      %3795 = vmatpush1.bf16.msra.mxu0 0
      %3796 = vmatprep.subr.bf16.mxu0 0
      %3797 = vmatpush1.bf16.msra.mxu0 0
      %3798 = vmatprep.subr.bf16.mxu0 0
      %3799 = vmatpush1.bf16.msra.mxu0 0
      %3800 = vmatprep.subr.bf16.mxu0 0
      %3801 = vmatpush1.bf16.msra.mxu0 0
      %3802 = vmatprep.mubr.bf16.mxu0 0
      %3803 = vmatmul.mubr.bf16.gmra.mrb[0].mxu0 %v3765
      %v3804 = vpop.f32.mrb[0].mxu0
      %v3805 = vadd.f32 0.0, %v3804
      %v3806 = vpop.f32.mrb[0].mxu0
      %v3807 = vpop.f32.mrb[0].mxu0
      %v3808 = vpop.f32.mrb[0].mxu0
      %3809 = vdwg.mxu0
      %v3812 = vunpack.c.l.b16 %v3760
      %v3813 = vunpack.c.l.b16 %v3761
      %v3814 = vpack.c.b16 %v3813, %v3812
      %v3817 = vsel %vm1010, %v3759, 0
      %3819 = vmatprep.subr.bf16.mxu0 0
      %3820 = vmatpush1.bf16.msra.mxu0 %v3814
      %3821 = vmatprep.subr.bf16.mxu0 0
      %3822 = vmatpush1.bf16.msra.mxu0 0
      %3823 = vmatprep.subr.bf16.mxu0 0
      %3824 = vmatpush1.bf16.msra.mxu0 0
      %3825 = vmatprep.subr.bf16.mxu0 0
      %3826 = vmatpush1.bf16.msra.mxu0 0
      %3827 = vmatprep.subr.bf16.mxu0 0
      %3828 = vmatpush1.bf16.msra.mxu0 0
      %3829 = vmatprep.subr.bf16.mxu0 0
      %3830 = vmatpush1.bf16.msra.mxu0 0
      %3831 = vmatprep.subr.bf16.mxu0 0
      %3832 = vmatpush1.bf16.msra.mxu0 0
      %3833 = vmatprep.subr.bf16.mxu0 0
      %3834 = vmatpush1.bf16.msra.mxu0 0
      %3835 = vmatprep.subr.bf16.mxu0 0
      %3836 = vmatpush1.bf16.msra.mxu0 0
      %3837 = vmatprep.subr.bf16.mxu0 0
      %3838 = vmatpush1.bf16.msra.mxu0 0
      %3839 = vmatprep.subr.bf16.mxu0 0
      %3840 = vmatpush1.bf16.msra.mxu0 0
      %3841 = vmatprep.subr.bf16.mxu0 0
      %3842 = vmatpush1.bf16.msra.mxu0 0
      %3843 = vmatprep.subr.bf16.mxu0 0
      %3844 = vmatpush1.bf16.msra.mxu0 0
      %3845 = vmatprep.subr.bf16.mxu0 0
      %3846 = vmatpush1.bf16.msra.mxu0 0
      %3847 = vmatprep.subr.bf16.mxu0 0
      %3848 = vmatpush1.bf16.msra.mxu0 0
      %3849 = vmatprep.subr.bf16.mxu0 0
      %3850 = vmatpush1.bf16.msra.mxu0 0
      %3851 = vmatprep.mubr.bf16.mxu0 0
      %3852 = vmatmul.mubr.bf16.gmra.mrb[0].mxu0 %v3817
      %v3853 = vpop.f32.mrb[0].mxu0
      %v3854 = vadd.f32 %v3805, %v3853
      %v3855 = vpop.f32.mrb[0].mxu0
      %v3856 = vpop.f32.mrb[0].mxu0
      %v3857 = vpop.f32.mrb[0].mxu0
      %3858 = vdwg.mxu0
      %v3859 = vld [vmem:[%s4 + $0xf0] sm:$0xff]
      %3861 = vset.pattern.permute.xlu0 0
      %3862 = vperm.xlu0 %3861, %v3859
      %v3863 = vpop.permute.xlu0 %3862
      %v3865 = vadd.f32 %v3854, %v3863
      %v3866 = vmax.f32 %v3865, 0.0
      %v3867 = vld [vmem:[%s3 + $0xcc] sm:$0x3]
      %v3868 = vpack.c.bf16 %v3866, %v3866
      %v3869 = vld [vmem:[%s4 + $0xf8] sm:$0xf]
      %3871 = vset.pattern.permute.xlu0 0
      %3872 = vperm.xlu0 %3871, %v3869
      %v3873 = vpop.permute.xlu0 %3872
      %v3876 = vsel %vm842, %v3867, 0
      %v3879 = vsel %vm846, %v3868, 0
      %3881 = vmatprep.subr.bf16.mxu0 0
      %3882 = vmatpush1.bf16.msra.mxu0 %v3879
      %3883 = vmatprep.subr.bf16.mxu0 0
      %3884 = vmatpush1.bf16.msra.mxu0 0
      %3885 = vmatprep.subr.bf16.mxu0 0
      %3886 = vmatpush1.bf16.msra.mxu0 0
      %3887 = vmatprep.subr.bf16.mxu0 0
      %3888 = vmatpush1.bf16.msra.mxu0 0
      %3889 = vmatprep.subr.bf16.mxu0 0
      %3890 = vmatpush1.bf16.msra.mxu0 0
      %3891 = vmatprep.subr.bf16.mxu0 0
      %3892 = vmatpush1.bf16.msra.mxu0 0
      %3893 = vmatprep.subr.bf16.mxu0 0
      %3894 = vmatpush1.bf16.msra.mxu0 0
      %3895 = vmatprep.subr.bf16.mxu0 0
      %3896 = vmatpush1.bf16.msra.mxu0 0
      %3897 = vmatprep.subr.bf16.mxu0 0
      %3898 = vmatpush1.bf16.msra.mxu0 0
      %3899 = vmatprep.subr.bf16.mxu0 0
      %3900 = vmatpush1.bf16.msra.mxu0 0
      %3901 = vmatprep.subr.bf16.mxu0 0
      %3902 = vmatpush1.bf16.msra.mxu0 0
      %3903 = vmatprep.subr.bf16.mxu0 0
      %3904 = vmatpush1.bf16.msra.mxu0 0
      %3905 = vmatprep.subr.bf16.mxu0 0
      %3906 = vmatpush1.bf16.msra.mxu0 0
      %3907 = vmatprep.subr.bf16.mxu0 0
      %3908 = vmatpush1.bf16.msra.mxu0 0
      %3909 = vmatprep.subr.bf16.mxu0 0
      %3910 = vmatpush1.bf16.msra.mxu0 0
      %3911 = vmatprep.subr.bf16.mxu0 0
      %3912 = vmatpush1.bf16.msra.mxu0 0
      %3913 = vmatprep.mubr.bf16.mxu0 0
      %3914 = vmatmul.mubr.bf16.gmra.mrb[0].mxu0 %v3876
      %v3915 = vpop.f32.mrb[0].mxu0
      %v3916 = vadd.f32 %v3873, %v3915
      %v3917 = vpop.f32.mrb[0].mxu0
      %v3918 = vpop.f32.mrb[0].mxu0
      %v3919 = vpop.f32.mrb[0].mxu0
      %3920 = vdwg.mxu0
      %v3921 = vpack.c.bf16 %v3916, %v3916
      %v3922 = vld [vmem:[%s16] sm:$0xff]
      %v3923 = vld [vmem:[%s16 + $0x8] sm:$0xff]
      %v3924 = vld [vmem:[%s16 + $0x10] sm:$0xff]
      %v3925 = vld [vmem:[%s16 + $0x18] sm:$0xff]
      %v3926 = vld [vmem:[%s16 + $0x20] sm:$0xff]
      %v3927 = vld [vmem:[%s16 + $0x28] sm:$0xff]
      %v3928 = vld [vmem:[%s16 + $0x30] sm:$0xff]
      %v3929 = vld [vmem:[%s16 + $0x38] sm:$0xff]
      %v3930 = vld [vmem:[%s16 + $0x40] sm:$0xff]
      %v3931 = vld [vmem:[%s16 + $0x48] sm:$0xff]
      %v3932 = vld [vmem:[%s16 + $0x50] sm:$0xff]
      %v3933 = vld [vmem:[%s16 + $0x58] sm:$0xff]
      %v3934 = vld [vmem:[%s16 + $0x60] sm:$0xff]
      %v3935 = vld [vmem:[%s16 + $0x68] sm:$0xff]
      %v3936 = vld [vmem:[%s16 + $0x70] sm:$0xff]
      %v3937 = vld [vmem:[%s16 + $0x78] sm:$0xff]
      %v3938 = vld [vmem:[%s16 + $0x80] sm:$0xff]
      %v3939 = vld [vmem:[%s16 + $0x88] sm:$0xff]
      %v3940 = vld [vmem:[%s16 + $0x90] sm:$0xff]
      %v3941 = vld [vmem:[%s16 + $0x98] sm:$0xff]
      %v3942 = vld [vmem:[%s16 + $0xa0] sm:$0xff]
      %v3943 = vld [vmem:[%s16 + $0xa8] sm:$0xff]
      %v3944 = vld [vmem:[%s16 + $0xb0] sm:$0xff]
      %v3945 = vld [vmem:[%s16 + $0xb8] sm:$0xff]
      %v3946 = vld [vmem:[%s16 + $0xc0] sm:$0xff]
      %v3947 = vld [vmem:[%s16 + $0xc8] sm:$0xff]
      %v3948 = vld [vmem:[%s16 + $0xd0] sm:$0xff]
      %v3949 = vld [vmem:[%s16 + $0xd8] sm:$0xff]
      %v3950 = vld [vmem:[%s16 + $0xe0] sm:$0xff]
      %v3951 = vld [vmem:[%s16 + $0xe8] sm:$0xff]
      %v3952 = vld [vmem:[%s16 + $0xf0] sm:$0xff]
      %v3953 = vld [vmem:[%s16 + $0xf8] sm:$0xff]
      %v3986 = vunpack.c.l.b16 %v3922
      %v3987 = vunpack.c.h.b16 %v3922
      %v3988 = vunpack.c.l.b16 %v3923
      %v3989 = vunpack.c.h.b16 %v3923
      %v3990 = vunpack.c.l.b16 %v3924
      %v3991 = vunpack.c.h.b16 %v3924
      %v3992 = vunpack.c.l.b16 %v3925
      %v3993 = vunpack.c.h.b16 %v3925
      %v3994 = vunpack.c.l.b16 %v3926
      %v3995 = vunpack.c.h.b16 %v3926
      %v3996 = vunpack.c.l.b16 %v3927
      %v3997 = vunpack.c.h.b16 %v3927
      %v3998 = vunpack.c.l.b16 %v3928
      %v3999 = vunpack.c.h.b16 %v3928
      %v4000 = vunpack.c.l.b16 %v3929
      %v4001 = vunpack.c.h.b16 %v3929
      %v4002 = vunpack.c.l.b16 %v3930
      %v4003 = vunpack.c.h.b16 %v3930
      %v4004 = vunpack.c.l.b16 %v3931
      %v4005 = vunpack.c.h.b16 %v3931
      %v4006 = vunpack.c.l.b16 %v3932
      %v4007 = vunpack.c.h.b16 %v3932
      %v4008 = vunpack.c.l.b16 %v3933
      %v4009 = vunpack.c.h.b16 %v3933
      %v4010 = vunpack.c.l.b16 %v3934
      %v4011 = vunpack.c.h.b16 %v3934
      %v4012 = vunpack.c.l.b16 %v3935
      %v4013 = vunpack.c.h.b16 %v3935
      %v4014 = vunpack.c.l.b16 %v3936
      %v4015 = vunpack.c.h.b16 %v3936
      %v4016 = vunpack.c.l.b16 %v3937
      %v4017 = vunpack.c.h.b16 %v3937
      %v4018 = vunpack.c.l.b16 %v3938
      %v4019 = vunpack.c.h.b16 %v3938
      %v4020 = vunpack.c.l.b16 %v3939
      %v4021 = vunpack.c.h.b16 %v3939
      %v4022 = vunpack.c.l.b16 %v3940
      %v4023 = vunpack.c.h.b16 %v3940
      %v4024 = vunpack.c.l.b16 %v3941
      %v4025 = vunpack.c.h.b16 %v3941
      %v4026 = vunpack.c.l.b16 %v3942
      %v4027 = vunpack.c.h.b16 %v3942
      %v4028 = vunpack.c.l.b16 %v3943
      %v4029 = vunpack.c.h.b16 %v3943
      %v4030 = vunpack.c.l.b16 %v3944
      %v4031 = vunpack.c.h.b16 %v3944
      %v4032 = vunpack.c.l.b16 %v3945
      %v4033 = vunpack.c.h.b16 %v3945
      %v4034 = vunpack.c.l.b16 %v3946
      %v4035 = vunpack.c.h.b16 %v3946
      %v4036 = vunpack.c.l.b16 %v3947
      %v4037 = vunpack.c.h.b16 %v3947
      %v4038 = vunpack.c.l.b16 %v3948
      %v4039 = vunpack.c.h.b16 %v3948
      %v4040 = vunpack.c.l.b16 %v3949
      %v4041 = vunpack.c.h.b16 %v3949
      %v4042 = vunpack.c.l.b16 %v3950
      %v4043 = vunpack.c.h.b16 %v3950
      %v4044 = vunpack.c.l.b16 %v3951
      %v4045 = vunpack.c.h.b16 %v3951
      %v4046 = vunpack.c.l.b16 %v3952
      %v4047 = vunpack.c.h.b16 %v3952
      %v4048 = vunpack.c.l.b16 %v3953
      %v4049 = vunpack.c.h.b16 %v3953
      %v4050 = vpack.c.b16 %v3990, %v3986
      %v4051 = vpack.c.b16 %v3991, %v3987
      %v4052 = vpack.c.b16 %v3992, %v3988
      %v4053 = vpack.c.b16 %v3993, %v3989
      %v4054 = vpack.c.b16 %v3998, %v3994
      %v4055 = vpack.c.b16 %v3999, %v3995
      %v4056 = vpack.c.b16 %v4000, %v3996
      %v4057 = vpack.c.b16 %v4001, %v3997
      %v4058 = vpack.c.b16 %v4006, %v4002
      %v4059 = vpack.c.b16 %v4007, %v4003
      %v4060 = vpack.c.b16 %v4008, %v4004
      %v4061 = vpack.c.b16 %v4009, %v4005
      %v4062 = vpack.c.b16 %v4014, %v4010
      %v4063 = vpack.c.b16 %v4015, %v4011
      %v4064 = vpack.c.b16 %v4016, %v4012
      %v4065 = vpack.c.b16 %v4017, %v4013
      %v4066 = vpack.c.b16 %v4022, %v4018
      %v4067 = vpack.c.b16 %v4023, %v4019
      %v4068 = vpack.c.b16 %v4024, %v4020
      %v4069 = vpack.c.b16 %v4025, %v4021
      %v4070 = vpack.c.b16 %v4030, %v4026
      %v4071 = vpack.c.b16 %v4031, %v4027
      %v4072 = vpack.c.b16 %v4032, %v4028
      %v4073 = vpack.c.b16 %v4033, %v4029
      %v4074 = vpack.c.b16 %v4038, %v4034
      %v4075 = vpack.c.b16 %v4039, %v4035
      %v4076 = vpack.c.b16 %v4040, %v4036
      %v4077 = vpack.c.b16 %v4041, %v4037
      %v4078 = vpack.c.b16 %v4046, %v4042
      %v4079 = vpack.c.b16 %v4047, %v4043
      %v4080 = vpack.c.b16 %v4048, %v4044
      %v4081 = vpack.c.b16 %v4049, %v4045
      %4114 = vmatprep.subr.bf16.mxu0 %v4051
      %4115 = vmatpush1.bf16.msra.mxu0 %v4050
      %4116 = vmatprep.subr.bf16.mxu0 %v4055
      %4117 = vmatpush1.bf16.msra.mxu0 %v4054
      %4118 = vmatprep.subr.bf16.mxu0 %v4059
      %4119 = vmatpush1.bf16.msra.mxu0 %v4058
      %4120 = vmatprep.subr.bf16.mxu0 %v4063
      %4121 = vmatpush1.bf16.msra.mxu0 %v4062
      %4122 = vmatprep.subr.bf16.mxu0 %v4067
      %4123 = vmatpush1.bf16.msra.mxu0 %v4066
      %4124 = vmatprep.subr.bf16.mxu0 %v4071
      %4125 = vmatpush1.bf16.msra.mxu0 %v4070
      %4126 = vmatprep.subr.bf16.mxu0 %v4075
      %4127 = vmatpush1.bf16.msra.mxu0 %v4074
      %4128 = vmatprep.subr.bf16.mxu0 %v4079
      %4129 = vmatpush1.bf16.msra.mxu0 %v4078
      %4130 = vmatprep.subr.bf16.mxu0 0
      %4131 = vmatpush1.bf16.msra.mxu0 0
      %4132 = vmatprep.subr.bf16.mxu0 0
      %4133 = vmatpush1.bf16.msra.mxu0 0
      %4134 = vmatprep.subr.bf16.mxu0 0
      %4135 = vmatpush1.bf16.msra.mxu0 0
      %4136 = vmatprep.subr.bf16.mxu0 0
      %4137 = vmatpush1.bf16.msra.mxu0 0
      %4138 = vmatprep.subr.bf16.mxu0 0
      %4139 = vmatpush1.bf16.msra.mxu0 0
      %4140 = vmatprep.subr.bf16.mxu0 0
      %4141 = vmatpush1.bf16.msra.mxu0 0
      %4142 = vmatprep.subr.bf16.mxu0 0
      %4143 = vmatpush1.bf16.msra.mxu0 0
      %4144 = vmatprep.subr.bf16.mxu0 0
      %4145 = vmatpush1.bf16.msra.mxu0 0
      %4146 = vmatprep.mubr.bf16.mxu0 0
      %4147 = vmatmul.mubr.bf16.gmra.mrb[0].mxu0 %v3921
      %v4148 = vpop.f32.mrb[0].mxu0
      %v4149 = vadd.f32 0.0, %v4148
      %v4150 = vpop.f32.mrb[0].mxu0
      %v4151 = vadd.f32 0.0, %v4150
      %v4152 = vpop.f32.mrb[0].mxu0
      %v4153 = vpop.f32.mrb[0].mxu0
      %4154 = vdwg.mxu0
      %4155 = vmatprep.subr.bf16.mxu0 %v4053
      %4156 = vmatpush1.bf16.msra.mxu0 %v4052
      %4157 = vmatprep.subr.bf16.mxu0 %v4057
      %4158 = vmatpush1.bf16.msra.mxu0 %v4056
      %4159 = vmatprep.subr.bf16.mxu0 %v4061
      %4160 = vmatpush1.bf16.msra.mxu0 %v4060
      %4161 = vmatprep.subr.bf16.mxu0 %v4065
      %4162 = vmatpush1.bf16.msra.mxu0 %v4064
      %4163 = vmatprep.subr.bf16.mxu0 %v4069
      %4164 = vmatpush1.bf16.msra.mxu0 %v4068
      %4165 = vmatprep.subr.bf16.mxu0 %v4073
      %4166 = vmatpush1.bf16.msra.mxu0 %v4072
      %4167 = vmatprep.subr.bf16.mxu0 %v4077
      %4168 = vmatpush1.bf16.msra.mxu0 %v4076
      %4169 = vmatprep.subr.bf16.mxu0 %v4081
      %4170 = vmatpush1.bf16.msra.mxu0 %v4080
      %4171 = vmatprep.subr.bf16.mxu0 0
      %4172 = vmatpush1.bf16.msra.mxu0 0
      %4173 = vmatprep.subr.bf16.mxu0 0
      %4174 = vmatpush1.bf16.msra.mxu0 0
      %4175 = vmatprep.subr.bf16.mxu0 0
      %4176 = vmatpush1.bf16.msra.mxu0 0
      %4177 = vmatprep.subr.bf16.mxu0 0
      %4178 = vmatpush1.bf16.msra.mxu0 0
      %4179 = vmatprep.subr.bf16.mxu0 0
      %4180 = vmatpush1.bf16.msra.mxu0 0
      %4181 = vmatprep.subr.bf16.mxu0 0
      %4182 = vmatpush1.bf16.msra.mxu0 0
      %4183 = vmatprep.subr.bf16.mxu0 0
      %4184 = vmatpush1.bf16.msra.mxu0 0
      %4185 = vmatprep.subr.bf16.mxu0 0
      %4186 = vmatpush1.bf16.msra.mxu0 0
      %4187 = vmatprep.mubr.bf16.mxu0 0
      %4188 = vmatmul.mubr.bf16.gmra.mrb[0].mxu0 %v3921
      %v4189 = vpop.f32.mrb[0].mxu0
      %v4190 = vadd.f32 0.0, %v4189
      %v4191 = vpop.f32.mrb[0].mxu0
      %v4192 = vadd.f32 0.0, %v4191
      %v4193 = vpop.f32.mrb[0].mxu0
      %v4194 = vpop.f32.mrb[0].mxu0
      %4195 = vdwg.mxu0
      %v4200 = vcombine.low %v4149, %v4151
      %v4201 = vcombine.low %v4190, %v4192
      %4204 = vst [vmem:[%s619] sm:$0xff] %v4200
      %4205 = vst [vmem:[%s619 + $0x8] sm:$0xff] %v4201
      %p4206 = scmp.lt.s32.totalorder %s30, 1
      %s4207 = scalar_select %p4206, %s30, 1
      %s4208 = smul.addr %s4207, 2
      %s4209 = smul.addr %s4208, 4
      %s4210 = scalar_lea.vmem %s17, %s4209
      %p4211 = scmp.lt.s32.totalorder %s30, 1
      %s4212 = scalar_select %p4211, %s30, 1
      %s4213 = smul.addr %s4212, 4
      %s4214 = smul.addr %s4213, 4
      %s4215 = scalar_lea.vmem %s18, %s4214
      // Predicated region
      $region89: #{mv_record_forward.1} parent=87 // pred_check
        %p4216 = pneg %p420
      $region90: #{mv_record_forward.1} parent=87 // pred_check_branch
        %4218 = sbr.rel (%p4216) target = $region92
      $region91: #{mv_record_forward.1} parent=87 // pred_region
        _
      $region92: #{mv_record_forward.1} parent=87 // pred_fallthru
        _
      // Predicated region
      $region93: #{mv_record_forward.1} parent=87 // pred_check
        %p4219 = pneg %p446
      $region94: #{mv_record_forward.1} parent=87 // pred_check_branch
        %4221 = sbr.rel (%p4219) target = $region96
      $region95: #{mv_record_forward.1} parent=87 // pred_region
        _
      $region96: #{mv_record_forward.1} parent=87 // pred_fallthru
        _
    $region88: #{mv_record_forward.1} parent=5 // pred_fallthru
      _
    %p4222 = scmp.le.s32.totalorder 2, %s25
    // Predicated region
    $region97: #{mv_record_forward.1} parent=5 // pred_check
      %p4223 = pneg %p4222
    $region98: #{mv_record_forward.1} parent=5 // pred_check_branch
      %4225 = sbr.rel (%p4223) target = $region100
    $region99: #{mv_record_forward.1} parent=5 // pred_region
      %s4226 = ssub.s32 %s25, 2
      // Predicated region
      $region101: #{mv_record_forward.1} parent=99 // pred_check
        %p4227 = pneg %p426
      $region102: #{mv_record_forward.1} parent=99 // pred_check_branch
        %4229 = sbr.rel (%p4227) target = $region104
      $region103: #{mv_record_forward.1} parent=99 // pred_region
        %p4230 = scmp.lt.s32.totalorder %s31, 1
        %s4231 = scalar_select %p4230, %s31, 1
        %s4232 = smul.addr %s4231, 2
        %s4233 = smul.addr %s4232, 4
        %s4234 = scalar_lea.vmem %s17, %s4233
      $region104: #{mv_record_forward.1} parent=99 // pred_fallthru
        _
      // Predicated region
      $region105: #{mv_record_forward.1} parent=99 // pred_check
        %p4235 = pneg %p452
      $region106: #{mv_record_forward.1} parent=99 // pred_check_branch
        %4237 = sbr.rel (%p4235) target = $region108
      $region107: #{mv_record_forward.1} parent=99 // pred_region
        %p4238 = scmp.lt.s32.totalorder %s31, 1
        %s4239 = scalar_select %p4238, %s31, 1
        %s4240 = smul.addr %s4239, 4
        %s4241 = smul.addr %s4240, 4
        %s4242 = scalar_lea.vmem %s18, %s4241
      $region108: #{mv_record_forward.1} parent=99 // pred_fallthru
        _
    $region100: #{mv_record_forward.1} parent=5 // pred_fallthru
      _
  $region6: #{mv_record_forward.1} parent=0 // loop_footer
    %s29 = sadd.s32 1, %s25
  $region7: #{mv_record_forward.1} parent=0 // loop_footer_branch
    %24 = sbr.rel target = $region3
  $region8: #{mv_record_forward.1} parent=0 // loop_exit
    _

</llo_original>
